<compile_context>
chip_gen: v7x
topology: tpu7x:2x2x1
jax: 0.10.0
libtpu: 0.0.40
codegen_flags: <defaults>
</compile_context>

<pallas_src>
import functools
import math

import jax
import jax.numpy as jnp
from jax import lax
from jax.experimental import pallas as pl
from jax.experimental.pallas import tpu as pltpu

LANE = 128     # vreg lane width
SUBLANE = 8    # f32 sublane count


def _round_up(x, m):
    return ((x + m - 1) // m) * m


def _sigmoid(x):
    # Exact identity sigmoid(x) = 0.5*(1 + tanh(x/2)); tanh goes to the EUP slot.
    return 0.5 * jnp.tanh(0.5 * x) + 0.5


# ----------------------------------------------------------------------------
# Fused Pallas kernel: all LSTM layers + final fc in a single invocation.
# ----------------------------------------------------------------------------
def fused_lstm_fc_kernel(num_layers, seq_len, bt, hp, x_ref, *args):
    """Ref layout (all shapes padded, one batch tile of `bt` rows):
       inputs : x (T, bt, Din_p) f32, then per layer [w_ih_t (Din_p|Hp, 4Hp) bf16,
                w_hh_t (Hp, 4Hp) bf16, bias (1, 4Hp) f32], then fc_w_t (Hp, Op) bf16,
                fc_b (1, Op) f32
       output : out (bt, Op) f32
       scratch: proj_sc (T, bt, 4Hp) f32  -- batched input projection of current layer
                seq_sc  (T, bt, Hp)  f32  -- output sequence of current layer
    """
    n_w = 3 * num_layers
    layer_refs = args[:n_w]
    fc_w_ref = args[n_w]
    fc_b_ref = args[n_w + 1]
    out_ref = args[n_w + 2]
    proj_sc = args[n_w + 3]
    seq_sc = args[n_w + 4]

    # Full unroll for short sequences, bounded unroll otherwise (vreg pressure).
    unroll = True if seq_len <= 16 else 8

    h_last = jnp.zeros((bt, hp), jnp.bfloat16)

    for layer in range(num_layers):                    # static Python unroll over layers
        w_ih_ref = layer_refs[3 * layer]
        w_hh_ref = layer_refs[3 * layer + 1]
        b_ref = layer_refs[3 * layer + 2]
        is_last = layer == num_layers - 1

        # ---- Phase 1: batched input projection for ALL time steps (one bf16 MXU
        #      matmul, f32 accumulation; bias add hoisted off the sequential path). ---
        if layer == 0:
            layer_in = x_ref[...].reshape(seq_len * bt, -1).astype(jnp.bfloat16)
        else:
            layer_in = seq_sc[...].reshape(seq_len * bt, hp).astype(jnp.bfloat16)
        proj = jnp.dot(layer_in, w_ih_ref[...], preferred_element_type=jnp.float32)
        proj_sc[...] = (proj + b_ref[...]).reshape(seq_len, bt, 4 * hp)

        # ---- Phase 2: sequential recurrence — only h_prev @ W_hh^T per step. -------
        w_hh = w_hh_ref[...]                           # bf16, hoisted out of the loop

        def step(t, carry, w_hh=w_hh, is_last=is_last):
            h_bf, c = carry                            # h_bf: bf16, c: f32
            gates = proj_sc[t] + jnp.dot(
                h_bf, w_hh, preferred_element_type=jnp.float32
            )                                          # (bt, 4*Hp) f32
            # Gate slices are full 128-lane (Hp-wide) aligned blocks: i, f, g, o.
            i_g = _sigmoid(gates[:, 0 * hp:1 * hp])
            f_g = _sigmoid(gates[:, 1 * hp:2 * hp])
            g_g = jnp.tanh(gates[:, 2 * hp:3 * hp])
            o_g = _sigmoid(gates[:, 3 * hp:4 * hp])
            c_new = f_g * c + i_g * g_g
            h_new = o_g * jnp.tanh(c_new)              # f32
            if not is_last:                            # last layer's sequence is dead
                seq_sc[t] = h_new
            return h_new.astype(jnp.bfloat16), c_new

        init = (jnp.zeros((bt, hp), jnp.bfloat16),
                jnp.zeros((bt, hp), jnp.float32))
        h_last, _ = lax.fori_loop(0, seq_len, step, init, unroll=unroll)

    # ---- Final linear layer on the last time step of the last layer. --------------
    out_ref[...] = (
        jnp.dot(h_last, fc_w_ref[...], preferred_element_type=jnp.float32)
        + fc_b_ref[...]
    )


# ----------------------------------------------------------------------------
# Wrapper (glue): batch_first (B,T,...) -> time-major padded layout + batch-tile grid.
# ----------------------------------------------------------------------------
def action_classifier_forward(x, packed):
    """Equivalent of ActionClassifier.forward.  x: (B, T, *feature_dims)."""
    B, T = x.shape[0], x.shape[1]
    x = x.reshape(B, T, -1).astype(jnp.float32)          # x.view(B, T, -1)
    din = x.shape[-1]

    hp, op = packed["hp"], packed["op"]
    num_layers = packed["num_layers"]
    din_p = packed["lstm"][0]["w_ih_t"].shape[0]

    # Batch tiling: pad rows to a multiple of the tile so each grid step is a dense
    # (bt, 128) slab; the grid axis is "parallel" so v7x can use both TensorCores.
    bp = _round_up(B, SUBLANE)
    bt = min(bp, 128)
    bp = _round_up(bp, bt)
    n_bt = bp // bt

    # time-major, pad batch rows + feature lanes with zeros (inert, sliced off later)
    seq = jnp.transpose(x, (1, 0, 2))                    # (T, B, Din)
    seq = jnp.pad(seq, ((0, 0), (0, bp - B), (0, din_p - din)))   # (T, Bp, Din_p)

    inputs = [seq]
    for layer in packed["lstm"]:
        inputs += [layer["w_ih_t"], layer["w_hh_t"], layer["bias"]]
    inputs += [packed["fc_w_t"], packed["fc_b"]]

    kernel = functools.partial(fused_lstm_fc_kernel, num_layers, T, bt, hp)

    # Weights are whole-array VMEM blocks with a constant index map (loaded once).
    weight_specs = [pl.BlockSpec(a.shape, lambda i: (0, 0)) for a in inputs[1:]]

    grid_spec = pltpu.PrefetchScalarGridSpec(
        num_scalar_prefetch=0,
        grid=(n_bt,),
        in_specs=[pl.BlockSpec((T, bt, din_p), lambda i: (0, i, 0))] + weight_specs,
        out_specs=pl.BlockSpec((bt, op), lambda i: (i, 0)),
        scratch_shapes=[
            pltpu.VMEM((T, bt, 4 * hp), jnp.float32),    # batched input projection
            pltpu.VMEM((T, bt, hp), jnp.float32),        # per-layer output sequence
        ],
    )

    out_pad = pl.pallas_call(
        kernel,
        out_shape=jax.ShapeDtypeStruct((bp, op), jnp.float32),
        grid_spec=grid_spec,
        compiler_params=pltpu.CompilerParams(dimension_semantics=("parallel",)),
    )(*inputs)

    return out_pad[:B, :packed["output_dim"]]


# ----------------------------------------------------------------------------
# Parameter init (PyTorch-style uniform(-1/sqrt(H), 1/sqrt(H))) and TPU packing.
# ----------------------------------------------------------------------------
def init_raw_params(key, input_dim, hidden_dim, output_dim, num_layers):
    bound = 1.0 / math.sqrt(hidden_dim)
    lstm = []
    for l in range(num_layers):
        din = input_dim if l == 0 else hidden_dim
        key, k1, k2, k3, k4 = jax.random.split(key, 5)
        lstm.append({
            "w_ih": jax.random.uniform(k1, (4 * hidden_dim, din), jnp.float32, -bound, bound),
            "w_hh": jax.random.uniform(k2, (4 * hidden_dim, hidden_dim), jnp.float32, -bound, bound),
            "b_ih": jax.random.uniform(k3, (4 * hidden_dim,), jnp.float32, -bound, bound),
            "b_hh": jax.random.uniform(k4, (4 * hidden_dim,), jnp.float32, -bound, bound),
        })
    key, k1, k2 = jax.random.split(key, 3)
    fc_w = jax.random.uniform(k1, (output_dim, hidden_dim), jnp.float32, -bound, bound)
    fc_b = jax.random.uniform(k2, (output_dim,), jnp.float32, -bound, bound)
    return {"lstm": lstm, "fc_w": fc_w, "fc_b": fc_b,
            "input_dim": input_dim, "hidden_dim": hidden_dim,
            "output_dim": output_dim, "num_layers": num_layers}


def _pad_gate_cols(w_t, h, hp):
    """(Din, 4H) -> (Din, 4Hp): each i/f/g/o gate block padded to Hp lanes with zeros."""
    din = w_t.shape[0]
    out = jnp.zeros((din, 4 * hp), w_t.dtype)
    for g in range(4):
        out = out.at[:, g * hp:g * hp + h].set(w_t[:, g * h:(g + 1) * h])
    return out


def _pad_gate_vec(b, h, hp):
    out = jnp.zeros((4 * hp,), b.dtype)
    for g in range(4):
        out = out.at[g * hp:g * hp + h].set(b[g * h:(g + 1) * h])
    return out


def pack_params(raw):
    """Pad weights into lane-dense TPU layout (gate & hidden dims -> multiples of 128).
    Matmul weights are stored in bf16 (MXU operands); biases stay f32 (added to the
    f32 accumulators)."""
    h = raw["hidden_dim"]
    o = raw["output_dim"]
    hp = _round_up(h, LANE)
    op = _round_up(o, LANE)
    packed = {"lstm": [], "hidden_dim": h, "output_dim": o, "hp": hp, "op": op,
              "num_layers": raw["num_layers"]}
    for l, layer in enumerate(raw["lstm"]):
        din = layer["w_ih"].shape[1]
        din_p = _round_up(din, LANE) if l == 0 else hp
        w_ih_t = _pad_gate_cols(layer["w_ih"].T, h, hp)          # (din, 4Hp)
        w_ih_t = jnp.pad(w_ih_t, ((0, din_p - din), (0, 0)))     # (din_p, 4Hp)
        w_hh_t = _pad_gate_cols(layer["w_hh"].T, h, hp)          # (H, 4Hp)
        w_hh_t = jnp.pad(w_hh_t, ((0, hp - h), (0, 0)))          # (Hp, 4Hp)
        bias = _pad_gate_vec(layer["b_ih"] + layer["b_hh"], h, hp)[None, :]
        packed["lstm"].append({
            "w_ih_t": w_ih_t.astype(jnp.bfloat16),
            "w_hh_t": w_hh_t.astype(jnp.bfloat16),
            "bias": bias.astype(jnp.float32),
        })
    fc_w_t = jnp.zeros((hp, op), jnp.float32).at[:h, :o].set(raw["fc_w"].T)
    fc_b = jnp.zeros((1, op), jnp.float32).at[0, :o].set(raw["fc_b"])
    packed["fc_w_t"] = fc_w_t.astype(jnp.bfloat16)
    packed["fc_b"] = fc_b
    return packed


# ----------------------------------------------------------------------------
# Pure-JAX reference (unpadded, full f32) for correctness check.
# ----------------------------------------------------------------------------
def reference_forward(x, raw):
    B, T = x.shape[0], x.shape[1]
    xs = x.reshape(B, T, -1).astype(jnp.float32)
    seq = jnp.transpose(xs, (1, 0, 2))                   # (T, B, Din)
    H = raw["hidden_dim"]
    hi = lax.Precision.HIGHEST
    for layer in raw["lstm"]:
        w_ih_t = layer["w_ih"].T
        w_hh_t = layer["w_hh"].T
        b = (layer["b_ih"] + layer["b_hh"])[None, :]

        def step(carry, x_t, w_ih_t=w_ih_t, w_hh_t=w_hh_t, b=b):
            h, c = carry
            gates = (jnp.dot(x_t, w_ih_t, precision=hi)
                     + jnp.dot(h, w_hh_t, precision=hi) + b)
            i = jax.nn.sigmoid(gates[:, 0 * H:1 * H])
            f = jax.nn.sigmoid(gates[:, 1 * H:2 * H])
            g = jnp.tanh(gates[:, 2 * H:3 * H])
            o_ = jax.nn.sigmoid(gates[:, 3 * H:4 * H])
            c = f * c + i * g
            h = o_ * jnp.tanh(c)
            return (h, c), h

        init = (jnp.zeros((B, H), jnp.float32), jnp.zeros((B, H), jnp.float32))
        _, seq = lax.scan(step, init, seq)
    last_h = seq[-1]
    return jnp.dot(last_h, raw["fc_w"].T, precision=hi) + raw["fc_b"][None, :]


# ----------------------------------------------------------------------------
if __name__ == "__main__":
    # x is (B, T, C, K) -> viewed to (B, T, C*K) by forward(); input_dim = C*K = 16
    B, T, C, K = 2, 8, 4, 4
    input_dim, hidden_dim, output_dim, num_layers = C * K, 32, 8, 2

    key = jax.random.PRNGKey(0)
    key, kx = jax.random.split(key)
    x = jax.random.normal(kx, (B, T, C, K), jnp.float32)

    raw = init_raw_params(key, input_dim, hidden_dim, output_dim, num_layers)
    packed = pack_params(raw)

    out = action_classifier_forward(x, packed)
    out = jax.block_until_ready(out)
    assert out.shape == (B, output_dim)

    # bf16 MXU operands (f32 accumulation) vs full-f32 HIGHEST-precision reference:
    # tolerance loosened accordingly (see perf-review correctness note).
    ref = reference_forward(x, raw)
    assert jnp.allclose(out, ref, atol=3e-2, rtol=3e-2), "mismatch vs pure-JAX LSTM reference"

    print("KERNEL_OK")
</pallas_src>

<mosaic_0001>
module attributes {stable_mosaic.version = 11 : i64} {
  func.func @fused_lstm_fc_kernel(%arg0: i32, %arg1: memref<8x8x128xf32, #tpu.memory_space<vmem>>, %arg2: memref<128x512xbf16, #tpu.memory_space<vmem>>, %arg3: memref<128x512xbf16, #tpu.memory_space<vmem>>, %arg4: memref<1x512xf32, #tpu.memory_space<vmem>>, %arg5: memref<128x512xbf16, #tpu.memory_space<vmem>>, %arg6: memref<128x512xbf16, #tpu.memory_space<vmem>>, %arg7: memref<1x512xf32, #tpu.memory_space<vmem>>, %arg8: memref<128x128xbf16, #tpu.memory_space<vmem>>, %arg9: memref<1x128xf32, #tpu.memory_space<vmem>>, %arg10: memref<8x128xf32, #tpu.memory_space<vmem>>, %arg11: memref<8x8x512xf32, #tpu.memory_space<vmem>>, %arg12: memref<8x8x128xf32, #tpu.memory_space<vmem>>) attributes {dimension_semantics = [#tpu.dimension_semantics<parallel>], iteration_bounds = array<i64: 1>, scalar_prefetch = 0 : i64, scratch_operands = 2 : i64, tpu.core_type = #tpu.core_type<tc>, window_params = [{transform_indices = @transform_0, window_bounds = array<i64: 8, 8, 128>}, {pipeline_mode = #tpu.pipeline_mode<synchronous>, transform_indices = @transform_1, window_bounds = array<i64: 128, 512>}, {pipeline_mode = #tpu.pipeline_mode<synchronous>, transform_indices = @transform_2, window_bounds = array<i64: 128, 512>}, {pipeline_mode = #tpu.pipeline_mode<synchronous>, transform_indices = @transform_3, window_bounds = array<i64: 1, 512>}, {pipeline_mode = #tpu.pipeline_mode<synchronous>, transform_indices = @transform_4, window_bounds = array<i64: 128, 512>}, {pipeline_mode = #tpu.pipeline_mode<synchronous>, transform_indices = @transform_5, window_bounds = array<i64: 128, 512>}, {pipeline_mode = #tpu.pipeline_mode<synchronous>, transform_indices = @transform_6, window_bounds = array<i64: 1, 512>}, {pipeline_mode = #tpu.pipeline_mode<synchronous>, transform_indices = @transform_7, window_bounds = array<i64: 128, 128>}, {pipeline_mode = #tpu.pipeline_mode<synchronous>, transform_indices = @transform_8, window_bounds = array<i64: 1, 128>}, {transform_indices = @transform_9, window_bounds = array<i64: 8, 128>}]} {
    %c0 = arith.constant 0 : index
    %c0_0 = arith.constant 0 : index
    %c0_1 = arith.constant 0 : index
    %0 = vector.load %arg1[%c0, %c0_0, %c0_1] : memref<8x8x128xf32, #tpu.memory_space<vmem>>, vector<8x8x128xf32>
    %1 = vector.shape_cast %0 : vector<8x8x128xf32> to vector<64x128xf32>
    %2 = arith.truncf %1 : vector<64x128xf32> to vector<64x128xbf16>
    %c0_2 = arith.constant 0 : index
    %c0_3 = arith.constant 0 : index
    %3 = vector.load %arg2[%c0_2, %c0_3] : memref<128x512xbf16, #tpu.memory_space<vmem>>, vector<128x512xbf16>
    %cst = arith.constant dense<0.000000e+00> : vector<64x512xf32>
    %4 = tpu.matmul %2, %3, %cst {dimension_numbers = #tpu.dot_dimension_numbers<[1], [0], [0], [1], [0, 0, 1, 1], [], []>} : vector<64x128xbf16>, vector<128x512xbf16>, vector<64x512xf32> -> vector<64x512xf32>
    %c0_4 = arith.constant 0 : index
    %c0_5 = arith.constant 0 : index
    %5 = vector.load %arg4[%c0_4, %c0_5] : memref<1x512xf32, #tpu.memory_space<vmem>>, vector<1x512xf32>
    %6 = vector.broadcast %5 : vector<1x512xf32> to vector<64x512xf32>
    %7 = arith.addf %4, %6 : vector<64x512xf32>
    %8 = vector.shape_cast %7 : vector<64x512xf32> to vector<8x8x512xf32>
    %c0_6 = arith.constant 0 : index
    %c0_7 = arith.constant 0 : index
    %c0_8 = arith.constant 0 : index
    %9 = vector.load %arg11[%c0_6, %c0_7, %c0_8] : memref<8x8x512xf32, #tpu.memory_space<vmem>>, vector<8x8x512xf32>
    tpu.vector_store %arg11[%c0_6, %c0_7, %c0_8], %8 {strides = array<i32>} : memref<8x8x512xf32, #tpu.memory_space<vmem>>, vector<8x8x512xf32>,
    %c0_9 = arith.constant 0 : index
    %c0_10 = arith.constant 0 : index
    %10 = vector.load %arg3[%c0_9, %c0_10] : memref<128x512xbf16, #tpu.memory_space<vmem>>, vector<128x512xbf16>
    %cst_11 = arith.constant 0.000000e+00 : bf16
    %11 = vector.broadcast %cst_11 : bf16 to vector<8x128xbf16>
    %cst_12 = arith.constant 0.000000e+00 : f32
    %12 = vector.broadcast %cst_12 : f32 to vector<8x128xf32>
    %c0_i32 = arith.constant 0 : i32
    %13 = arith.index_cast %c0_i32 : i32 to index
    %c0_13 = arith.constant 0 : index
    %c0_14 = arith.constant 0 : index
    %14 = vector.load %arg11[%13, %c0_13, %c0_14] : memref<8x8x512xf32, #tpu.memory_space<vmem>>, vector<1x8x512xf32>
    %15 = vector.shape_cast %14 : vector<1x8x512xf32> to vector<8x512xf32>
    %cst_15 = arith.constant dense<0.000000e+00> : vector<8x512xf32>
    %16 = tpu.matmul %11, %10, %cst_15 {dimension_numbers = #tpu.dot_dimension_numbers<[1], [0], [0], [1], [0, 0, 1, 1], [], []>} : vector<8x128xbf16>, vector<128x512xbf16>, vector<8x512xf32> -> vector<8x512xf32>
    %17 = arith.addf %15, %16 : vector<8x512xf32>
    %18 = vector.extract_strided_slice %17 {offsets = [0, 0], sizes = [8, 128], strides = [1, 1]} : vector<8x512xf32> to vector<8x128xf32>
    %cst_16 = arith.constant 5.000000e-01 : f32
    %19 = vector.broadcast %cst_16 : f32 to vector<8x128xf32>
    %20 = arith.mulf %19, %18 : vector<8x128xf32>
    %21 = math.tanh %20 : vector<8x128xf32>
    %cst_17 = arith.constant 5.000000e-01 : f32
    %22 = vector.broadcast %cst_17 : f32 to vector<8x128xf32>
    %23 = arith.mulf %22, %21 : vector<8x128xf32>
    %cst_18 = arith.constant 5.000000e-01 : f32
    %24 = vector.broadcast %cst_18 : f32 to vector<8x128xf32>
    %25 = arith.addf %23, %24 : vector<8x128xf32>
    %26 = vector.extract_strided_slice %17 {offsets = [0, 128], sizes = [8, 128], strides = [1, 1]} : vector<8x512xf32> to vector<8x128xf32>
    %cst_19 = arith.constant 5.000000e-01 : f32
    %27 = vector.broadcast %cst_19 : f32 to vector<8x128xf32>
    %28 = arith.mulf %27, %26 : vector<8x128xf32>
    %29 = math.tanh %28 : vector<8x128xf32>
    %cst_20 = arith.constant 5.000000e-01 : f32
    %30 = vector.broadcast %cst_20 : f32 to vector<8x128xf32>
    %31 = arith.mulf %30, %29 : vector<8x128xf32>
    %cst_21 = arith.constant 5.000000e-01 : f32
    %32 = vector.broadcast %cst_21 : f32 to vector<8x128xf32>
    %33 = arith.addf %31, %32 : vector<8x128xf32>
    %34 = vector.extract_strided_slice %17 {offsets = [0, 256], sizes = [8, 128], strides = [1, 1]} : vector<8x512xf32> to vector<8x128xf32>
    %35 = math.tanh %34 : vector<8x128xf32>
    %36 = vector.extract_strided_slice %17 {offsets = [0, 384], sizes = [8, 128], strides = [1, 1]} : vector<8x512xf32> to vector<8x128xf32>
    %cst_22 = arith.constant 5.000000e-01 : f32
    %37 = vector.broadcast %cst_22 : f32 to vector<8x128xf32>
    %38 = arith.mulf %37, %36 : vector<8x128xf32>
    %39 = math.tanh %38 : vector<8x128xf32>
    %cst_23 = arith.constant 5.000000e-01 : f32
    %40 = vector.broadcast %cst_23 : f32 to vector<8x128xf32>
    %41 = arith.mulf %40, %39 : vector<8x128xf32>
    %cst_24 = arith.constant 5.000000e-01 : f32
    %42 = vector.broadcast %cst_24 : f32 to vector<8x128xf32>
    %43 = arith.addf %41, %42 : vector<8x128xf32>
    %44 = arith.mulf %33, %12 : vector<8x128xf32>
    %45 = arith.mulf %25, %35 : vector<8x128xf32>
    %46 = arith.addf %44, %45 : vector<8x128xf32>
    %47 = math.tanh %46 : vector<8x128xf32>
    %48 = arith.mulf %43, %47 : vector<8x128xf32>
    %49 = arith.index_cast %c0_i32 : i32 to index
    %c0_25 = arith.constant 0 : index
    %c0_26 = arith.constant 0 : index
    %50 = vector.load %arg12[%49, %c0_25, %c0_26] : memref<8x8x128xf32, #tpu.memory_space<vmem>>, vector<1x8x128xf32>
    %51 = vector.shape_cast %50 : vector<1x8x128xf32> to vector<8x128xf32>
    %52 = vector.shape_cast %48 : vector<8x128xf32> to vector<1x8x128xf32>
    tpu.vector_store %arg12[%49, %c0_25, %c0_26], %52 {strides = array<i32>} : memref<8x8x128xf32, #tpu.memory_space<vmem>>, vector<1x8x128xf32>,
    %53 = arith.truncf %48 : vector<8x128xf32> to vector<8x128xbf16>
    %c1_i32 = arith.constant 1 : i32
    %54 = arith.index_cast %c1_i32 : i32 to index
    %c0_27 = arith.constant 0 : index
    %c0_28 = arith.constant 0 : index
    %55 = vector.load %arg11[%54, %c0_27, %c0_28] : memref<8x8x512xf32, #tpu.memory_space<vmem>>, vector<1x8x512xf32>
    %56 = vector.shape_cast %55 : vector<1x8x512xf32> to vector<8x512xf32>
    %cst_29 = arith.constant dense<0.000000e+00> : vector<8x512xf32>
    %57 = tpu.matmul %53, %10, %cst_29 {dimension_numbers = #tpu.dot_dimension_numbers<[1], [0], [0], [1], [0, 0, 1, 1], [], []>} : vector<8x128xbf16>, vector<128x512xbf16>, vector<8x512xf32> -> vector<8x512xf32>
    %58 = arith.addf %56, %57 : vector<8x512xf32>
    %59 = vector.extract_strided_slice %58 {offsets = [0, 0], sizes = [8, 128], strides = [1, 1]} : vector<8x512xf32> to vector<8x128xf32>
    %cst_30 = arith.constant 5.000000e-01 : f32
    %60 = vector.broadcast %cst_30 : f32 to vector<8x128xf32>
    %61 = arith.mulf %60, %59 : vector<8x128xf32>
    %62 = math.tanh %61 : vector<8x128xf32>
    %cst_31 = arith.constant 5.000000e-01 : f32
    %63 = vector.broadcast %cst_31 : f32 to vector<8x128xf32>
    %64 = arith.mulf %63, %62 : vector<8x128xf32>
    %cst_32 = arith.constant 5.000000e-01 : f32
    %65 = vector.broadcast %cst_32 : f32 to vector<8x128xf32>
    %66 = arith.addf %64, %65 : vector<8x128xf32>
    %67 = vector.extract_strided_slice %58 {offsets = [0, 128], sizes = [8, 128], strides = [1, 1]} : vector<8x512xf32> to vector<8x128xf32>
    %cst_33 = arith.constant 5.000000e-01 : f32
    %68 = vector.broadcast %cst_33 : f32 to vector<8x128xf32>
    %69 = arith.mulf %68, %67 : vector<8x128xf32>
    %70 = math.tanh %69 : vector<8x128xf32>
    %cst_34 = arith.constant 5.000000e-01 : f32
    %71 = vector.broadcast %cst_34 : f32 to vector<8x128xf32>
    %72 = arith.mulf %71, %70 : vector<8x128xf32>
    %cst_35 = arith.constant 5.000000e-01 : f32
    %73 = vector.broadcast %cst_35 : f32 to vector<8x128xf32>
    %74 = arith.addf %72, %73 : vector<8x128xf32>
    %75 = vector.extract_strided_slice %58 {offsets = [0, 256], sizes = [8, 128], strides = [1, 1]} : vector<8x512xf32> to vector<8x128xf32>
    %76 = math.tanh %75 : vector<8x128xf32>
    %77 = vector.extract_strided_slice %58 {offsets = [0, 384], sizes = [8, 128], strides = [1, 1]} : vector<8x512xf32> to vector<8x128xf32>
    %cst_36 = arith.constant 5.000000e-01 : f32
    %78 = vector.broadcast %cst_36 : f32 to vector<8x128xf32>
    %79 = arith.mulf %78, %77 : vector<8x128xf32>
    %80 = math.tanh %79 : vector<8x128xf32>
    %cst_37 = arith.constant 5.000000e-01 : f32
    %81 = vector.broadcast %cst_37 : f32 to vector<8x128xf32>
    %82 = arith.mulf %81, %80 : vector<8x128xf32>
    %cst_38 = arith.constant 5.000000e-01 : f32
    %83 = vector.broadcast %cst_38 : f32 to vector<8x128xf32>
    %84 = arith.addf %82, %83 : vector<8x128xf32>
    %85 = arith.mulf %74, %46 : vector<8x128xf32>
    %86 = arith.mulf %66, %76 : vector<8x128xf32>
    %87 = arith.addf %85, %86 : vector<8x128xf32>
    %88 = math.tanh %87 : vector<8x128xf32>
    %89 = arith.mulf %84, %88 : vector<8x128xf32>
    %90 = arith.index_cast %c1_i32 : i32 to index
    %c0_39 = arith.constant 0 : index
    %c0_40 = arith.constant 0 : index
    %91 = vector.load %arg12[%90, %c0_39, %c0_40] : memref<8x8x128xf32, #tpu.memory_space<vmem>>, vector<1x8x128xf32>
    %92 = vector.shape_cast %91 : vector<1x8x128xf32> to vector<8x128xf32>
    %93 = vector.shape_cast %89 : vector<8x128xf32> to vector<1x8x128xf32>
    tpu.vector_store %arg12[%90, %c0_39, %c0_40], %93 {strides = array<i32>} : memref<8x8x128xf32, #tpu.memory_space<vmem>>, vector<1x8x128xf32>,
    %94 = arith.truncf %89 : vector<8x128xf32> to vector<8x128xbf16>
    %c2_i32 = arith.constant 2 : i32
    %95 = arith.index_cast %c2_i32 : i32 to index
    %c0_41 = arith.constant 0 : index
    %c0_42 = arith.constant 0 : index
    %96 = vector.load %arg11[%95, %c0_41, %c0_42] : memref<8x8x512xf32, #tpu.memory_space<vmem>>, vector<1x8x512xf32>
    %97 = vector.shape_cast %96 : vector<1x8x512xf32> to vector<8x512xf32>
    %cst_43 = arith.constant dense<0.000000e+00> : vector<8x512xf32>
    %98 = tpu.matmul %94, %10, %cst_43 {dimension_numbers = #tpu.dot_dimension_numbers<[1], [0], [0], [1], [0, 0, 1, 1], [], []>} : vector<8x128xbf16>, vector<128x512xbf16>, vector<8x512xf32> -> vector<8x512xf32>
    %99 = arith.addf %97, %98 : vector<8x512xf32>
    %100 = vector.extract_strided_slice %99 {offsets = [0, 0], sizes = [8, 128], strides = [1, 1]} : vector<8x512xf32> to vector<8x128xf32>
    %cst_44 = arith.constant 5.000000e-01 : f32
    %101 = vector.broadcast %cst_44 : f32 to vector<8x128xf32>
    %102 = arith.mulf %101, %100 : vector<8x128xf32>
    %103 = math.tanh %102 : vector<8x128xf32>
    %cst_45 = arith.constant 5.000000e-01 : f32
    %104 = vector.broadcast %cst_45 : f32 to vector<8x128xf32>
    %105 = arith.mulf %104, %103 : vector<8x128xf32>
    %cst_46 = arith.constant 5.000000e-01 : f32
    %106 = vector.broadcast %cst_46 : f32 to vector<8x128xf32>
    %107 = arith.addf %105, %106 : vector<8x128xf32>
    %108 = vector.extract_strided_slice %99 {offsets = [0, 128], sizes = [8, 128], strides = [1, 1]} : vector<8x512xf32> to vector<8x128xf32>
    %cst_47 = arith.constant 5.000000e-01 : f32
    %109 = vector.broadcast %cst_47 : f32 to vector<8x128xf32>
    %110 = arith.mulf %109, %108 : vector<8x128xf32>
    %111 = math.tanh %110 : vector<8x128xf32>
    %cst_48 = arith.constant 5.000000e-01 : f32
    %112 = vector.broadcast %cst_48 : f32 to vector<8x128xf32>
    %113 = arith.mulf %112, %111 : vector<8x128xf32>
    %cst_49 = arith.constant 5.000000e-01 : f32
    %114 = vector.broadcast %cst_49 : f32 to vector<8x128xf32>
    %115 = arith.addf %113, %114 : vector<8x128xf32>
    %116 = vector.extract_strided_slice %99 {offsets = [0, 256], sizes = [8, 128], strides = [1, 1]} : vector<8x512xf32> to vector<8x128xf32>
    %117 = math.tanh %116 : vector<8x128xf32>
    %118 = vector.extract_strided_slice %99 {offsets = [0, 384], sizes = [8, 128], strides = [1, 1]} : vector<8x512xf32> to vector<8x128xf32>
    %cst_50 = arith.constant 5.000000e-01 : f32
    %119 = vector.broadcast %cst_50 : f32 to vector<8x128xf32>
    %120 = arith.mulf %119, %118 : vector<8x128xf32>
    %121 = math.tanh %120 : vector<8x128xf32>
    %cst_51 = arith.constant 5.000000e-01 : f32
    %122 = vector.broadcast %cst_51 : f32 to vector<8x128xf32>
    %123 = arith.mulf %122, %121 : vector<8x128xf32>
    %cst_52 = arith.constant 5.000000e-01 : f32
    %124 = vector.broadcast %cst_52 : f32 to vector<8x128xf32>
    %125 = arith.addf %123, %124 : vector<8x128xf32>
    %126 = arith.mulf %115, %87 : vector<8x128xf32>
    %127 = arith.mulf %107, %117 : vector<8x128xf32>
    %128 = arith.addf %126, %127 : vector<8x128xf32>
    %129 = math.tanh %128 : vector<8x128xf32>
    %130 = arith.mulf %125, %129 : vector<8x128xf32>
    %131 = arith.index_cast %c2_i32 : i32 to index
    %c0_53 = arith.constant 0 : index
    %c0_54 = arith.constant 0 : index
    %132 = vector.load %arg12[%131, %c0_53, %c0_54] : memref<8x8x128xf32, #tpu.memory_space<vmem>>, vector<1x8x128xf32>
    %133 = vector.shape_cast %132 : vector<1x8x128xf32> to vector<8x128xf32>
    %134 = vector.shape_cast %130 : vector<8x128xf32> to vector<1x8x128xf32>
    tpu.vector_store %arg12[%131, %c0_53, %c0_54], %134 {strides = array<i32>} : memref<8x8x128xf32, #tpu.memory_space<vmem>>, vector<1x8x128xf32>,
    %135 = arith.truncf %130 : vector<8x128xf32> to vector<8x128xbf16>
    %c3_i32 = arith.constant 3 : i32
    %136 = arith.index_cast %c3_i32 : i32 to index
    %c0_55 = arith.constant 0 : index
    %c0_56 = arith.constant 0 : index
    %137 = vector.load %arg11[%136, %c0_55, %c0_56] : memref<8x8x512xf32, #tpu.memory_space<vmem>>, vector<1x8x512xf32>
    %138 = vector.shape_cast %137 : vector<1x8x512xf32> to vector<8x512xf32>
    %cst_57 = arith.constant dense<0.000000e+00> : vector<8x512xf32>
    %139 = tpu.matmul %135, %10, %cst_57 {dimension_numbers = #tpu.dot_dimension_numbers<[1], [0], [0], [1], [0, 0, 1, 1], [], []>} : vector<8x128xbf16>, vector<128x512xbf16>, vector<8x512xf32> -> vector<8x512xf32>
    %140 = arith.addf %138, %139 : vector<8x512xf32>
    %141 = vector.extract_strided_slice %140 {offsets = [0, 0], sizes = [8, 128], strides = [1, 1]} : vector<8x512xf32> to vector<8x128xf32>
    %cst_58 = arith.constant 5.000000e-01 : f32
    %142 = vector.broadcast %cst_58 : f32 to vector<8x128xf32>
    %143 = arith.mulf %142, %141 : vector<8x128xf32>
    %144 = math.tanh %143 : vector<8x128xf32>
    %cst_59 = arith.constant 5.000000e-01 : f32
    %145 = vector.broadcast %cst_59 : f32 to vector<8x128xf32>
    %146 = arith.mulf %145, %144 : vector<8x128xf32>
    %cst_60 = arith.constant 5.000000e-01 : f32
    %147 = vector.broadcast %cst_60 : f32 to vector<8x128xf32>
    %148 = arith.addf %146, %147 : vector<8x128xf32>
    %149 = vector.extract_strided_slice %140 {offsets = [0, 128], sizes = [8, 128], strides = [1, 1]} : vector<8x512xf32> to vector<8x128xf32>
    %cst_61 = arith.constant 5.000000e-01 : f32
    %150 = vector.broadcast %cst_61 : f32 to vector<8x128xf32>
    %151 = arith.mulf %150, %149 : vector<8x128xf32>
    %152 = math.tanh %151 : vector<8x128xf32>
    %cst_62 = arith.constant 5.000000e-01 : f32
    %153 = vector.broadcast %cst_62 : f32 to vector<8x128xf32>
    %154 = arith.mulf %153, %152 : vector<8x128xf32>
    %cst_63 = arith.constant 5.000000e-01 : f32
    %155 = vector.broadcast %cst_63 : f32 to vector<8x128xf32>
    %156 = arith.addf %154, %155 : vector<8x128xf32>
    %157 = vector.extract_strided_slice %140 {offsets = [0, 256], sizes = [8, 128], strides = [1, 1]} : vector<8x512xf32> to vector<8x128xf32>
    %158 = math.tanh %157 : vector<8x128xf32>
    %159 = vector.extract_strided_slice %140 {offsets = [0, 384], sizes = [8, 128], strides = [1, 1]} : vector<8x512xf32> to vector<8x128xf32>
    %cst_64 = arith.constant 5.000000e-01 : f32
    %160 = vector.broadcast %cst_64 : f32 to vector<8x128xf32>
    %161 = arith.mulf %160, %159 : vector<8x128xf32>
    %162 = math.tanh %161 : vector<8x128xf32>
    %cst_65 = arith.constant 5.000000e-01 : f32
    %163 = vector.broadcast %cst_65 : f32 to vector<8x128xf32>
    %164 = arith.mulf %163, %162 : vector<8x128xf32>
    %cst_66 = arith.constant 5.000000e-01 : f32
    %165 = vector.broadcast %cst_66 : f32 to vector<8x128xf32>
    %166 = arith.addf %164, %165 : vector<8x128xf32>
    %167 = arith.mulf %156, %128 : vector<8x128xf32>
    %168 = arith.mulf %148, %158 : vector<8x128xf32>
    %169 = arith.addf %167, %168 : vector<8x128xf32>
    %170 = math.tanh %169 : vector<8x128xf32>
    %171 = arith.mulf %166, %170 : vector<8x128xf32>
    %172 = arith.index_cast %c3_i32 : i32 to index
    %c0_67 = arith.constant 0 : index
    %c0_68 = arith.constant 0 : index
    %173 = vector.load %arg12[%172, %c0_67, %c0_68] : memref<8x8x128xf32, #tpu.memory_space<vmem>>, vector<1x8x128xf32>
    %174 = vector.shape_cast %173 : vector<1x8x128xf32> to vector<8x128xf32>
    %175 = vector.shape_cast %171 : vector<8x128xf32> to vector<1x8x128xf32>
    tpu.vector_store %arg12[%172, %c0_67, %c0_68], %175 {strides = array<i32>} : memref<8x8x128xf32, #tpu.memory_space<vmem>>, vector<1x8x128xf32>,
    %176 = arith.truncf %171 : vector<8x128xf32> to vector<8x128xbf16>
    %c4_i32 = arith.constant 4 : i32
    %177 = arith.index_cast %c4_i32 : i32 to index
    %c0_69 = arith.constant 0 : index
    %c0_70 = arith.constant 0 : index
    %178 = vector.load %arg11[%177, %c0_69, %c0_70] : memref<8x8x512xf32, #tpu.memory_space<vmem>>, vector<1x8x512xf32>
    %179 = vector.shape_cast %178 : vector<1x8x512xf32> to vector<8x512xf32>
    %cst_71 = arith.constant dense<0.000000e+00> : vector<8x512xf32>
    %180 = tpu.matmul %176, %10, %cst_71 {dimension_numbers = #tpu.dot_dimension_numbers<[1], [0], [0], [1], [0, 0, 1, 1], [], []>} : vector<8x128xbf16>, vector<128x512xbf16>, vector<8x512xf32> -> vector<8x512xf32>
    %181 = arith.addf %179, %180 : vector<8x512xf32>
    %182 = vector.extract_strided_slice %181 {offsets = [0, 0], sizes = [8, 128], strides = [1, 1]} : vector<8x512xf32> to vector<8x128xf32>
    %cst_72 = arith.constant 5.000000e-01 : f32
    %183 = vector.broadcast %cst_72 : f32 to vector<8x128xf32>
    %184 = arith.mulf %183, %182 : vector<8x128xf32>
    %185 = math.tanh %184 : vector<8x128xf32>
    %cst_73 = arith.constant 5.000000e-01 : f32
    %186 = vector.broadcast %cst_73 : f32 to vector<8x128xf32>
    %187 = arith.mulf %186, %185 : vector<8x128xf32>
    %cst_74 = arith.constant 5.000000e-01 : f32
    %188 = vector.broadcast %cst_74 : f32 to vector<8x128xf32>
    %189 = arith.addf %187, %188 : vector<8x128xf32>
    %190 = vector.extract_strided_slice %181 {offsets = [0, 128], sizes = [8, 128], strides = [1, 1]} : vector<8x512xf32> to vector<8x128xf32>
    %cst_75 = arith.constant 5.000000e-01 : f32
    %191 = vector.broadcast %cst_75 : f32 to vector<8x128xf32>
    %192 = arith.mulf %191, %190 : vector<8x128xf32>
    %193 = math.tanh %192 : vector<8x128xf32>
    %cst_76 = arith.constant 5.000000e-01 : f32
    %194 = vector.broadcast %cst_76 : f32 to vector<8x128xf32>
    %195 = arith.mulf %194, %193 : vector<8x128xf32>
    %cst_77 = arith.constant 5.000000e-01 : f32
    %196 = vector.broadcast %cst_77 : f32 to vector<8x128xf32>
    %197 = arith.addf %195, %196 : vector<8x128xf32>
    %198 = vector.extract_strided_slice %181 {offsets = [0, 256], sizes = [8, 128], strides = [1, 1]} : vector<8x512xf32> to vector<8x128xf32>
    %199 = math.tanh %198 : vector<8x128xf32>
    %200 = vector.extract_strided_slice %181 {offsets = [0, 384], sizes = [8, 128], strides = [1, 1]} : vector<8x512xf32> to vector<8x128xf32>
    %cst_78 = arith.constant 5.000000e-01 : f32
    %201 = vector.broadcast %cst_78 : f32 to vector<8x128xf32>
    %202 = arith.mulf %201, %200 : vector<8x128xf32>
    %203 = math.tanh %202 : vector<8x128xf32>
    %cst_79 = arith.constant 5.000000e-01 : f32
    %204 = vector.broadcast %cst_79 : f32 to vector<8x128xf32>
    %205 = arith.mulf %204, %203 : vector<8x128xf32>
    %cst_80 = arith.constant 5.000000e-01 : f32
    %206 = vector.broadcast %cst_80 : f32 to vector<8x128xf32>
    %207 = arith.addf %205, %206 : vector<8x128xf32>
    %208 = arith.mulf %197, %169 : vector<8x128xf32>
    %209 = arith.mulf %189, %199 : vector<8x128xf32>
    %210 = arith.addf %208, %209 : vector<8x128xf32>
    %211 = math.tanh %210 : vector<8x128xf32>
    %212 = arith.mulf %207, %211 : vector<8x128xf32>
    %213 = arith.index_cast %c4_i32 : i32 to index
    %c0_81 = arith.constant 0 : index
    %c0_82 = arith.constant 0 : index
    %214 = vector.load %arg12[%213, %c0_81, %c0_82] : memref<8x8x128xf32, #tpu.memory_space<vmem>>, vector<1x8x128xf32>
    %215 = vector.shape_cast %214 : vector<1x8x128xf32> to vector<8x128xf32>
    %216 = vector.shape_cast %212 : vector<8x128xf32> to vector<1x8x128xf32>
    tpu.vector_store %arg12[%213, %c0_81, %c0_82], %216 {strides = array<i32>} : memref<8x8x128xf32, #tpu.memory_space<vmem>>, vector<1x8x128xf32>,
    %217 = arith.truncf %212 : vector<8x128xf32> to vector<8x128xbf16>
    %c5_i32 = arith.constant 5 : i32
    %218 = arith.index_cast %c5_i32 : i32 to index
    %c0_83 = arith.constant 0 : index
    %c0_84 = arith.constant 0 : index
    %219 = vector.load %arg11[%218, %c0_83, %c0_84] : memref<8x8x512xf32, #tpu.memory_space<vmem>>, vector<1x8x512xf32>
    %220 = vector.shape_cast %219 : vector<1x8x512xf32> to vector<8x512xf32>
    %cst_85 = arith.constant dense<0.000000e+00> : vector<8x512xf32>
    %221 = tpu.matmul %217, %10, %cst_85 {dimension_numbers = #tpu.dot_dimension_numbers<[1], [0], [0], [1], [0, 0, 1, 1], [], []>} : vector<8x128xbf16>, vector<128x512xbf16>, vector<8x512xf32> -> vector<8x512xf32>
    %222 = arith.addf %220, %221 : vector<8x512xf32>
    %223 = vector.extract_strided_slice %222 {offsets = [0, 0], sizes = [8, 128], strides = [1, 1]} : vector<8x512xf32> to vector<8x128xf32>
    %cst_86 = arith.constant 5.000000e-01 : f32
    %224 = vector.broadcast %cst_86 : f32 to vector<8x128xf32>
    %225 = arith.mulf %224, %223 : vector<8x128xf32>
    %226 = math.tanh %225 : vector<8x128xf32>
    %cst_87 = arith.constant 5.000000e-01 : f32
    %227 = vector.broadcast %cst_87 : f32 to vector<8x128xf32>
    %228 = arith.mulf %227, %226 : vector<8x128xf32>
    %cst_88 = arith.constant 5.000000e-01 : f32
    %229 = vector.broadcast %cst_88 : f32 to vector<8x128xf32>
    %230 = arith.addf %228, %229 : vector<8x128xf32>
    %231 = vector.extract_strided_slice %222 {offsets = [0, 128], sizes = [8, 128], strides = [1, 1]} : vector<8x512xf32> to vector<8x128xf32>
    %cst_89 = arith.constant 5.000000e-01 : f32
    %232 = vector.broadcast %cst_89 : f32 to vector<8x128xf32>
    %233 = arith.mulf %232, %231 : vector<8x128xf32>
    %234 = math.tanh %233 : vector<8x128xf32>
    %cst_90 = arith.constant 5.000000e-01 : f32
    %235 = vector.broadcast %cst_90 : f32 to vector<8x128xf32>
    %236 = arith.mulf %235, %234 : vector<8x128xf32>
    %cst_91 = arith.constant 5.000000e-01 : f32
    %237 = vector.broadcast %cst_91 : f32 to vector<8x128xf32>
    %238 = arith.addf %236, %237 : vector<8x128xf32>
    %239 = vector.extract_strided_slice %222 {offsets = [0, 256], sizes = [8, 128], strides = [1, 1]} : vector<8x512xf32> to vector<8x128xf32>
    %240 = math.tanh %239 : vector<8x128xf32>
    %241 = vector.extract_strided_slice %222 {offsets = [0, 384], sizes = [8, 128], strides = [1, 1]} : vector<8x512xf32> to vector<8x128xf32>
    %cst_92 = arith.constant 5.000000e-01 : f32
    %242 = vector.broadcast %cst_92 : f32 to vector<8x128xf32>
    %243 = arith.mulf %242, %241 : vector<8x128xf32>
    %244 = math.tanh %243 : vector<8x128xf32>
    %cst_93 = arith.constant 5.000000e-01 : f32
    %245 = vector.broadcast %cst_93 : f32 to vector<8x128xf32>
    %246 = arith.mulf %245, %244 : vector<8x128xf32>
    %cst_94 = arith.constant 5.000000e-01 : f32
    %247 = vector.broadcast %cst_94 : f32 to vector<8x128xf32>
    %248 = arith.addf %246, %247 : vector<8x128xf32>
    %249 = arith.mulf %238, %210 : vector<8x128xf32>
    %250 = arith.mulf %230, %240 : vector<8x128xf32>
    %251 = arith.addf %249, %250 : vector<8x128xf32>
    %252 = math.tanh %251 : vector<8x128xf32>
    %253 = arith.mulf %248, %252 : vector<8x128xf32>
    %254 = arith.index_cast %c5_i32 : i32 to index
    %c0_95 = arith.constant 0 : index
    %c0_96 = arith.constant 0 : index
    %255 = vector.load %arg12[%254, %c0_95, %c0_96] : memref<8x8x128xf32, #tpu.memory_space<vmem>>, vector<1x8x128xf32>
    %256 = vector.shape_cast %255 : vector<1x8x128xf32> to vector<8x128xf32>
    %257 = vector.shape_cast %253 : vector<8x128xf32> to vector<1x8x128xf32>
    tpu.vector_store %arg12[%254, %c0_95, %c0_96], %257 {strides = array<i32>} : memref<8x8x128xf32, #tpu.memory_space<vmem>>, vector<1x8x128xf32>,
    %258 = arith.truncf %253 : vector<8x128xf32> to vector<8x128xbf16>
    %c6_i32 = arith.constant 6 : i32
    %259 = arith.index_cast %c6_i32 : i32 to index
    %c0_97 = arith.constant 0 : index
    %c0_98 = arith.constant 0 : index
    %260 = vector.load %arg11[%259, %c0_97, %c0_98] : memref<8x8x512xf32, #tpu.memory_space<vmem>>, vector<1x8x512xf32>
    %261 = vector.shape_cast %260 : vector<1x8x512xf32> to vector<8x512xf32>
    %cst_99 = arith.constant dense<0.000000e+00> : vector<8x512xf32>
    %262 = tpu.matmul %258, %10, %cst_99 {dimension_numbers = #tpu.dot_dimension_numbers<[1], [0], [0], [1], [0, 0, 1, 1], [], []>} : vector<8x128xbf16>, vector<128x512xbf16>, vector<8x512xf32> -> vector<8x512xf32>
    %263 = arith.addf %261, %262 : vector<8x512xf32>
    %264 = vector.extract_strided_slice %263 {offsets = [0, 0], sizes = [8, 128], strides = [1, 1]} : vector<8x512xf32> to vector<8x128xf32>
    %cst_100 = arith.constant 5.000000e-01 : f32
    %265 = vector.broadcast %cst_100 : f32 to vector<8x128xf32>
    %266 = arith.mulf %265, %264 : vector<8x128xf32>
    %267 = math.tanh %266 : vector<8x128xf32>
    %cst_101 = arith.constant 5.000000e-01 : f32
    %268 = vector.broadcast %cst_101 : f32 to vector<8x128xf32>
    %269 = arith.mulf %268, %267 : vector<8x128xf32>
    %cst_102 = arith.constant 5.000000e-01 : f32
    %270 = vector.broadcast %cst_102 : f32 to vector<8x128xf32>
    %271 = arith.addf %269, %270 : vector<8x128xf32>
    %272 = vector.extract_strided_slice %263 {offsets = [0, 128], sizes = [8, 128], strides = [1, 1]} : vector<8x512xf32> to vector<8x128xf32>
    %cst_103 = arith.constant 5.000000e-01 : f32
    %273 = vector.broadcast %cst_103 : f32 to vector<8x128xf32>
    %274 = arith.mulf %273, %272 : vector<8x128xf32>
    %275 = math.tanh %274 : vector<8x128xf32>
    %cst_104 = arith.constant 5.000000e-01 : f32
    %276 = vector.broadcast %cst_104 : f32 to vector<8x128xf32>
    %277 = arith.mulf %276, %275 : vector<8x128xf32>
    %cst_105 = arith.constant 5.000000e-01 : f32
    %278 = vector.broadcast %cst_105 : f32 to vector<8x128xf32>
    %279 = arith.addf %277, %278 : vector<8x128xf32>
    %280 = vector.extract_strided_slice %263 {offsets = [0, 256], sizes = [8, 128], strides = [1, 1]} : vector<8x512xf32> to vector<8x128xf32>
    %281 = math.tanh %280 : vector<8x128xf32>
    %282 = vector.extract_strided_slice %263 {offsets = [0, 384], sizes = [8, 128], strides = [1, 1]} : vector<8x512xf32> to vector<8x128xf32>
    %cst_106 = arith.constant 5.000000e-01 : f32
    %283 = vector.broadcast %cst_106 : f32 to vector<8x128xf32>
    %284 = arith.mulf %283, %282 : vector<8x128xf32>
    %285 = math.tanh %284 : vector<8x128xf32>
    %cst_107 = arith.constant 5.000000e-01 : f32
    %286 = vector.broadcast %cst_107 : f32 to vector<8x128xf32>
    %287 = arith.mulf %286, %285 : vector<8x128xf32>
    %cst_108 = arith.constant 5.000000e-01 : f32
    %288 = vector.broadcast %cst_108 : f32 to vector<8x128xf32>
    %289 = arith.addf %287, %288 : vector<8x128xf32>
    %290 = arith.mulf %279, %251 : vector<8x128xf32>
    %291 = arith.mulf %271, %281 : vector<8x128xf32>
    %292 = arith.addf %290, %291 : vector<8x128xf32>
    %293 = math.tanh %292 : vector<8x128xf32>
    %294 = arith.mulf %289, %293 : vector<8x128xf32>
    %295 = arith.index_cast %c6_i32 : i32 to index
    %c0_109 = arith.constant 0 : index
    %c0_110 = arith.constant 0 : index
    %296 = vector.load %arg12[%295, %c0_109, %c0_110] : memref<8x8x128xf32, #tpu.memory_space<vmem>>, vector<1x8x128xf32>
    %297 = vector.shape_cast %296 : vector<1x8x128xf32> to vector<8x128xf32>
    %298 = vector.shape_cast %294 : vector<8x128xf32> to vector<1x8x128xf32>
    tpu.vector_store %arg12[%295, %c0_109, %c0_110], %298 {strides = array<i32>} : memref<8x8x128xf32, #tpu.memory_space<vmem>>, vector<1x8x128xf32>,
    %299 = arith.truncf %294 : vector<8x128xf32> to vector<8x128xbf16>
    %c7_i32 = arith.constant 7 : i32
    %300 = arith.index_cast %c7_i32 : i32 to index
    %c0_111 = arith.constant 0 : index
    %c0_112 = arith.constant 0 : index
    %301 = vector.load %arg11[%300, %c0_111, %c0_112] : memref<8x8x512xf32, #tpu.memory_space<vmem>>, vector<1x8x512xf32>
    %302 = vector.shape_cast %301 : vector<1x8x512xf32> to vector<8x512xf32>
    %cst_113 = arith.constant dense<0.000000e+00> : vector<8x512xf32>
    %303 = tpu.matmul %299, %10, %cst_113 {dimension_numbers = #tpu.dot_dimension_numbers<[1], [0], [0], [1], [0, 0, 1, 1], [], []>} : vector<8x128xbf16>, vector<128x512xbf16>, vector<8x512xf32> -> vector<8x512xf32>
    %304 = arith.addf %302, %303 : vector<8x512xf32>
    %305 = vector.extract_strided_slice %304 {offsets = [0, 0], sizes = [8, 128], strides = [1, 1]} : vector<8x512xf32> to vector<8x128xf32>
    %cst_114 = arith.constant 5.000000e-01 : f32
    %306 = vector.broadcast %cst_114 : f32 to vector<8x128xf32>
    %307 = arith.mulf %306, %305 : vector<8x128xf32>
    %308 = math.tanh %307 : vector<8x128xf32>
    %cst_115 = arith.constant 5.000000e-01 : f32
    %309 = vector.broadcast %cst_115 : f32 to vector<8x128xf32>
    %310 = arith.mulf %309, %308 : vector<8x128xf32>
    %cst_116 = arith.constant 5.000000e-01 : f32
    %311 = vector.broadcast %cst_116 : f32 to vector<8x128xf32>
    %312 = arith.addf %310, %311 : vector<8x128xf32>
    %313 = vector.extract_strided_slice %304 {offsets = [0, 128], sizes = [8, 128], strides = [1, 1]} : vector<8x512xf32> to vector<8x128xf32>
    %cst_117 = arith.constant 5.000000e-01 : f32
    %314 = vector.broadcast %cst_117 : f32 to vector<8x128xf32>
    %315 = arith.mulf %314, %313 : vector<8x128xf32>
    %316 = math.tanh %315 : vector<8x128xf32>
    %cst_118 = arith.constant 5.000000e-01 : f32
    %317 = vector.broadcast %cst_118 : f32 to vector<8x128xf32>
    %318 = arith.mulf %317, %316 : vector<8x128xf32>
    %cst_119 = arith.constant 5.000000e-01 : f32
    %319 = vector.broadcast %cst_119 : f32 to vector<8x128xf32>
    %320 = arith.addf %318, %319 : vector<8x128xf32>
    %321 = vector.extract_strided_slice %304 {offsets = [0, 256], sizes = [8, 128], strides = [1, 1]} : vector<8x512xf32> to vector<8x128xf32>
    %322 = math.tanh %321 : vector<8x128xf32>
    %323 = vector.extract_strided_slice %304 {offsets = [0, 384], sizes = [8, 128], strides = [1, 1]} : vector<8x512xf32> to vector<8x128xf32>
    %cst_120 = arith.constant 5.000000e-01 : f32
    %324 = vector.broadcast %cst_120 : f32 to vector<8x128xf32>
    %325 = arith.mulf %324, %323 : vector<8x128xf32>
    %326 = math.tanh %325 : vector<8x128xf32>
    %cst_121 = arith.constant 5.000000e-01 : f32
    %327 = vector.broadcast %cst_121 : f32 to vector<8x128xf32>
    %328 = arith.mulf %327, %326 : vector<8x128xf32>
    %cst_122 = arith.constant 5.000000e-01 : f32
    %329 = vector.broadcast %cst_122 : f32 to vector<8x128xf32>
    %330 = arith.addf %328, %329 : vector<8x128xf32>
    %331 = arith.mulf %320, %292 : vector<8x128xf32>
    %332 = arith.mulf %312, %322 : vector<8x128xf32>
    %333 = arith.addf %331, %332 : vector<8x128xf32>
    %334 = math.tanh %333 : vector<8x128xf32>
    %335 = arith.mulf %330, %334 : vector<8x128xf32>
    %336 = arith.index_cast %c7_i32 : i32 to index
    %c0_123 = arith.constant 0 : index
    %c0_124 = arith.constant 0 : index
    %337 = vector.load %arg12[%336, %c0_123, %c0_124] : memref<8x8x128xf32, #tpu.memory_space<vmem>>, vector<1x8x128xf32>
    %338 = vector.shape_cast %337 : vector<1x8x128xf32> to vector<8x128xf32>
    %339 = vector.shape_cast %335 : vector<8x128xf32> to vector<1x8x128xf32>
    tpu.vector_store %arg12[%336, %c0_123, %c0_124], %339 {strides = array<i32>} : memref<8x8x128xf32, #tpu.memory_space<vmem>>, vector<1x8x128xf32>,
    %340 = arith.truncf %335 : vector<8x128xf32> to vector<8x128xbf16>
    %c8_i32 = arith.constant 8 : i32
    %c0_125 = arith.constant 0 : index
    %c0_126 = arith.constant 0 : index
    %c0_127 = arith.constant 0 : index
    %341 = vector.load %arg12[%c0_125, %c0_126, %c0_127] : memref<8x8x128xf32, #tpu.memory_space<vmem>>, vector<8x8x128xf32>
    %342 = vector.shape_cast %341 : vector<8x8x128xf32> to vector<64x128xf32>
    %343 = arith.truncf %342 : vector<64x128xf32> to vector<64x128xbf16>
    %c0_128 = arith.constant 0 : index
    %c0_129 = arith.constant 0 : index
    %344 = vector.load %arg5[%c0_128, %c0_129] : memref<128x512xbf16, #tpu.memory_space<vmem>>, vector<128x512xbf16>
    %cst_130 = arith.constant dense<0.000000e+00> : vector<64x512xf32>
    %345 = tpu.matmul %343, %344, %cst_130 {dimension_numbers = #tpu.dot_dimension_numbers<[1], [0], [0], [1], [0, 0, 1, 1], [], []>} : vector<64x128xbf16>, vector<128x512xbf16>, vector<64x512xf32> -> vector<64x512xf32>
    %c0_131 = arith.constant 0 : index
    %c0_132 = arith.constant 0 : index
    %346 = vector.load %arg7[%c0_131, %c0_132] : memref<1x512xf32, #tpu.memory_space<vmem>>, vector<1x512xf32>
    %347 = vector.broadcast %346 : vector<1x512xf32> to vector<64x512xf32>
    %348 = arith.addf %345, %347 : vector<64x512xf32>
    %349 = vector.shape_cast %348 : vector<64x512xf32> to vector<8x8x512xf32>
    %c0_133 = arith.constant 0 : index
    %c0_134 = arith.constant 0 : index
    %c0_135 = arith.constant 0 : index
    %350 = vector.load %arg11[%c0_133, %c0_134, %c0_135] : memref<8x8x512xf32, #tpu.memory_space<vmem>>, vector<8x8x512xf32>
    tpu.vector_store %arg11[%c0_133, %c0_134, %c0_135], %349 {strides = array<i32>} : memref<8x8x512xf32, #tpu.memory_space<vmem>>, vector<8x8x512xf32>,
    %c0_136 = arith.constant 0 : index
    %c0_137 = arith.constant 0 : index
    %351 = vector.load %arg6[%c0_136, %c0_137] : memref<128x512xbf16, #tpu.memory_space<vmem>>, vector<128x512xbf16>
    %cst_138 = arith.constant 0.000000e+00 : bf16
    %352 = vector.broadcast %cst_138 : bf16 to vector<8x128xbf16>
    %cst_139 = arith.constant 0.000000e+00 : f32
    %353 = vector.broadcast %cst_139 : f32 to vector<8x128xf32>
    %c0_i32_140 = arith.constant 0 : i32
    %354 = arith.index_cast %c0_i32_140 : i32 to index
    %c0_141 = arith.constant 0 : index
    %c0_142 = arith.constant 0 : index
    %355 = vector.load %arg11[%354, %c0_141, %c0_142] : memref<8x8x512xf32, #tpu.memory_space<vmem>>, vector<1x8x512xf32>
    %356 = vector.shape_cast %355 : vector<1x8x512xf32> to vector<8x512xf32>
    %cst_143 = arith.constant dense<0.000000e+00> : vector<8x512xf32>
    %357 = tpu.matmul %352, %351, %cst_143 {dimension_numbers = #tpu.dot_dimension_numbers<[1], [0], [0], [1], [0, 0, 1, 1], [], []>} : vector<8x128xbf16>, vector<128x512xbf16>, vector<8x512xf32> -> vector<8x512xf32>
    %358 = arith.addf %356, %357 : vector<8x512xf32>
    %359 = vector.extract_strided_slice %358 {offsets = [0, 0], sizes = [8, 128], strides = [1, 1]} : vector<8x512xf32> to vector<8x128xf32>
    %cst_144 = arith.constant 5.000000e-01 : f32
    %360 = vector.broadcast %cst_144 : f32 to vector<8x128xf32>
    %361 = arith.mulf %360, %359 : vector<8x128xf32>
    %362 = math.tanh %361 : vector<8x128xf32>
    %cst_145 = arith.constant 5.000000e-01 : f32
    %363 = vector.broadcast %cst_145 : f32 to vector<8x128xf32>
    %364 = arith.mulf %363, %362 : vector<8x128xf32>
    %cst_146 = arith.constant 5.000000e-01 : f32
    %365 = vector.broadcast %cst_146 : f32 to vector<8x128xf32>
    %366 = arith.addf %364, %365 : vector<8x128xf32>
    %367 = vector.extract_strided_slice %358 {offsets = [0, 128], sizes = [8, 128], strides = [1, 1]} : vector<8x512xf32> to vector<8x128xf32>
    %cst_147 = arith.constant 5.000000e-01 : f32
    %368 = vector.broadcast %cst_147 : f32 to vector<8x128xf32>
    %369 = arith.mulf %368, %367 : vector<8x128xf32>
    %370 = math.tanh %369 : vector<8x128xf32>
    %cst_148 = arith.constant 5.000000e-01 : f32
    %371 = vector.broadcast %cst_148 : f32 to vector<8x128xf32>
    %372 = arith.mulf %371, %370 : vector<8x128xf32>
    %cst_149 = arith.constant 5.000000e-01 : f32
    %373 = vector.broadcast %cst_149 : f32 to vector<8x128xf32>
    %374 = arith.addf %372, %373 : vector<8x128xf32>
    %375 = vector.extract_strided_slice %358 {offsets = [0, 256], sizes = [8, 128], strides = [1, 1]} : vector<8x512xf32> to vector<8x128xf32>
    %376 = math.tanh %375 : vector<8x128xf32>
    %377 = vector.extract_strided_slice %358 {offsets = [0, 384], sizes = [8, 128], strides = [1, 1]} : vector<8x512xf32> to vector<8x128xf32>
    %cst_150 = arith.constant 5.000000e-01 : f32
    %378 = vector.broadcast %cst_150 : f32 to vector<8x128xf32>
    %379 = arith.mulf %378, %377 : vector<8x128xf32>
    %380 = math.tanh %379 : vector<8x128xf32>
    %cst_151 = arith.constant 5.000000e-01 : f32
    %381 = vector.broadcast %cst_151 : f32 to vector<8x128xf32>
    %382 = arith.mulf %381, %380 : vector<8x128xf32>
    %cst_152 = arith.constant 5.000000e-01 : f32
    %383 = vector.broadcast %cst_152 : f32 to vector<8x128xf32>
    %384 = arith.addf %382, %383 : vector<8x128xf32>
    %385 = arith.mulf %374, %353 : vector<8x128xf32>
    %386 = arith.mulf %366, %376 : vector<8x128xf32>
    %387 = arith.addf %385, %386 : vector<8x128xf32>
    %388 = math.tanh %387 : vector<8x128xf32>
    %389 = arith.mulf %384, %388 : vector<8x128xf32>
    %390 = arith.truncf %389 : vector<8x128xf32> to vector<8x128xbf16>
    %c1_i32_153 = arith.constant 1 : i32
    %391 = arith.index_cast %c1_i32_153 : i32 to index
    %c0_154 = arith.constant 0 : index
    %c0_155 = arith.constant 0 : index
    %392 = vector.load %arg11[%391, %c0_154, %c0_155] : memref<8x8x512xf32, #tpu.memory_space<vmem>>, vector<1x8x512xf32>
    %393 = vector.shape_cast %392 : vector<1x8x512xf32> to vector<8x512xf32>
    %cst_156 = arith.constant dense<0.000000e+00> : vector<8x512xf32>
    %394 = tpu.matmul %390, %351, %cst_156 {dimension_numbers = #tpu.dot_dimension_numbers<[1], [0], [0], [1], [0, 0, 1, 1], [], []>} : vector<8x128xbf16>, vector<128x512xbf16>, vector<8x512xf32> -> vector<8x512xf32>
    %395 = arith.addf %393, %394 : vector<8x512xf32>
    %396 = vector.extract_strided_slice %395 {offsets = [0, 0], sizes = [8, 128], strides = [1, 1]} : vector<8x512xf32> to vector<8x128xf32>
    %cst_157 = arith.constant 5.000000e-01 : f32
    %397 = vector.broadcast %cst_157 : f32 to vector<8x128xf32>
    %398 = arith.mulf %397, %396 : vector<8x128xf32>
    %399 = math.tanh %398 : vector<8x128xf32>
    %cst_158 = arith.constant 5.000000e-01 : f32
    %400 = vector.broadcast %cst_158 : f32 to vector<8x128xf32>
    %401 = arith.mulf %400, %399 : vector<8x128xf32>
    %cst_159 = arith.constant 5.000000e-01 : f32
    %402 = vector.broadcast %cst_159 : f32 to vector<8x128xf32>
    %403 = arith.addf %401, %402 : vector<8x128xf32>
    %404 = vector.extract_strided_slice %395 {offsets = [0, 128], sizes = [8, 128], strides = [1, 1]} : vector<8x512xf32> to vector<8x128xf32>
    %cst_160 = arith.constant 5.000000e-01 : f32
    %405 = vector.broadcast %cst_160 : f32 to vector<8x128xf32>
    %406 = arith.mulf %405, %404 : vector<8x128xf32>
    %407 = math.tanh %406 : vector<8x128xf32>
    %cst_161 = arith.constant 5.000000e-01 : f32
    %408 = vector.broadcast %cst_161 : f32 to vector<8x128xf32>
    %409 = arith.mulf %408, %407 : vector<8x128xf32>
    %cst_162 = arith.constant 5.000000e-01 : f32
    %410 = vector.broadcast %cst_162 : f32 to vector<8x128xf32>
    %411 = arith.addf %409, %410 : vector<8x128xf32>
    %412 = vector.extract_strided_slice %395 {offsets = [0, 256], sizes = [8, 128], strides = [1, 1]} : vector<8x512xf32> to vector<8x128xf32>
    %413 = math.tanh %412 : vector<8x128xf32>
    %414 = vector.extract_strided_slice %395 {offsets = [0, 384], sizes = [8, 128], strides = [1, 1]} : vector<8x512xf32> to vector<8x128xf32>
    %cst_163 = arith.constant 5.000000e-01 : f32
    %415 = vector.broadcast %cst_163 : f32 to vector<8x128xf32>
    %416 = arith.mulf %415, %414 : vector<8x128xf32>
    %417 = math.tanh %416 : vector<8x128xf32>
    %cst_164 = arith.constant 5.000000e-01 : f32
    %418 = vector.broadcast %cst_164 : f32 to vector<8x128xf32>
    %419 = arith.mulf %418, %417 : vector<8x128xf32>
    %cst_165 = arith.constant 5.000000e-01 : f32
    %420 = vector.broadcast %cst_165 : f32 to vector<8x128xf32>
    %421 = arith.addf %419, %420 : vector<8x128xf32>
    %422 = arith.mulf %411, %387 : vector<8x128xf32>
    %423 = arith.mulf %403, %413 : vector<8x128xf32>
    %424 = arith.addf %422, %423 : vector<8x128xf32>
    %425 = math.tanh %424 : vector<8x128xf32>
    %426 = arith.mulf %421, %425 : vector<8x128xf32>
    %427 = arith.truncf %426 : vector<8x128xf32> to vector<8x128xbf16>
    %c2_i32_166 = arith.constant 2 : i32
    %428 = arith.index_cast %c2_i32_166 : i32 to index
    %c0_167 = arith.constant 0 : index
    %c0_168 = arith.constant 0 : index
    %429 = vector.load %arg11[%428, %c0_167, %c0_168] : memref<8x8x512xf32, #tpu.memory_space<vmem>>, vector<1x8x512xf32>
    %430 = vector.shape_cast %429 : vector<1x8x512xf32> to vector<8x512xf32>
    %cst_169 = arith.constant dense<0.000000e+00> : vector<8x512xf32>
    %431 = tpu.matmul %427, %351, %cst_169 {dimension_numbers = #tpu.dot_dimension_numbers<[1], [0], [0], [1], [0, 0, 1, 1], [], []>} : vector<8x128xbf16>, vector<128x512xbf16>, vector<8x512xf32> -> vector<8x512xf32>
    %432 = arith.addf %430, %431 : vector<8x512xf32>
    %433 = vector.extract_strided_slice %432 {offsets = [0, 0], sizes = [8, 128], strides = [1, 1]} : vector<8x512xf32> to vector<8x128xf32>
    %cst_170 = arith.constant 5.000000e-01 : f32
    %434 = vector.broadcast %cst_170 : f32 to vector<8x128xf32>
    %435 = arith.mulf %434, %433 : vector<8x128xf32>
    %436 = math.tanh %435 : vector<8x128xf32>
    %cst_171 = arith.constant 5.000000e-01 : f32
    %437 = vector.broadcast %cst_171 : f32 to vector<8x128xf32>
    %438 = arith.mulf %437, %436 : vector<8x128xf32>
    %cst_172 = arith.constant 5.000000e-01 : f32
    %439 = vector.broadcast %cst_172 : f32 to vector<8x128xf32>
    %440 = arith.addf %438, %439 : vector<8x128xf32>
    %441 = vector.extract_strided_slice %432 {offsets = [0, 128], sizes = [8, 128], strides = [1, 1]} : vector<8x512xf32> to vector<8x128xf32>
    %cst_173 = arith.constant 5.000000e-01 : f32
    %442 = vector.broadcast %cst_173 : f32 to vector<8x128xf32>
    %443 = arith.mulf %442, %441 : vector<8x128xf32>
    %444 = math.tanh %443 : vector<8x128xf32>
    %cst_174 = arith.constant 5.000000e-01 : f32
    %445 = vector.broadcast %cst_174 : f32 to vector<8x128xf32>
    %446 = arith.mulf %445, %444 : vector<8x128xf32>
    %cst_175 = arith.constant 5.000000e-01 : f32
    %447 = vector.broadcast %cst_175 : f32 to vector<8x128xf32>
    %448 = arith.addf %446, %447 : vector<8x128xf32>
    %449 = vector.extract_strided_slice %432 {offsets = [0, 256], sizes = [8, 128], strides = [1, 1]} : vector<8x512xf32> to vector<8x128xf32>
    %450 = math.tanh %449 : vector<8x128xf32>
    %451 = vector.extract_strided_slice %432 {offsets = [0, 384], sizes = [8, 128], strides = [1, 1]} : vector<8x512xf32> to vector<8x128xf32>
    %cst_176 = arith.constant 5.000000e-01 : f32
    %452 = vector.broadcast %cst_176 : f32 to vector<8x128xf32>
    %453 = arith.mulf %452, %451 : vector<8x128xf32>
    %454 = math.tanh %453 : vector<8x128xf32>
    %cst_177 = arith.constant 5.000000e-01 : f32
    %455 = vector.broadcast %cst_177 : f32 to vector<8x128xf32>
    %456 = arith.mulf %455, %454 : vector<8x128xf32>
    %cst_178 = arith.constant 5.000000e-01 : f32
    %457 = vector.broadcast %cst_178 : f32 to vector<8x128xf32>
    %458 = arith.addf %456, %457 : vector<8x128xf32>
    %459 = arith.mulf %448, %424 : vector<8x128xf32>
    %460 = arith.mulf %440, %450 : vector<8x128xf32>
    %461 = arith.addf %459, %460 : vector<8x128xf32>
    %462 = math.tanh %461 : vector<8x128xf32>
    %463 = arith.mulf %458, %462 : vector<8x128xf32>
    %464 = arith.truncf %463 : vector<8x128xf32> to vector<8x128xbf16>
    %c3_i32_179 = arith.constant 3 : i32
    %465 = arith.index_cast %c3_i32_179 : i32 to index
    %c0_180 = arith.constant 0 : index
    %c0_181 = arith.constant 0 : index
    %466 = vector.load %arg11[%465, %c0_180, %c0_181] : memref<8x8x512xf32, #tpu.memory_space<vmem>>, vector<1x8x512xf32>
    %467 = vector.shape_cast %466 : vector<1x8x512xf32> to vector<8x512xf32>
    %cst_182 = arith.constant dense<0.000000e+00> : vector<8x512xf32>
    %468 = tpu.matmul %464, %351, %cst_182 {dimension_numbers = #tpu.dot_dimension_numbers<[1], [0], [0], [1], [0, 0, 1, 1], [], []>} : vector<8x128xbf16>, vector<128x512xbf16>, vector<8x512xf32> -> vector<8x512xf32>
    %469 = arith.addf %467, %468 : vector<8x512xf32>
    %470 = vector.extract_strided_slice %469 {offsets = [0, 0], sizes = [8, 128], strides = [1, 1]} : vector<8x512xf32> to vector<8x128xf32>
    %cst_183 = arith.constant 5.000000e-01 : f32
    %471 = vector.broadcast %cst_183 : f32 to vector<8x128xf32>
    %472 = arith.mulf %471, %470 : vector<8x128xf32>
    %473 = math.tanh %472 : vector<8x128xf32>
    %cst_184 = arith.constant 5.000000e-01 : f32
    %474 = vector.broadcast %cst_184 : f32 to vector<8x128xf32>
    %475 = arith.mulf %474, %473 : vector<8x128xf32>
    %cst_185 = arith.constant 5.000000e-01 : f32
    %476 = vector.broadcast %cst_185 : f32 to vector<8x128xf32>
    %477 = arith.addf %475, %476 : vector<8x128xf32>
    %478 = vector.extract_strided_slice %469 {offsets = [0, 128], sizes = [8, 128], strides = [1, 1]} : vector<8x512xf32> to vector<8x128xf32>
    %cst_186 = arith.constant 5.000000e-01 : f32
    %479 = vector.broadcast %cst_186 : f32 to vector<8x128xf32>
    %480 = arith.mulf %479, %478 : vector<8x128xf32>
    %481 = math.tanh %480 : vector<8x128xf32>
    %cst_187 = arith.constant 5.000000e-01 : f32
    %482 = vector.broadcast %cst_187 : f32 to vector<8x128xf32>
    %483 = arith.mulf %482, %481 : vector<8x128xf32>
    %cst_188 = arith.constant 5.000000e-01 : f32
    %484 = vector.broadcast %cst_188 : f32 to vector<8x128xf32>
    %485 = arith.addf %483, %484 : vector<8x128xf32>
    %486 = vector.extract_strided_slice %469 {offsets = [0, 256], sizes = [8, 128], strides = [1, 1]} : vector<8x512xf32> to vector<8x128xf32>
    %487 = math.tanh %486 : vector<8x128xf32>
    %488 = vector.extract_strided_slice %469 {offsets = [0, 384], sizes = [8, 128], strides = [1, 1]} : vector<8x512xf32> to vector<8x128xf32>
    %cst_189 = arith.constant 5.000000e-01 : f32
    %489 = vector.broadcast %cst_189 : f32 to vector<8x128xf32>
    %490 = arith.mulf %489, %488 : vector<8x128xf32>
    %491 = math.tanh %490 : vector<8x128xf32>
    %cst_190 = arith.constant 5.000000e-01 : f32
    %492 = vector.broadcast %cst_190 : f32 to vector<8x128xf32>
    %493 = arith.mulf %492, %491 : vector<8x128xf32>
    %cst_191 = arith.constant 5.000000e-01 : f32
    %494 = vector.broadcast %cst_191 : f32 to vector<8x128xf32>
    %495 = arith.addf %493, %494 : vector<8x128xf32>
    %496 = arith.mulf %485, %461 : vector<8x128xf32>
    %497 = arith.mulf %477, %487 : vector<8x128xf32>
    %498 = arith.addf %496, %497 : vector<8x128xf32>
    %499 = math.tanh %498 : vector<8x128xf32>
    %500 = arith.mulf %495, %499 : vector<8x128xf32>
    %501 = arith.truncf %500 : vector<8x128xf32> to vector<8x128xbf16>
    %c4_i32_192 = arith.constant 4 : i32
    %502 = arith.index_cast %c4_i32_192 : i32 to index
    %c0_193 = arith.constant 0 : index
    %c0_194 = arith.constant 0 : index
    %503 = vector.load %arg11[%502, %c0_193, %c0_194] : memref<8x8x512xf32, #tpu.memory_space<vmem>>, vector<1x8x512xf32>
    %504 = vector.shape_cast %503 : vector<1x8x512xf32> to vector<8x512xf32>
    %cst_195 = arith.constant dense<0.000000e+00> : vector<8x512xf32>
    %505 = tpu.matmul %501, %351, %cst_195 {dimension_numbers = #tpu.dot_dimension_numbers<[1], [0], [0], [1], [0, 0, 1, 1], [], []>} : vector<8x128xbf16>, vector<128x512xbf16>, vector<8x512xf32> -> vector<8x512xf32>
    %506 = arith.addf %504, %505 : vector<8x512xf32>
    %507 = vector.extract_strided_slice %506 {offsets = [0, 0], sizes = [8, 128], strides = [1, 1]} : vector<8x512xf32> to vector<8x128xf32>
    %cst_196 = arith.constant 5.000000e-01 : f32
    %508 = vector.broadcast %cst_196 : f32 to vector<8x128xf32>
    %509 = arith.mulf %508, %507 : vector<8x128xf32>
    %510 = math.tanh %509 : vector<8x128xf32>
    %cst_197 = arith.constant 5.000000e-01 : f32
    %511 = vector.broadcast %cst_197 : f32 to vector<8x128xf32>
    %512 = arith.mulf %511, %510 : vector<8x128xf32>
    %cst_198 = arith.constant 5.000000e-01 : f32
    %513 = vector.broadcast %cst_198 : f32 to vector<8x128xf32>
    %514 = arith.addf %512, %513 : vector<8x128xf32>
    %515 = vector.extract_strided_slice %506 {offsets = [0, 128], sizes = [8, 128], strides = [1, 1]} : vector<8x512xf32> to vector<8x128xf32>
    %cst_199 = arith.constant 5.000000e-01 : f32
    %516 = vector.broadcast %cst_199 : f32 to vector<8x128xf32>
    %517 = arith.mulf %516, %515 : vector<8x128xf32>
    %518 = math.tanh %517 : vector<8x128xf32>
    %cst_200 = arith.constant 5.000000e-01 : f32
    %519 = vector.broadcast %cst_200 : f32 to vector<8x128xf32>
    %520 = arith.mulf %519, %518 : vector<8x128xf32>
    %cst_201 = arith.constant 5.000000e-01 : f32
    %521 = vector.broadcast %cst_201 : f32 to vector<8x128xf32>
    %522 = arith.addf %520, %521 : vector<8x128xf32>
    %523 = vector.extract_strided_slice %506 {offsets = [0, 256], sizes = [8, 128], strides = [1, 1]} : vector<8x512xf32> to vector<8x128xf32>
    %524 = math.tanh %523 : vector<8x128xf32>
    %525 = vector.extract_strided_slice %506 {offsets = [0, 384], sizes = [8, 128], strides = [1, 1]} : vector<8x512xf32> to vector<8x128xf32>
    %cst_202 = arith.constant 5.000000e-01 : f32
    %526 = vector.broadcast %cst_202 : f32 to vector<8x128xf32>
    %527 = arith.mulf %526, %525 : vector<8x128xf32>
    %528 = math.tanh %527 : vector<8x128xf32>
    %cst_203 = arith.constant 5.000000e-01 : f32
    %529 = vector.broadcast %cst_203 : f32 to vector<8x128xf32>
    %530 = arith.mulf %529, %528 : vector<8x128xf32>
    %cst_204 = arith.constant 5.000000e-01 : f32
    %531 = vector.broadcast %cst_204 : f32 to vector<8x128xf32>
    %532 = arith.addf %530, %531 : vector<8x128xf32>
    %533 = arith.mulf %522, %498 : vector<8x128xf32>
    %534 = arith.mulf %514, %524 : vector<8x128xf32>
    %535 = arith.addf %533, %534 : vector<8x128xf32>
    %536 = math.tanh %535 : vector<8x128xf32>
    %537 = arith.mulf %532, %536 : vector<8x128xf32>
    %538 = arith.truncf %537 : vector<8x128xf32> to vector<8x128xbf16>
    %c5_i32_205 = arith.constant 5 : i32
    %539 = arith.index_cast %c5_i32_205 : i32 to index
    %c0_206 = arith.constant 0 : index
    %c0_207 = arith.constant 0 : index
    %540 = vector.load %arg11[%539, %c0_206, %c0_207] : memref<8x8x512xf32, #tpu.memory_space<vmem>>, vector<1x8x512xf32>
    %541 = vector.shape_cast %540 : vector<1x8x512xf32> to vector<8x512xf32>
    %cst_208 = arith.constant dense<0.000000e+00> : vector<8x512xf32>
    %542 = tpu.matmul %538, %351, %cst_208 {dimension_numbers = #tpu.dot_dimension_numbers<[1], [0], [0], [1], [0, 0, 1, 1], [], []>} : vector<8x128xbf16>, vector<128x512xbf16>, vector<8x512xf32> -> vector<8x512xf32>
    %543 = arith.addf %541, %542 : vector<8x512xf32>
    %544 = vector.extract_strided_slice %543 {offsets = [0, 0], sizes = [8, 128], strides = [1, 1]} : vector<8x512xf32> to vector<8x128xf32>
    %cst_209 = arith.constant 5.000000e-01 : f32
    %545 = vector.broadcast %cst_209 : f32 to vector<8x128xf32>
    %546 = arith.mulf %545, %544 : vector<8x128xf32>
    %547 = math.tanh %546 : vector<8x128xf32>
    %cst_210 = arith.constant 5.000000e-01 : f32
    %548 = vector.broadcast %cst_210 : f32 to vector<8x128xf32>
    %549 = arith.mulf %548, %547 : vector<8x128xf32>
    %cst_211 = arith.constant 5.000000e-01 : f32
    %550 = vector.broadcast %cst_211 : f32 to vector<8x128xf32>
    %551 = arith.addf %549, %550 : vector<8x128xf32>
    %552 = vector.extract_strided_slice %543 {offsets = [0, 128], sizes = [8, 128], strides = [1, 1]} : vector<8x512xf32> to vector<8x128xf32>
    %cst_212 = arith.constant 5.000000e-01 : f32
    %553 = vector.broadcast %cst_212 : f32 to vector<8x128xf32>
    %554 = arith.mulf %553, %552 : vector<8x128xf32>
    %555 = math.tanh %554 : vector<8x128xf32>
    %cst_213 = arith.constant 5.000000e-01 : f32
    %556 = vector.broadcast %cst_213 : f32 to vector<8x128xf32>
    %557 = arith.mulf %556, %555 : vector<8x128xf32>
    %cst_214 = arith.constant 5.000000e-01 : f32
    %558 = vector.broadcast %cst_214 : f32 to vector<8x128xf32>
    %559 = arith.addf %557, %558 : vector<8x128xf32>
    %560 = vector.extract_strided_slice %543 {offsets = [0, 256], sizes = [8, 128], strides = [1, 1]} : vector<8x512xf32> to vector<8x128xf32>
    %561 = math.tanh %560 : vector<8x128xf32>
    %562 = vector.extract_strided_slice %543 {offsets = [0, 384], sizes = [8, 128], strides = [1, 1]} : vector<8x512xf32> to vector<8x128xf32>
    %cst_215 = arith.constant 5.000000e-01 : f32
    %563 = vector.broadcast %cst_215 : f32 to vector<8x128xf32>
    %564 = arith.mulf %563, %562 : vector<8x128xf32>
    %565 = math.tanh %564 : vector<8x128xf32>
    %cst_216 = arith.constant 5.000000e-01 : f32
    %566 = vector.broadcast %cst_216 : f32 to vector<8x128xf32>
    %567 = arith.mulf %566, %565 : vector<8x128xf32>
    %cst_217 = arith.constant 5.000000e-01 : f32
    %568 = vector.broadcast %cst_217 : f32 to vector<8x128xf32>
    %569 = arith.addf %567, %568 : vector<8x128xf32>
    %570 = arith.mulf %559, %535 : vector<8x128xf32>
    %571 = arith.mulf %551, %561 : vector<8x128xf32>
    %572 = arith.addf %570, %571 : vector<8x128xf32>
    %573 = math.tanh %572 : vector<8x128xf32>
    %574 = arith.mulf %569, %573 : vector<8x128xf32>
    %575 = arith.truncf %574 : vector<8x128xf32> to vector<8x128xbf16>
    %c6_i32_218 = arith.constant 6 : i32
    %576 = arith.index_cast %c6_i32_218 : i32 to index
    %c0_219 = arith.constant 0 : index
    %c0_220 = arith.constant 0 : index
    %577 = vector.load %arg11[%576, %c0_219, %c0_220] : memref<8x8x512xf32, #tpu.memory_space<vmem>>, vector<1x8x512xf32>
    %578 = vector.shape_cast %577 : vector<1x8x512xf32> to vector<8x512xf32>
    %cst_221 = arith.constant dense<0.000000e+00> : vector<8x512xf32>
    %579 = tpu.matmul %575, %351, %cst_221 {dimension_numbers = #tpu.dot_dimension_numbers<[1], [0], [0], [1], [0, 0, 1, 1], [], []>} : vector<8x128xbf16>, vector<128x512xbf16>, vector<8x512xf32> -> vector<8x512xf32>
    %580 = arith.addf %578, %579 : vector<8x512xf32>
    %581 = vector.extract_strided_slice %580 {offsets = [0, 0], sizes = [8, 128], strides = [1, 1]} : vector<8x512xf32> to vector<8x128xf32>
    %cst_222 = arith.constant 5.000000e-01 : f32
    %582 = vector.broadcast %cst_222 : f32 to vector<8x128xf32>
    %583 = arith.mulf %582, %581 : vector<8x128xf32>
    %584 = math.tanh %583 : vector<8x128xf32>
    %cst_223 = arith.constant 5.000000e-01 : f32
    %585 = vector.broadcast %cst_223 : f32 to vector<8x128xf32>
    %586 = arith.mulf %585, %584 : vector<8x128xf32>
    %cst_224 = arith.constant 5.000000e-01 : f32
    %587 = vector.broadcast %cst_224 : f32 to vector<8x128xf32>
    %588 = arith.addf %586, %587 : vector<8x128xf32>
    %589 = vector.extract_strided_slice %580 {offsets = [0, 128], sizes = [8, 128], strides = [1, 1]} : vector<8x512xf32> to vector<8x128xf32>
    %cst_225 = arith.constant 5.000000e-01 : f32
    %590 = vector.broadcast %cst_225 : f32 to vector<8x128xf32>
    %591 = arith.mulf %590, %589 : vector<8x128xf32>
    %592 = math.tanh %591 : vector<8x128xf32>
    %cst_226 = arith.constant 5.000000e-01 : f32
    %593 = vector.broadcast %cst_226 : f32 to vector<8x128xf32>
    %594 = arith.mulf %593, %592 : vector<8x128xf32>
    %cst_227 = arith.constant 5.000000e-01 : f32
    %595 = vector.broadcast %cst_227 : f32 to vector<8x128xf32>
    %596 = arith.addf %594, %595 : vector<8x128xf32>
    %597 = vector.extract_strided_slice %580 {offsets = [0, 256], sizes = [8, 128], strides = [1, 1]} : vector<8x512xf32> to vector<8x128xf32>
    %598 = math.tanh %597 : vector<8x128xf32>
    %599 = vector.extract_strided_slice %580 {offsets = [0, 384], sizes = [8, 128], strides = [1, 1]} : vector<8x512xf32> to vector<8x128xf32>
    %cst_228 = arith.constant 5.000000e-01 : f32
    %600 = vector.broadcast %cst_228 : f32 to vector<8x128xf32>
    %601 = arith.mulf %600, %599 : vector<8x128xf32>
    %602 = math.tanh %601 : vector<8x128xf32>
    %cst_229 = arith.constant 5.000000e-01 : f32
    %603 = vector.broadcast %cst_229 : f32 to vector<8x128xf32>
    %604 = arith.mulf %603, %602 : vector<8x128xf32>
    %cst_230 = arith.constant 5.000000e-01 : f32
    %605 = vector.broadcast %cst_230 : f32 to vector<8x128xf32>
    %606 = arith.addf %604, %605 : vector<8x128xf32>
    %607 = arith.mulf %596, %572 : vector<8x128xf32>
    %608 = arith.mulf %588, %598 : vector<8x128xf32>
    %609 = arith.addf %607, %608 : vector<8x128xf32>
    %610 = math.tanh %609 : vector<8x128xf32>
    %611 = arith.mulf %606, %610 : vector<8x128xf32>
    %612 = arith.truncf %611 : vector<8x128xf32> to vector<8x128xbf16>
    %c7_i32_231 = arith.constant 7 : i32
    %613 = arith.index_cast %c7_i32_231 : i32 to index
    %c0_232 = arith.constant 0 : index
    %c0_233 = arith.constant 0 : index
    %614 = vector.load %arg11[%613, %c0_232, %c0_233] : memref<8x8x512xf32, #tpu.memory_space<vmem>>, vector<1x8x512xf32>
    %615 = vector.shape_cast %614 : vector<1x8x512xf32> to vector<8x512xf32>
    %cst_234 = arith.constant dense<0.000000e+00> : vector<8x512xf32>
    %616 = tpu.matmul %612, %351, %cst_234 {dimension_numbers = #tpu.dot_dimension_numbers<[1], [0], [0], [1], [0, 0, 1, 1], [], []>} : vector<8x128xbf16>, vector<128x512xbf16>, vector<8x512xf32> -> vector<8x512xf32>
    %617 = arith.addf %615, %616 : vector<8x512xf32>
    %618 = vector.extract_strided_slice %617 {offsets = [0, 0], sizes = [8, 128], strides = [1, 1]} : vector<8x512xf32> to vector<8x128xf32>
    %cst_235 = arith.constant 5.000000e-01 : f32
    %619 = vector.broadcast %cst_235 : f32 to vector<8x128xf32>
    %620 = arith.mulf %619, %618 : vector<8x128xf32>
    %621 = math.tanh %620 : vector<8x128xf32>
    %cst_236 = arith.constant 5.000000e-01 : f32
    %622 = vector.broadcast %cst_236 : f32 to vector<8x128xf32>
    %623 = arith.mulf %622, %621 : vector<8x128xf32>
    %cst_237 = arith.constant 5.000000e-01 : f32
    %624 = vector.broadcast %cst_237 : f32 to vector<8x128xf32>
    %625 = arith.addf %623, %624 : vector<8x128xf32>
    %626 = vector.extract_strided_slice %617 {offsets = [0, 128], sizes = [8, 128], strides = [1, 1]} : vector<8x512xf32> to vector<8x128xf32>
    %cst_238 = arith.constant 5.000000e-01 : f32
    %627 = vector.broadcast %cst_238 : f32 to vector<8x128xf32>
    %628 = arith.mulf %627, %626 : vector<8x128xf32>
    %629 = math.tanh %628 : vector<8x128xf32>
    %cst_239 = arith.constant 5.000000e-01 : f32
    %630 = vector.broadcast %cst_239 : f32 to vector<8x128xf32>
    %631 = arith.mulf %630, %629 : vector<8x128xf32>
    %cst_240 = arith.constant 5.000000e-01 : f32
    %632 = vector.broadcast %cst_240 : f32 to vector<8x128xf32>
    %633 = arith.addf %631, %632 : vector<8x128xf32>
    %634 = vector.extract_strided_slice %617 {offsets = [0, 256], sizes = [8, 128], strides = [1, 1]} : vector<8x512xf32> to vector<8x128xf32>
    %635 = math.tanh %634 : vector<8x128xf32>
    %636 = vector.extract_strided_slice %617 {offsets = [0, 384], sizes = [8, 128], strides = [1, 1]} : vector<8x512xf32> to vector<8x128xf32>
    %cst_241 = arith.constant 5.000000e-01 : f32
    %637 = vector.broadcast %cst_241 : f32 to vector<8x128xf32>
    %638 = arith.mulf %637, %636 : vector<8x128xf32>
    %639 = math.tanh %638 : vector<8x128xf32>
    %cst_242 = arith.constant 5.000000e-01 : f32
    %640 = vector.broadcast %cst_242 : f32 to vector<8x128xf32>
    %641 = arith.mulf %640, %639 : vector<8x128xf32>
    %cst_243 = arith.constant 5.000000e-01 : f32
    %642 = vector.broadcast %cst_243 : f32 to vector<8x128xf32>
    %643 = arith.addf %641, %642 : vector<8x128xf32>
    %644 = arith.mulf %633, %609 : vector<8x128xf32>
    %645 = arith.mulf %625, %635 : vector<8x128xf32>
    %646 = arith.addf %644, %645 : vector<8x128xf32>
    %647 = math.tanh %646 : vector<8x128xf32>
    %648 = arith.mulf %643, %647 : vector<8x128xf32>
    %649 = arith.truncf %648 : vector<8x128xf32> to vector<8x128xbf16>
    %c8_i32_244 = arith.constant 8 : i32
    %c0_245 = arith.constant 0 : index
    %c0_246 = arith.constant 0 : index
    %650 = vector.load %arg8[%c0_245, %c0_246] : memref<128x128xbf16, #tpu.memory_space<vmem>>, vector<128x128xbf16>
    %cst_247 = arith.constant dense<0.000000e+00> : vector<8x128xf32>
    %651 = tpu.matmul %649, %650, %cst_247 {dimension_numbers = #tpu.dot_dimension_numbers<[1], [0], [0], [1], [0, 0, 1, 1], [], []>} : vector<8x128xbf16>, vector<128x128xbf16>, vector<8x128xf32> -> vector<8x128xf32>
    %c0_248 = arith.constant 0 : index
    %c0_249 = arith.constant 0 : index
    %652 = vector.load %arg9[%c0_248, %c0_249] : memref<1x128xf32, #tpu.memory_space<vmem>>, vector<1x128xf32>
    %653 = vector.broadcast %652 : vector<1x128xf32> to vector<8x128xf32>
    %654 = arith.addf %651, %653 : vector<8x128xf32>
    %c0_250 = arith.constant 0 : index
    %c0_251 = arith.constant 0 : index
    %655 = vector.load %arg10[%c0_250, %c0_251] : memref<8x128xf32, #tpu.memory_space<vmem>>, vector<8x128xf32>
    tpu.vector_store %arg10[%c0_250, %c0_251], %654 {strides = array<i32>} : memref<8x128xf32, #tpu.memory_space<vmem>>, vector<8x128xf32>,
    return
  }
  func.func @transform_0(%arg0: i32) -> (i32, i32, i32) {
    %c0_i32 = arith.constant 0 : i32
    %c0_i32_0 = arith.constant 0 : i32
    %c0_i32_1 = arith.constant 0 : i32
    return %c0_i32, %arg0, %c0_i32_0 : i32, i32, i32
  }
  func.func @transform_1(%arg0: i32) -> (i32, i32) {
    %c0_i32 = arith.constant 0 : i32
    %c0_i32_0 = arith.constant 0 : i32
    %c0_i32_1 = arith.constant 0 : i32
    return %c0_i32, %c0_i32_0 : i32, i32
  }
  func.func @transform_2(%arg0: i32) -> (i32, i32) {
    %c0_i32 = arith.constant 0 : i32
    %c0_i32_0 = arith.constant 0 : i32
    %c0_i32_1 = arith.constant 0 : i32
    return %c0_i32, %c0_i32_0 : i32, i32
  }
  func.func @transform_3(%arg0: i32) -> (i32, i32) {
    %c0_i32 = arith.constant 0 : i32
    %c0_i32_0 = arith.constant 0 : i32
    %c0_i32_1 = arith.constant 0 : i32
    return %c0_i32, %c0_i32_0 : i32, i32
  }
  func.func @transform_4(%arg0: i32) -> (i32, i32) {
    %c0_i32 = arith.constant 0 : i32
    %c0_i32_0 = arith.constant 0 : i32
    %c0_i32_1 = arith.constant 0 : i32
    return %c0_i32, %c0_i32_0 : i32, i32
  }
  func.func @transform_5(%arg0: i32) -> (i32, i32) {
    %c0_i32 = arith.constant 0 : i32
    %c0_i32_0 = arith.constant 0 : i32
    %c0_i32_1 = arith.constant 0 : i32
    return %c0_i32, %c0_i32_0 : i32, i32
  }
  func.func @transform_6(%arg0: i32) -> (i32, i32) {
    %c0_i32 = arith.constant 0 : i32
    %c0_i32_0 = arith.constant 0 : i32
    %c0_i32_1 = arith.constant 0 : i32
    return %c0_i32, %c0_i32_0 : i32, i32
  }
  func.func @transform_7(%arg0: i32) -> (i32, i32) {
    %c0_i32 = arith.constant 0 : i32
    %c0_i32_0 = arith.constant 0 : i32
    %c0_i32_1 = arith.constant 0 : i32
    return %c0_i32, %c0_i32_0 : i32, i32
  }
  func.func @transform_8(%arg0: i32) -> (i32, i32) {
    %c0_i32 = arith.constant 0 : i32
    %c0_i32_0 = arith.constant 0 : i32
    %c0_i32_1 = arith.constant 0 : i32
    return %c0_i32, %c0_i32_0 : i32, i32
  }
  func.func @transform_9(%arg0: i32) -> (i32, i32) {
    %c0_i32 = arith.constant 0 : i32
    %c0_i32_0 = arith.constant 0 : i32
    return %arg0, %c0_i32 : i32, i32
  }
}

</mosaic_0001>

<llo_original>
// kernel: tpu_custom_call.1
$region0: #{tpu_custom_call.1}
  #allocation0 [shape = 'u32[]', space=smem, size = 0x4, offset = 0x4, fixed_abs, tag = 'smem constant byte address 0x4 - core index']
  #allocation1 [shape = 'u32[144,128]{1,0:T(1,128)}', space=vmem, size = 0x12000, scoped, tag = 'internal scratch']
  #allocation2 [shape = 'f32[8,8,512]{2,1,0:T(8,128)}', space=vmem, size = 0x20000, scoped, tag = 'scratch operand']
  #allocation3 [shape = 'f32[8,8,128]{2,1,0:T(8,128)}', space=vmem, size = 0x8000, scoped, tag = 'scratch operand']
  %s0 = inlined_call_operand.hbm [shape: f32[8,8,128], index: 0, kind: input, shape index: {}]
  %s1 = inlined_call_operand.hbm [shape: bf16[128,512], index: 1, kind: input, shape index: {}]
  %s2 = inlined_call_operand.hbm [shape: bf16[128,512], index: 2, kind: input, shape index: {}]
  %s3 = inlined_call_operand.vmem [shape: f32[1,512], index: 3, kind: input, shape index: {}]
  %s4 = inlined_call_operand.hbm [shape: bf16[128,512], index: 4, kind: input, shape index: {}]
  %s5 = inlined_call_operand.hbm [shape: bf16[128,512], index: 5, kind: input, shape index: {}]
  %s6 = inlined_call_operand.vmem [shape: f32[1,512], index: 6, kind: input, shape index: {}]
  %s7 = inlined_call_operand.hbm [shape: bf16[128,128], index: 7, kind: input, shape index: {}]
  %s8 = inlined_call_operand.vmem [shape: f32[1,128], index: 8, kind: input, shape index: {}]
  %s9 = inlined_call_operand.hbm [shape: f32[8,128], index: 9, kind: output, shape index: {}]
  %s10 = sld [smem:[#allocation0]]
  $region70: #{tpu_custom_call.1} parent=0
    _
  %s12 = ssub.s32 1, %s10
  %s13 = scalar_select 0, %s12, %s10
  $region1: #{tpu_custom_call.1} parent=0
    #allocation4 [shape = 'u8[32768]{0}', space=vmem, size = 0x8000, scoped, tag = 'input window, operand 0, single buffered']
    #allocation5 [shape = 's32[1]{0}', space=sflag, size = 0x4, scoped, tag = 'scoped memory for tpu_custom_call.1']
    #allocation6 [shape = 's32[1]{0}', space=sflag, size = 0x4, scoped, tag = 'scoped memory for tpu_custom_call.1']
    #allocation7 [shape = 'u8[131072]{0}', space=vmem, size = 0x20000, scoped, tag = 'input window, operand 1, single buffered']
    #allocation8 [shape = 's32[1]{0}', space=sflag, size = 0x4, scoped, tag = 'scoped memory for tpu_custom_call.1']
    #allocation9 [shape = 'u8[131072]{0}', space=vmem, size = 0x20000, scoped, tag = 'input window, operand 2, single buffered']
    #allocation10 [shape = 'u8[131072]{0}', space=vmem, size = 0x20000, scoped, tag = 'input window, operand 4, single buffered']
    #allocation11 [shape = 's32[1]{0}', space=sflag, size = 0x4, scoped, tag = 'scoped memory for tpu_custom_call.1']
    #allocation12 [shape = 'u8[131072]{0}', space=vmem, size = 0x20000, scoped, tag = 'input window, operand 5, single buffered']
    #allocation13 [shape = 'u8[32768]{0}', space=vmem, size = 0x8000, scoped, tag = 'input window, operand 7, single buffered']
    #allocation14 [shape = 's32[1]{0}', space=sflag, size = 0x4, scoped, tag = 'scoped memory for tpu_custom_call.1']
    #allocation15 [shape = 'u8[4096]{0}', space=vmem, size = 0x1000, scoped, tag = 'output window, operand 0, single buffered']
    %14 = vsyncpa [#allocation5], 0
    %15 = vsyncpa [#allocation8], 0
    %16 = vsyncpa [#allocation11], 0
    %17 = vsyncpa [#allocation14], 0
    %18 = vsyncpa [#allocation6], 0
    // Predicated region
    $region2: #{tpu_custom_call.1} parent=1 // pred_check
      _
    $region3: #{tpu_custom_call.1} parent=1 // pred_check_branch
      %20 = sbr.rel (0) target = $region5
    $region4: #{tpu_custom_call.1} parent=1 // pred_region
      %s22 = ssub.s32 1024, 1024
      %23 = vsyncadd [#allocation5], %s22
      %s24 = sshll.u32 [#allocation4], 4
      %s25 = int_to_ptr.vmem [resolvable:$true] %s24
      %30 = dma.hbm_to_vmem [thread:$0]  %s0, 1024, %s25, [#allocation5], 128, 128, 8
    $region5: #{tpu_custom_call.1} parent=1 // pred_fallthru
      _
    // Predicated region
    $region6: #{tpu_custom_call.1} parent=1 // pred_check
      _
    $region7: #{tpu_custom_call.1} parent=1 // pred_check_branch
      %32 = sbr.rel (0) target = $region9
    $region8: #{tpu_custom_call.1} parent=1 // pred_region
      %s34 = ssub.s32 4096, 4096
      %35 = vsyncadd [#allocation8], %s34
      %s36 = sshll.u32 [#allocation7], 4
      %s37 = int_to_ptr.vmem [resolvable:$true] %s36
      %42 = dma.hbm_to_vmem [thread:$0]  %s1, 4096, %s37, [#allocation8], 256, 256, 16
    $region9: #{tpu_custom_call.1} parent=1 // pred_fallthru
      _
    // Predicated region
    $region10: #{tpu_custom_call.1} parent=1 // pred_check
      _
    $region11: #{tpu_custom_call.1} parent=1 // pred_check_branch
      %44 = sbr.rel (0) target = $region13
    $region12: #{tpu_custom_call.1} parent=1 // pred_region
      %s46 = ssub.s32 4096, 4096
      %47 = vsyncadd [#allocation8], %s46
      %s48 = sshll.u32 [#allocation9], 4
      %s49 = int_to_ptr.vmem [resolvable:$true] %s48
      %54 = dma.hbm_to_vmem [thread:$0]  %s2, 4096, %s49, [#allocation8], 256, 256, 16
    $region13: #{tpu_custom_call.1} parent=1 // pred_fallthru
      _
    // Predicated region
    $region14: #{tpu_custom_call.1} parent=1 // pred_check
      _
    $region15: #{tpu_custom_call.1} parent=1 // pred_check_branch
      %56 = sbr.rel (0) target = $region17
    $region16: #{tpu_custom_call.1} parent=1 // pred_region
      _
    $region17: #{tpu_custom_call.1} parent=1 // pred_fallthru
      _
    // Predicated region
    $region18: #{tpu_custom_call.1} parent=1 // pred_check
      _
    $region19: #{tpu_custom_call.1} parent=1 // pred_check_branch
      %58 = sbr.rel (0) target = $region21
    $region20: #{tpu_custom_call.1} parent=1 // pred_region
      %s60 = ssub.s32 4096, 4096
      %61 = vsyncadd [#allocation11], %s60
      %s62 = sshll.u32 [#allocation10], 4
      %s63 = int_to_ptr.vmem [resolvable:$true] %s62
      %68 = dma.hbm_to_vmem [thread:$0]  %s4, 4096, %s63, [#allocation11], 256, 256, 16
    $region21: #{tpu_custom_call.1} parent=1 // pred_fallthru
      _
    // Predicated region
    $region22: #{tpu_custom_call.1} parent=1 // pred_check
      _
    $region23: #{tpu_custom_call.1} parent=1 // pred_check_branch
      %70 = sbr.rel (0) target = $region25
    $region24: #{tpu_custom_call.1} parent=1 // pred_region
      %s72 = ssub.s32 4096, 4096
      %73 = vsyncadd [#allocation11], %s72
      %s74 = sshll.u32 [#allocation12], 4
      %s75 = int_to_ptr.vmem [resolvable:$true] %s74
      %80 = dma.hbm_to_vmem [thread:$0]  %s5, 4096, %s75, [#allocation11], 256, 256, 16
    $region25: #{tpu_custom_call.1} parent=1 // pred_fallthru
      _
    // Predicated region
    $region26: #{tpu_custom_call.1} parent=1 // pred_check
      _
    $region27: #{tpu_custom_call.1} parent=1 // pred_check_branch
      %82 = sbr.rel (0) target = $region29
    $region28: #{tpu_custom_call.1} parent=1 // pred_region
      _
    $region29: #{tpu_custom_call.1} parent=1 // pred_fallthru
      _
    // Predicated region
    $region30: #{tpu_custom_call.1} parent=1 // pred_check
      _
    $region31: #{tpu_custom_call.1} parent=1 // pred_check_branch
      %84 = sbr.rel (0) target = $region33
    $region32: #{tpu_custom_call.1} parent=1 // pred_region
      %s86 = ssub.s32 1024, 1024
      %87 = vsyncadd [#allocation14], %s86
      %s88 = sshll.u32 [#allocation13], 4
      %s89 = int_to_ptr.vmem [resolvable:$true] %s88
      %94 = dma.hbm_to_vmem [thread:$0]  %s7, 1024, %s89, [#allocation14], 64, 64, 4
    $region33: #{tpu_custom_call.1} parent=1 // pred_fallthru
      _
    // Predicated region
    $region34: #{tpu_custom_call.1} parent=1 // pred_check
      _
    $region35: #{tpu_custom_call.1} parent=1 // pred_check_branch
      %96 = sbr.rel (0) target = $region37
    $region36: #{tpu_custom_call.1} parent=1 // pred_region
      _
    $region37: #{tpu_custom_call.1} parent=1 // pred_fallthru
      _
    // Predicated region
    $region38: #{tpu_custom_call.1} parent=1 // pred_check
      _
    $region39: #{tpu_custom_call.1} parent=1 // pred_check_branch
      %98 = sbr.rel (0) target = $region41
    $region40: #{tpu_custom_call.1} parent=1 // pred_region
      %99 = dma.done [#allocation5], 1024
    $region41: #{tpu_custom_call.1} parent=1 // pred_fallthru
      _
    // Predicated region
    $region42: #{tpu_custom_call.1} parent=1 // pred_check
      _
    $region43: #{tpu_custom_call.1} parent=1 // pred_check_branch
      %101 = sbr.rel (0) target = $region45
    $region44: #{tpu_custom_call.1} parent=1 // pred_region
      %102 = dma.done [#allocation8], 4096
    $region45: #{tpu_custom_call.1} parent=1 // pred_fallthru
      _
    // Predicated region
    $region46: #{tpu_custom_call.1} parent=1 // pred_check
      _
    $region47: #{tpu_custom_call.1} parent=1 // pred_check_branch
      %104 = sbr.rel (0) target = $region49
    $region48: #{tpu_custom_call.1} parent=1 // pred_region
      %105 = dma.done [#allocation8], 4096
    $region49: #{tpu_custom_call.1} parent=1 // pred_fallthru
      _
    // Predicated region
    $region50: #{tpu_custom_call.1} parent=1 // pred_check
      _
    $region51: #{tpu_custom_call.1} parent=1 // pred_check_branch
      %107 = sbr.rel (0) target = $region53
    $region52: #{tpu_custom_call.1} parent=1 // pred_region
      %108 = dma.done [#allocation11], 4096
    $region53: #{tpu_custom_call.1} parent=1 // pred_fallthru
      _
    // Predicated region
    $region54: #{tpu_custom_call.1} parent=1 // pred_check
      _
    $region55: #{tpu_custom_call.1} parent=1 // pred_check_branch
      %110 = sbr.rel (0) target = $region57
    $region56: #{tpu_custom_call.1} parent=1 // pred_region
      %111 = dma.done [#allocation11], 4096
    $region57: #{tpu_custom_call.1} parent=1 // pred_fallthru
      _
    // Predicated region
    $region58: #{tpu_custom_call.1} parent=1 // pred_check
      _
    $region59: #{tpu_custom_call.1} parent=1 // pred_check_branch
      %113 = sbr.rel (0) target = $region61
    $region60: #{tpu_custom_call.1} parent=1 // pred_region
      %114 = dma.done [#allocation14], 1024
    $region61: #{tpu_custom_call.1} parent=1 // pred_fallthru
      _
    %v116 = vld [vmem:[#allocation4] sm:$0xff]
    %v117 = vld [vmem:[#allocation4 + $0x8] sm:$0xff]
    %v118 = vld [vmem:[#allocation4 + $0x10] sm:$0xff]
    %v119 = vld [vmem:[#allocation4 + $0x18] sm:$0xff]
    %v120 = vld [vmem:[#allocation4 + $0x20] sm:$0xff]
    %v121 = vld [vmem:[#allocation4 + $0x28] sm:$0xff]
    %v122 = vld [vmem:[#allocation4 + $0x30] sm:$0xff]
    %v123 = vld [vmem:[#allocation4 + $0x38] sm:$0xff]
    %v124 = vpack.c.bf16 %v117, %v116
    %v125 = vpack.c.bf16 %v119, %v118
    %v126 = vpack.c.bf16 %v121, %v120
    %v127 = vpack.c.bf16 %v123, %v122
    %v128 = vld [vmem:[#allocation7] sm:$0xff]
    %v129 = vld [vmem:[#allocation7 + $0x8] sm:$0xff]
    %v130 = vld [vmem:[#allocation7 + $0x10] sm:$0xff]
    %v131 = vld [vmem:[#allocation7 + $0x18] sm:$0xff]
    %v132 = vld [vmem:[#allocation7 + $0x20] sm:$0xff]
    %v133 = vld [vmem:[#allocation7 + $0x28] sm:$0xff]
    %v134 = vld [vmem:[#allocation7 + $0x30] sm:$0xff]
    %v135 = vld [vmem:[#allocation7 + $0x38] sm:$0xff]
    %v136 = vld [vmem:[#allocation7 + $0x40] sm:$0xff]
    %v137 = vld [vmem:[#allocation7 + $0x48] sm:$0xff]
    %v138 = vld [vmem:[#allocation7 + $0x50] sm:$0xff]
    %v139 = vld [vmem:[#allocation7 + $0x58] sm:$0xff]
    %v140 = vld [vmem:[#allocation7 + $0x60] sm:$0xff]
    %v141 = vld [vmem:[#allocation7 + $0x68] sm:$0xff]
    %v142 = vld [vmem:[#allocation7 + $0x70] sm:$0xff]
    %v143 = vld [vmem:[#allocation7 + $0x78] sm:$0xff]
    %v144 = vld [vmem:[#allocation7 + $0x80] sm:$0xff]
    %v145 = vld [vmem:[#allocation7 + $0x88] sm:$0xff]
    %v146 = vld [vmem:[#allocation7 + $0x90] sm:$0xff]
    %v147 = vld [vmem:[#allocation7 + $0x98] sm:$0xff]
    %v148 = vld [vmem:[#allocation7 + $0xa0] sm:$0xff]
    %v149 = vld [vmem:[#allocation7 + $0xa8] sm:$0xff]
    %v150 = vld [vmem:[#allocation7 + $0xb0] sm:$0xff]
    %v151 = vld [vmem:[#allocation7 + $0xb8] sm:$0xff]
    %v152 = vld [vmem:[#allocation7 + $0xc0] sm:$0xff]
    %v153 = vld [vmem:[#allocation7 + $0xc8] sm:$0xff]
    %v154 = vld [vmem:[#allocation7 + $0xd0] sm:$0xff]
    %v155 = vld [vmem:[#allocation7 + $0xd8] sm:$0xff]
    %v156 = vld [vmem:[#allocation7 + $0xe0] sm:$0xff]
    %v157 = vld [vmem:[#allocation7 + $0xe8] sm:$0xff]
    %v158 = vld [vmem:[#allocation7 + $0xf0] sm:$0xff]
    %v159 = vld [vmem:[#allocation7 + $0xf8] sm:$0xff]
    %v160 = vld [vmem:[%s3] sm:$0xf]
    %v162 = vlaneseq
    %v163 = vshrl.u32 %v162, 7
    %v164 = vsub.s32 0, %v163
    %v165 = vrot.slane %v160, %v164
    %v166 = vlaneseq
    %v167 = vshrl.u32 %v166, 7
    %v168 = vsub.s32 1, %v167
    %v169 = vrot.slane %v160, %v168
    %v170 = vlaneseq
    %v171 = vshrl.u32 %v170, 7
    %v172 = vsub.s32 2, %v171
    %v173 = vrot.slane %v160, %v172
    %v174 = vlaneseq
    %v175 = vshrl.u32 %v174, 7
    %v176 = vsub.s32 3, %v175
    %v177 = vrot.slane %v160, %v176
    %v214 = vunpack.c.l.b16 %v128
    %v215 = vunpack.c.h.b16 %v128
    %v216 = vunpack.c.l.b16 %v129
    %v217 = vunpack.c.h.b16 %v129
    %v218 = vunpack.c.l.b16 %v130
    %v219 = vunpack.c.h.b16 %v130
    %v220 = vunpack.c.l.b16 %v131
    %v221 = vunpack.c.h.b16 %v131
    %v222 = vunpack.c.l.b16 %v132
    %v223 = vunpack.c.h.b16 %v132
    %v224 = vunpack.c.l.b16 %v133
    %v225 = vunpack.c.h.b16 %v133
    %v226 = vunpack.c.l.b16 %v134
    %v227 = vunpack.c.h.b16 %v134
    %v228 = vunpack.c.l.b16 %v135
    %v229 = vunpack.c.h.b16 %v135
    %v230 = vunpack.c.l.b16 %v136
    %v231 = vunpack.c.h.b16 %v136
    %v232 = vunpack.c.l.b16 %v137
    %v233 = vunpack.c.h.b16 %v137
    %v234 = vunpack.c.l.b16 %v138
    %v235 = vunpack.c.h.b16 %v138
    %v236 = vunpack.c.l.b16 %v139
    %v237 = vunpack.c.h.b16 %v139
    %v238 = vunpack.c.l.b16 %v140
    %v239 = vunpack.c.h.b16 %v140
    %v240 = vunpack.c.l.b16 %v141
    %v241 = vunpack.c.h.b16 %v141
    %v242 = vunpack.c.l.b16 %v142
    %v243 = vunpack.c.h.b16 %v142
    %v244 = vunpack.c.l.b16 %v143
    %v245 = vunpack.c.h.b16 %v143
    %v246 = vunpack.c.l.b16 %v144
    %v247 = vunpack.c.h.b16 %v144
    %v248 = vunpack.c.l.b16 %v145
    %v249 = vunpack.c.h.b16 %v145
    %v250 = vunpack.c.l.b16 %v146
    %v251 = vunpack.c.h.b16 %v146
    %v252 = vunpack.c.l.b16 %v147
    %v253 = vunpack.c.h.b16 %v147
    %v254 = vunpack.c.l.b16 %v148
    %v255 = vunpack.c.h.b16 %v148
    %v256 = vunpack.c.l.b16 %v149
    %v257 = vunpack.c.h.b16 %v149
    %v258 = vunpack.c.l.b16 %v150
    %v259 = vunpack.c.h.b16 %v150
    %v260 = vunpack.c.l.b16 %v151
    %v261 = vunpack.c.h.b16 %v151
    %v262 = vunpack.c.l.b16 %v152
    %v263 = vunpack.c.h.b16 %v152
    %v264 = vunpack.c.l.b16 %v153
    %v265 = vunpack.c.h.b16 %v153
    %v266 = vunpack.c.l.b16 %v154
    %v267 = vunpack.c.h.b16 %v154
    %v268 = vunpack.c.l.b16 %v155
    %v269 = vunpack.c.h.b16 %v155
    %v270 = vunpack.c.l.b16 %v156
    %v271 = vunpack.c.h.b16 %v156
    %v272 = vunpack.c.l.b16 %v157
    %v273 = vunpack.c.h.b16 %v157
    %v274 = vunpack.c.l.b16 %v158
    %v275 = vunpack.c.h.b16 %v158
    %v276 = vunpack.c.l.b16 %v159
    %v277 = vunpack.c.h.b16 %v159
    %v278 = vpack.c.b16 %v218, %v214
    %v279 = vpack.c.b16 %v219, %v215
    %v280 = vpack.c.b16 %v220, %v216
    %v281 = vpack.c.b16 %v221, %v217
    %v282 = vpack.c.b16 %v226, %v222
    %v283 = vpack.c.b16 %v227, %v223
    %v284 = vpack.c.b16 %v228, %v224
    %v285 = vpack.c.b16 %v229, %v225
    %v286 = vpack.c.b16 %v234, %v230
    %v287 = vpack.c.b16 %v235, %v231
    %v288 = vpack.c.b16 %v236, %v232
    %v289 = vpack.c.b16 %v237, %v233
    %v290 = vpack.c.b16 %v242, %v238
    %v291 = vpack.c.b16 %v243, %v239
    %v292 = vpack.c.b16 %v244, %v240
    %v293 = vpack.c.b16 %v245, %v241
    %v294 = vpack.c.b16 %v250, %v246
    %v295 = vpack.c.b16 %v251, %v247
    %v296 = vpack.c.b16 %v252, %v248
    %v297 = vpack.c.b16 %v253, %v249
    %v298 = vpack.c.b16 %v258, %v254
    %v299 = vpack.c.b16 %v259, %v255
    %v300 = vpack.c.b16 %v260, %v256
    %v301 = vpack.c.b16 %v261, %v257
    %v302 = vpack.c.b16 %v266, %v262
    %v303 = vpack.c.b16 %v267, %v263
    %v304 = vpack.c.b16 %v268, %v264
    %v305 = vpack.c.b16 %v269, %v265
    %v306 = vpack.c.b16 %v274, %v270
    %v307 = vpack.c.b16 %v275, %v271
    %v308 = vpack.c.b16 %v276, %v272
    %v309 = vpack.c.b16 %v277, %v273
    %342 = vmatprep.subr.bf16.mxu0 %v279
    %343 = vmatpush1.bf16.msra.mxu0 %v278
    %344 = vmatprep.subr.bf16.mxu0 %v283
    %345 = vmatpush1.bf16.msra.mxu0 %v282
    %346 = vmatprep.subr.bf16.mxu0 %v287
    %347 = vmatpush1.bf16.msra.mxu0 %v286
    %348 = vmatprep.subr.bf16.mxu0 %v291
    %349 = vmatpush1.bf16.msra.mxu0 %v290
    %350 = vmatprep.subr.bf16.mxu0 %v295
    %351 = vmatpush1.bf16.msra.mxu0 %v294
    %352 = vmatprep.subr.bf16.mxu0 %v299
    %353 = vmatpush1.bf16.msra.mxu0 %v298
    %354 = vmatprep.subr.bf16.mxu0 %v303
    %355 = vmatpush1.bf16.msra.mxu0 %v302
    %356 = vmatprep.subr.bf16.mxu0 %v307
    %357 = vmatpush1.bf16.msra.mxu0 %v306
    %358 = vmatprep.subr.bf16.mxu0 0
    %359 = vmatpush1.bf16.msra.mxu0 0
    %360 = vmatprep.subr.bf16.mxu0 0
    %361 = vmatpush1.bf16.msra.mxu0 0
    %362 = vmatprep.subr.bf16.mxu0 0
    %363 = vmatpush1.bf16.msra.mxu0 0
    %364 = vmatprep.subr.bf16.mxu0 0
    %365 = vmatpush1.bf16.msra.mxu0 0
    %366 = vmatprep.subr.bf16.mxu0 0
    %367 = vmatpush1.bf16.msra.mxu0 0
    %368 = vmatprep.subr.bf16.mxu0 0
    %369 = vmatpush1.bf16.msra.mxu0 0
    %370 = vmatprep.subr.bf16.mxu0 0
    %371 = vmatpush1.bf16.msra.mxu0 0
    %372 = vmatprep.subr.bf16.mxu0 0
    %373 = vmatpush1.bf16.msra.mxu0 0
    %374 = vmatprep.mubr.bf16.mxu0 0
    %375 = vmatmul.mubr.bf16.gmra.mrb[0].mxu0 %v124
    %v376 = vpop.f32.mrb[0].mxu0
    %v377 = vadd.f32 %v165, %v376
    %v378 = vpop.f32.mrb[0].mxu0
    %v379 = vadd.f32 %v169, %v378
    %v380 = vpop.f32.mrb[0].mxu0
    %v381 = vadd.f32 %v165, %v380
    %v382 = vpop.f32.mrb[0].mxu0
    %v383 = vadd.f32 %v169, %v382
    %384 = vmatprep.mubr.bf16.mxu0 0
    %385 = vmatmul.mubr.bf16.gmra.mrb[0].mxu0 %v125
    %v386 = vpop.f32.mrb[0].mxu0
    %v387 = vadd.f32 %v165, %v386
    %v388 = vpop.f32.mrb[0].mxu0
    %v389 = vadd.f32 %v169, %v388
    %v390 = vpop.f32.mrb[0].mxu0
    %v391 = vadd.f32 %v165, %v390
    %v392 = vpop.f32.mrb[0].mxu0
    %v393 = vadd.f32 %v169, %v392
    %394 = vmatprep.mubr.bf16.mxu0 0
    %395 = vmatmul.mubr.bf16.gmra.mrb[0].mxu0 %v126
    %v396 = vpop.f32.mrb[0].mxu0
    %v397 = vadd.f32 %v165, %v396
    %v398 = vpop.f32.mrb[0].mxu0
    %v399 = vadd.f32 %v169, %v398
    %v400 = vpop.f32.mrb[0].mxu0
    %v401 = vadd.f32 %v165, %v400
    %v402 = vpop.f32.mrb[0].mxu0
    %v403 = vadd.f32 %v169, %v402
    %404 = vmatprep.mubr.bf16.mxu0 0
    %405 = vmatmul.mubr.bf16.gmra.mrb[0].mxu0 %v127
    %v406 = vpop.f32.mrb[0].mxu0
    %v407 = vadd.f32 %v165, %v406
    %v408 = vpop.f32.mrb[0].mxu0
    %v409 = vadd.f32 %v169, %v408
    %v410 = vpop.f32.mrb[0].mxu0
    %v411 = vadd.f32 %v165, %v410
    %v412 = vpop.f32.mrb[0].mxu0
    %v413 = vadd.f32 %v169, %v412
    %414 = vdwg.mxu0
    %415 = vmatprep.subr.bf16.mxu0 %v281
    %416 = vmatpush1.bf16.msra.mxu0 %v280
    %417 = vmatprep.subr.bf16.mxu0 %v285
    %418 = vmatpush1.bf16.msra.mxu0 %v284
    %419 = vmatprep.subr.bf16.mxu0 %v289
    %420 = vmatpush1.bf16.msra.mxu0 %v288
    %421 = vmatprep.subr.bf16.mxu0 %v293
    %422 = vmatpush1.bf16.msra.mxu0 %v292
    %423 = vmatprep.subr.bf16.mxu0 %v297
    %424 = vmatpush1.bf16.msra.mxu0 %v296
    %425 = vmatprep.subr.bf16.mxu0 %v301
    %426 = vmatpush1.bf16.msra.mxu0 %v300
    %427 = vmatprep.subr.bf16.mxu0 %v305
    %428 = vmatpush1.bf16.msra.mxu0 %v304
    %429 = vmatprep.subr.bf16.mxu0 %v309
    %430 = vmatpush1.bf16.msra.mxu0 %v308
    %431 = vmatprep.subr.bf16.mxu0 0
    %432 = vmatpush1.bf16.msra.mxu0 0
    %433 = vmatprep.subr.bf16.mxu0 0
    %434 = vmatpush1.bf16.msra.mxu0 0
    %435 = vmatprep.subr.bf16.mxu0 0
    %436 = vmatpush1.bf16.msra.mxu0 0
    %437 = vmatprep.subr.bf16.mxu0 0
    %438 = vmatpush1.bf16.msra.mxu0 0
    %439 = vmatprep.subr.bf16.mxu0 0
    %440 = vmatpush1.bf16.msra.mxu0 0
    %441 = vmatprep.subr.bf16.mxu0 0
    %442 = vmatpush1.bf16.msra.mxu0 0
    %443 = vmatprep.subr.bf16.mxu0 0
    %444 = vmatpush1.bf16.msra.mxu0 0
    %445 = vmatprep.subr.bf16.mxu0 0
    %446 = vmatpush1.bf16.msra.mxu0 0
    %447 = vmatprep.mubr.bf16.mxu0 0
    %448 = vmatmul.mubr.bf16.gmra.mrb[0].mxu0 %v124
    %v449 = vpop.f32.mrb[0].mxu0
    %v450 = vadd.f32 %v173, %v449
    %v451 = vpop.f32.mrb[0].mxu0
    %v452 = vadd.f32 %v177, %v451
    %v453 = vpop.f32.mrb[0].mxu0
    %v454 = vadd.f32 %v173, %v453
    %v455 = vpop.f32.mrb[0].mxu0
    %v456 = vadd.f32 %v177, %v455
    %457 = vmatprep.mubr.bf16.mxu0 0
    %458 = vmatmul.mubr.bf16.gmra.mrb[0].mxu0 %v125
    %v459 = vpop.f32.mrb[0].mxu0
    %v460 = vadd.f32 %v173, %v459
    %v461 = vpop.f32.mrb[0].mxu0
    %v462 = vadd.f32 %v177, %v461
    %v463 = vpop.f32.mrb[0].mxu0
    %v464 = vadd.f32 %v173, %v463
    %v465 = vpop.f32.mrb[0].mxu0
    %v466 = vadd.f32 %v177, %v465
    %467 = vmatprep.mubr.bf16.mxu0 0
    %468 = vmatmul.mubr.bf16.gmra.mrb[0].mxu0 %v126
    %v469 = vpop.f32.mrb[0].mxu0
    %v470 = vadd.f32 %v173, %v469
    %v471 = vpop.f32.mrb[0].mxu0
    %v472 = vadd.f32 %v177, %v471
    %v473 = vpop.f32.mrb[0].mxu0
    %v474 = vadd.f32 %v173, %v473
    %v475 = vpop.f32.mrb[0].mxu0
    %v476 = vadd.f32 %v177, %v475
    %477 = vmatprep.mubr.bf16.mxu0 0
    %478 = vmatmul.mubr.bf16.gmra.mrb[0].mxu0 %v127
    %v479 = vpop.f32.mrb[0].mxu0
    %v480 = vadd.f32 %v173, %v479
    %v481 = vpop.f32.mrb[0].mxu0
    %v482 = vadd.f32 %v177, %v481
    %v483 = vpop.f32.mrb[0].mxu0
    %v484 = vadd.f32 %v173, %v483
    %v485 = vpop.f32.mrb[0].mxu0
    %v486 = vadd.f32 %v177, %v485
    %487 = vdwg.mxu0
    %488 = vst [vmem:[#allocation2] sm:$0xff] %v377
    %489 = vst [vmem:[#allocation2 + $0x8] sm:$0xff] %v379
    %490 = vst [vmem:[#allocation2 + $0x10] sm:$0xff] %v450
    %491 = vst [vmem:[#allocation2 + $0x18] sm:$0xff] %v452
    %492 = vst [vmem:[#allocation2 + $0x20] sm:$0xff] %v381
    %493 = vst [vmem:[#allocation2 + $0x28] sm:$0xff] %v383
    %494 = vst [vmem:[#allocation2 + $0x30] sm:$0xff] %v454
    %495 = vst [vmem:[#allocation2 + $0x38] sm:$0xff] %v456
    %496 = vst [vmem:[#allocation2 + $0x40] sm:$0xff] %v387
    %497 = vst [vmem:[#allocation2 + $0x48] sm:$0xff] %v389
    %498 = vst [vmem:[#allocation2 + $0x50] sm:$0xff] %v460
    %499 = vst [vmem:[#allocation2 + $0x58] sm:$0xff] %v462
    %500 = vst [vmem:[#allocation2 + $0x60] sm:$0xff] %v391
    %501 = vst [vmem:[#allocation2 + $0x68] sm:$0xff] %v393
    %502 = vst [vmem:[#allocation2 + $0x70] sm:$0xff] %v464
    %503 = vst [vmem:[#allocation2 + $0x78] sm:$0xff] %v466
    %504 = vst [vmem:[#allocation2 + $0x80] sm:$0xff] %v397
    %505 = vst [vmem:[#allocation2 + $0x88] sm:$0xff] %v399
    %506 = vst [vmem:[#allocation2 + $0x90] sm:$0xff] %v470
    %507 = vst [vmem:[#allocation2 + $0x98] sm:$0xff] %v472
    %508 = vst [vmem:[#allocation2 + $0xa0] sm:$0xff] %v401
    %509 = vst [vmem:[#allocation2 + $0xa8] sm:$0xff] %v403
    %510 = vst [vmem:[#allocation2 + $0xb0] sm:$0xff] %v474
    %511 = vst [vmem:[#allocation2 + $0xb8] sm:$0xff] %v476
    %512 = vst [vmem:[#allocation2 + $0xc0] sm:$0xff] %v407
    %513 = vst [vmem:[#allocation2 + $0xc8] sm:$0xff] %v409
    %514 = vst [vmem:[#allocation2 + $0xd0] sm:$0xff] %v480
    %515 = vst [vmem:[#allocation2 + $0xd8] sm:$0xff] %v482
    %516 = vst [vmem:[#allocation2 + $0xe0] sm:$0xff] %v411
    %517 = vst [vmem:[#allocation2 + $0xe8] sm:$0xff] %v413
    %518 = vst [vmem:[#allocation2 + $0xf0] sm:$0xff] %v484
    %519 = vst [vmem:[#allocation2 + $0xf8] sm:$0xff] %v486
    %v520 = vld [vmem:[#allocation9] sm:$0xff]
    %v521 = vld [vmem:[#allocation9 + $0x8] sm:$0xff]
    %v522 = vld [vmem:[#allocation9 + $0x10] sm:$0xff]
    %v523 = vld [vmem:[#allocation9 + $0x18] sm:$0xff]
    %v524 = vld [vmem:[#allocation9 + $0x20] sm:$0xff]
    %v525 = vld [vmem:[#allocation9 + $0x28] sm:$0xff]
    %v526 = vld [vmem:[#allocation9 + $0x30] sm:$0xff]
    %v527 = vld [vmem:[#allocation9 + $0x38] sm:$0xff]
    %v528 = vld [vmem:[#allocation9 + $0x40] sm:$0xff]
    %v529 = vld [vmem:[#allocation9 + $0x48] sm:$0xff]
    %v530 = vld [vmem:[#allocation9 + $0x50] sm:$0xff]
    %v531 = vld [vmem:[#allocation9 + $0x58] sm:$0xff]
    %v532 = vld [vmem:[#allocation9 + $0x60] sm:$0xff]
    %v533 = vld [vmem:[#allocation9 + $0x68] sm:$0xff]
    %v534 = vld [vmem:[#allocation9 + $0x70] sm:$0xff]
    %v535 = vld [vmem:[#allocation9 + $0x78] sm:$0xff]
    %v536 = vld [vmem:[#allocation9 + $0x80] sm:$0xff]
    %v537 = vld [vmem:[#allocation9 + $0x88] sm:$0xff]
    %v538 = vld [vmem:[#allocation9 + $0x90] sm:$0xff]
    %v539 = vld [vmem:[#allocation9 + $0x98] sm:$0xff]
    %v540 = vld [vmem:[#allocation9 + $0xa0] sm:$0xff]
    %v541 = vld [vmem:[#allocation9 + $0xa8] sm:$0xff]
    %v542 = vld [vmem:[#allocation9 + $0xb0] sm:$0xff]
    %v543 = vld [vmem:[#allocation9 + $0xb8] sm:$0xff]
    %v544 = vld [vmem:[#allocation9 + $0xc0] sm:$0xff]
    %v545 = vld [vmem:[#allocation9 + $0xc8] sm:$0xff]
    %v546 = vld [vmem:[#allocation9 + $0xd0] sm:$0xff]
    %v547 = vld [vmem:[#allocation9 + $0xd8] sm:$0xff]
    %v548 = vld [vmem:[#allocation9 + $0xe0] sm:$0xff]
    %v549 = vld [vmem:[#allocation9 + $0xe8] sm:$0xff]
    %v550 = vld [vmem:[#allocation9 + $0xf0] sm:$0xff]
    %v551 = vld [vmem:[#allocation9 + $0xf8] sm:$0xff]
    %v552 = vld [vmem:[#allocation2] sm:$0xff]
    %v553 = vld [vmem:[#allocation2 + $0x8] sm:$0xff]
    %v554 = vld [vmem:[#allocation2 + $0x10] sm:$0xff]
    %v555 = vld [vmem:[#allocation2 + $0x18] sm:$0xff]
    %v588 = vunpack.c.l.b16 %v520
    %v589 = vunpack.c.h.b16 %v520
    %v590 = vunpack.c.l.b16 %v521
    %v591 = vunpack.c.h.b16 %v521
    %v592 = vunpack.c.l.b16 %v522
    %v593 = vunpack.c.h.b16 %v522
    %v594 = vunpack.c.l.b16 %v523
    %v595 = vunpack.c.h.b16 %v523
    %v596 = vunpack.c.l.b16 %v524
    %v597 = vunpack.c.h.b16 %v524
    %v598 = vunpack.c.l.b16 %v525
    %v599 = vunpack.c.h.b16 %v525
    %v600 = vunpack.c.l.b16 %v526
    %v601 = vunpack.c.h.b16 %v526
    %v602 = vunpack.c.l.b16 %v527
    %v603 = vunpack.c.h.b16 %v527
    %v604 = vunpack.c.l.b16 %v528
    %v605 = vunpack.c.h.b16 %v528
    %v606 = vunpack.c.l.b16 %v529
    %v607 = vunpack.c.h.b16 %v529
    %v608 = vunpack.c.l.b16 %v530
    %v609 = vunpack.c.h.b16 %v530
    %v610 = vunpack.c.l.b16 %v531
    %v611 = vunpack.c.h.b16 %v531
    %v612 = vunpack.c.l.b16 %v532
    %v613 = vunpack.c.h.b16 %v532
    %v614 = vunpack.c.l.b16 %v533
    %v615 = vunpack.c.h.b16 %v533
    %v616 = vunpack.c.l.b16 %v534
    %v617 = vunpack.c.h.b16 %v534
    %v618 = vunpack.c.l.b16 %v535
    %v619 = vunpack.c.h.b16 %v535
    %v620 = vunpack.c.l.b16 %v536
    %v621 = vunpack.c.h.b16 %v536
    %v622 = vunpack.c.l.b16 %v537
    %v623 = vunpack.c.h.b16 %v537
    %v624 = vunpack.c.l.b16 %v538
    %v625 = vunpack.c.h.b16 %v538
    %v626 = vunpack.c.l.b16 %v539
    %v627 = vunpack.c.h.b16 %v539
    %v628 = vunpack.c.l.b16 %v540
    %v629 = vunpack.c.h.b16 %v540
    %v630 = vunpack.c.l.b16 %v541
    %v631 = vunpack.c.h.b16 %v541
    %v632 = vunpack.c.l.b16 %v542
    %v633 = vunpack.c.h.b16 %v542
    %v634 = vunpack.c.l.b16 %v543
    %v635 = vunpack.c.h.b16 %v543
    %v636 = vunpack.c.l.b16 %v544
    %v637 = vunpack.c.h.b16 %v544
    %v638 = vunpack.c.l.b16 %v545
    %v639 = vunpack.c.h.b16 %v545
    %v640 = vunpack.c.l.b16 %v546
    %v641 = vunpack.c.h.b16 %v546
    %v642 = vunpack.c.l.b16 %v547
    %v643 = vunpack.c.h.b16 %v547
    %v644 = vunpack.c.l.b16 %v548
    %v645 = vunpack.c.h.b16 %v548
    %v646 = vunpack.c.l.b16 %v549
    %v647 = vunpack.c.h.b16 %v549
    %v648 = vunpack.c.l.b16 %v550
    %v649 = vunpack.c.h.b16 %v550
    %v650 = vunpack.c.l.b16 %v551
    %v651 = vunpack.c.h.b16 %v551
    %v652 = vpack.c.b16 %v592, %v588
    %v653 = vpack.c.b16 %v593, %v589
    %v654 = vpack.c.b16 %v594, %v590
    %v655 = vpack.c.b16 %v595, %v591
    %v656 = vpack.c.b16 %v600, %v596
    %v657 = vpack.c.b16 %v601, %v597
    %v658 = vpack.c.b16 %v602, %v598
    %v659 = vpack.c.b16 %v603, %v599
    %v660 = vpack.c.b16 %v608, %v604
    %v661 = vpack.c.b16 %v609, %v605
    %v662 = vpack.c.b16 %v610, %v606
    %v663 = vpack.c.b16 %v611, %v607
    %v664 = vpack.c.b16 %v616, %v612
    %v665 = vpack.c.b16 %v617, %v613
    %v666 = vpack.c.b16 %v618, %v614
    %v667 = vpack.c.b16 %v619, %v615
    %v668 = vpack.c.b16 %v624, %v620
    %v669 = vpack.c.b16 %v625, %v621
    %v670 = vpack.c.b16 %v626, %v622
    %v671 = vpack.c.b16 %v627, %v623
    %v672 = vpack.c.b16 %v632, %v628
    %v673 = vpack.c.b16 %v633, %v629
    %v674 = vpack.c.b16 %v634, %v630
    %v675 = vpack.c.b16 %v635, %v631
    %v676 = vpack.c.b16 %v640, %v636
    %v677 = vpack.c.b16 %v641, %v637
    %v678 = vpack.c.b16 %v642, %v638
    %v679 = vpack.c.b16 %v643, %v639
    %v680 = vpack.c.b16 %v648, %v644
    %v681 = vpack.c.b16 %v649, %v645
    %v682 = vpack.c.b16 %v650, %v646
    %v683 = vpack.c.b16 %v651, %v647
    %716 = vmatprep.subr.bf16.mxu0 %v653
    %717 = vmatpush1.bf16.msra.mxu0 %v652
    %718 = vmatprep.subr.bf16.mxu0 %v657
    %719 = vmatpush1.bf16.msra.mxu0 %v656
    %720 = vmatprep.subr.bf16.mxu0 %v661
    %721 = vmatpush1.bf16.msra.mxu0 %v660
    %722 = vmatprep.subr.bf16.mxu0 %v665
    %723 = vmatpush1.bf16.msra.mxu0 %v664
    %724 = vmatprep.subr.bf16.mxu0 %v669
    %725 = vmatpush1.bf16.msra.mxu0 %v668
    %726 = vmatprep.subr.bf16.mxu0 %v673
    %727 = vmatpush1.bf16.msra.mxu0 %v672
    %728 = vmatprep.subr.bf16.mxu0 %v677
    %729 = vmatpush1.bf16.msra.mxu0 %v676
    %730 = vmatprep.subr.bf16.mxu0 %v681
    %731 = vmatpush1.bf16.msra.mxu0 %v680
    %732 = vmatprep.subr.bf16.mxu0 0
    %733 = vmatpush1.bf16.msra.mxu0 0
    %734 = vmatprep.subr.bf16.mxu0 0
    %735 = vmatpush1.bf16.msra.mxu0 0
    %736 = vmatprep.subr.bf16.mxu0 0
    %737 = vmatpush1.bf16.msra.mxu0 0
    %738 = vmatprep.subr.bf16.mxu0 0
    %739 = vmatpush1.bf16.msra.mxu0 0
    %740 = vmatprep.subr.bf16.mxu0 0
    %741 = vmatpush1.bf16.msra.mxu0 0
    %742 = vmatprep.subr.bf16.mxu0 0
    %743 = vmatpush1.bf16.msra.mxu0 0
    %744 = vmatprep.subr.bf16.mxu0 0
    %745 = vmatpush1.bf16.msra.mxu0 0
    %746 = vmatprep.subr.bf16.mxu0 0
    %747 = vmatpush1.bf16.msra.mxu0 0
    %748 = vmatprep.mubr.bf16.mxu0 0
    %749 = vmatmul.mubr.bf16.gmra.mrb[0].mxu0 0
    %v750 = vpop.f32.mrb[0].mxu0
    %v751 = vadd.f32 0.0, %v750
    %v752 = vpop.f32.mrb[0].mxu0
    %v753 = vadd.f32 0.0, %v752
    %v754 = vpop.f32.mrb[0].mxu0
    %v755 = vpop.f32.mrb[0].mxu0
    %756 = vdwg.mxu0
    %757 = vmatprep.subr.bf16.mxu0 %v655
    %758 = vmatpush1.bf16.msra.mxu0 %v654
    %759 = vmatprep.subr.bf16.mxu0 %v659
    %760 = vmatpush1.bf16.msra.mxu0 %v658
    %761 = vmatprep.subr.bf16.mxu0 %v663
    %762 = vmatpush1.bf16.msra.mxu0 %v662
    %763 = vmatprep.subr.bf16.mxu0 %v667
    %764 = vmatpush1.bf16.msra.mxu0 %v666
    %765 = vmatprep.subr.bf16.mxu0 %v671
    %766 = vmatpush1.bf16.msra.mxu0 %v670
    %767 = vmatprep.subr.bf16.mxu0 %v675
    %768 = vmatpush1.bf16.msra.mxu0 %v674
    %769 = vmatprep.subr.bf16.mxu0 %v679
    %770 = vmatpush1.bf16.msra.mxu0 %v678
    %771 = vmatprep.subr.bf16.mxu0 %v683
    %772 = vmatpush1.bf16.msra.mxu0 %v682
    %773 = vmatprep.subr.bf16.mxu0 0
    %774 = vmatpush1.bf16.msra.mxu0 0
    %775 = vmatprep.subr.bf16.mxu0 0
    %776 = vmatpush1.bf16.msra.mxu0 0
    %777 = vmatprep.subr.bf16.mxu0 0
    %778 = vmatpush1.bf16.msra.mxu0 0
    %779 = vmatprep.subr.bf16.mxu0 0
    %780 = vmatpush1.bf16.msra.mxu0 0
    %781 = vmatprep.subr.bf16.mxu0 0
    %782 = vmatpush1.bf16.msra.mxu0 0
    %783 = vmatprep.subr.bf16.mxu0 0
    %784 = vmatpush1.bf16.msra.mxu0 0
    %785 = vmatprep.subr.bf16.mxu0 0
    %786 = vmatpush1.bf16.msra.mxu0 0
    %787 = vmatprep.subr.bf16.mxu0 0
    %788 = vmatpush1.bf16.msra.mxu0 0
    %789 = vmatprep.mubr.bf16.mxu0 0
    %790 = vmatmul.mubr.bf16.gmra.mrb[0].mxu0 0
    %v791 = vpop.f32.mrb[0].mxu0
    %v792 = vadd.f32 0.0, %v791
    %v793 = vpop.f32.mrb[0].mxu0
    %v794 = vadd.f32 0.0, %v793
    %v795 = vpop.f32.mrb[0].mxu0
    %v796 = vpop.f32.mrb[0].mxu0
    %797 = vdwg.mxu0
    %v798 = vadd.f32 %v552, %v751
    %v799 = vadd.f32 %v553, %v753
    %v800 = vadd.f32 %v554, %v792
    %v801 = vadd.f32 %v555, %v794
    %v802 = vmul.f32 %v798, 0.5
    %v803 = vtanh.pop %v802
    %v804 = vmul.f32 %v803, 0.5
    %v805 = vadd.f32 %v804, 0.5
    %v806 = vmul.f32 %v799, 0.5
    %v807 = vtanh.pop %v806
    %v808 = vmul.f32 %v807, 0.5
    %v809 = vadd.f32 %v808, 0.5
    %v810 = vtanh.pop %v800
    %v811 = vmul.f32 %v801, 0.5
    %v812 = vtanh.pop %v811
    %v813 = vmul.f32 %v812, 0.5
    %v814 = vadd.f32 %v813, 0.5
    %v815 = vmul.f32 %v809, 0.0
    %v816 = vmul.f32 %v805, %v810
    %v817 = vadd.f32 %v815, %v816
    %v818 = vtanh.pop %v817
    %v819 = vmul.f32 %v814, %v818
    %820 = vst [vmem:[#allocation3] sm:$0xff] %v819
    %v821 = vpack.c.bf16 %v819, %v819
    %s822 = scalar_lea.vmem [#allocation2], 32
    %v823 = vld [vmem:[%s822] sm:$0xff]
    %v824 = vld [vmem:[%s822 + $0x8] sm:$0xff]
    %v825 = vld [vmem:[%s822 + $0x10] sm:$0xff]
    %v826 = vld [vmem:[%s822 + $0x18] sm:$0xff]
    %827 = vmatprep.subr.bf16.mxu0 %v653
    %828 = vmatpush1.bf16.msra.mxu0 %v652
    %829 = vmatprep.subr.bf16.mxu0 %v657
    %830 = vmatpush1.bf16.msra.mxu0 %v656
    %831 = vmatprep.subr.bf16.mxu0 %v661
    %832 = vmatpush1.bf16.msra.mxu0 %v660
    %833 = vmatprep.subr.bf16.mxu0 %v665
    %834 = vmatpush1.bf16.msra.mxu0 %v664
    %835 = vmatprep.subr.bf16.mxu0 %v669
    %836 = vmatpush1.bf16.msra.mxu0 %v668
    %837 = vmatprep.subr.bf16.mxu0 %v673
    %838 = vmatpush1.bf16.msra.mxu0 %v672
    %839 = vmatprep.subr.bf16.mxu0 %v677
    %840 = vmatpush1.bf16.msra.mxu0 %v676
    %841 = vmatprep.subr.bf16.mxu0 %v681
    %842 = vmatpush1.bf16.msra.mxu0 %v680
    %843 = vmatprep.subr.bf16.mxu0 0
    %844 = vmatpush1.bf16.msra.mxu0 0
    %845 = vmatprep.subr.bf16.mxu0 0
    %846 = vmatpush1.bf16.msra.mxu0 0
    %847 = vmatprep.subr.bf16.mxu0 0
    %848 = vmatpush1.bf16.msra.mxu0 0
    %849 = vmatprep.subr.bf16.mxu0 0
    %850 = vmatpush1.bf16.msra.mxu0 0
    %851 = vmatprep.subr.bf16.mxu0 0
    %852 = vmatpush1.bf16.msra.mxu0 0
    %853 = vmatprep.subr.bf16.mxu0 0
    %854 = vmatpush1.bf16.msra.mxu0 0
    %855 = vmatprep.subr.bf16.mxu0 0
    %856 = vmatpush1.bf16.msra.mxu0 0
    %857 = vmatprep.subr.bf16.mxu0 0
    %858 = vmatpush1.bf16.msra.mxu0 0
    %859 = vmatprep.mubr.bf16.mxu0 0
    %860 = vmatmul.mubr.bf16.gmra.mrb[0].mxu0 %v821
    %v861 = vpop.f32.mrb[0].mxu0
    %v862 = vadd.f32 0.0, %v861
    %v863 = vpop.f32.mrb[0].mxu0
    %v864 = vadd.f32 0.0, %v863
    %v865 = vpop.f32.mrb[0].mxu0
    %v866 = vpop.f32.mrb[0].mxu0
    %867 = vdwg.mxu0
    %868 = vmatprep.subr.bf16.mxu0 %v655
    %869 = vmatpush1.bf16.msra.mxu0 %v654
    %870 = vmatprep.subr.bf16.mxu0 %v659
    %871 = vmatpush1.bf16.msra.mxu0 %v658
    %872 = vmatprep.subr.bf16.mxu0 %v663
    %873 = vmatpush1.bf16.msra.mxu0 %v662
    %874 = vmatprep.subr.bf16.mxu0 %v667
    %875 = vmatpush1.bf16.msra.mxu0 %v666
    %876 = vmatprep.subr.bf16.mxu0 %v671
    %877 = vmatpush1.bf16.msra.mxu0 %v670
    %878 = vmatprep.subr.bf16.mxu0 %v675
    %879 = vmatpush1.bf16.msra.mxu0 %v674
    %880 = vmatprep.subr.bf16.mxu0 %v679
    %881 = vmatpush1.bf16.msra.mxu0 %v678
    %882 = vmatprep.subr.bf16.mxu0 %v683
    %883 = vmatpush1.bf16.msra.mxu0 %v682
    %884 = vmatprep.subr.bf16.mxu0 0
    %885 = vmatpush1.bf16.msra.mxu0 0
    %886 = vmatprep.subr.bf16.mxu0 0
    %887 = vmatpush1.bf16.msra.mxu0 0
    %888 = vmatprep.subr.bf16.mxu0 0
    %889 = vmatpush1.bf16.msra.mxu0 0
    %890 = vmatprep.subr.bf16.mxu0 0
    %891 = vmatpush1.bf16.msra.mxu0 0
    %892 = vmatprep.subr.bf16.mxu0 0
    %893 = vmatpush1.bf16.msra.mxu0 0
    %894 = vmatprep.subr.bf16.mxu0 0
    %895 = vmatpush1.bf16.msra.mxu0 0
    %896 = vmatprep.subr.bf16.mxu0 0
    %897 = vmatpush1.bf16.msra.mxu0 0
    %898 = vmatprep.subr.bf16.mxu0 0
    %899 = vmatpush1.bf16.msra.mxu0 0
    %900 = vmatprep.mubr.bf16.mxu0 0
    %901 = vmatmul.mubr.bf16.gmra.mrb[0].mxu0 %v821
    %v902 = vpop.f32.mrb[0].mxu0
    %v903 = vadd.f32 0.0, %v902
    %v904 = vpop.f32.mrb[0].mxu0
    %v905 = vadd.f32 0.0, %v904
    %v906 = vpop.f32.mrb[0].mxu0
    %v907 = vpop.f32.mrb[0].mxu0
    %908 = vdwg.mxu0
    %v909 = vadd.f32 %v823, %v862
    %v910 = vadd.f32 %v824, %v864
    %v911 = vadd.f32 %v825, %v903
    %v912 = vadd.f32 %v826, %v905
    %v913 = vmul.f32 %v909, 0.5
    %v914 = vtanh.pop %v913
    %v915 = vmul.f32 %v914, 0.5
    %v916 = vadd.f32 %v915, 0.5
    %v917 = vmul.f32 %v910, 0.5
    %v918 = vtanh.pop %v917
    %v919 = vmul.f32 %v918, 0.5
    %v920 = vadd.f32 %v919, 0.5
    %v921 = vtanh.pop %v911
    %v922 = vmul.f32 %v912, 0.5
    %v923 = vtanh.pop %v922
    %v924 = vmul.f32 %v923, 0.5
    %v925 = vadd.f32 %v924, 0.5
    %v926 = vmul.f32 %v920, %v817
    %v927 = vmul.f32 %v916, %v921
    %v928 = vadd.f32 %v926, %v927
    %v929 = vtanh.pop %v928
    %v930 = vmul.f32 %v925, %v929
    %s931 = scalar_lea.vmem [#allocation3], 8
    %932 = vst [vmem:[%s931] sm:$0xff] %v930
    %v933 = vpack.c.bf16 %v930, %v930
    %s934 = scalar_lea.vmem [#allocation2], 64
    %v935 = vld [vmem:[%s934] sm:$0xff]
    %v936 = vld [vmem:[%s934 + $0x8] sm:$0xff]
    %v937 = vld [vmem:[%s934 + $0x10] sm:$0xff]
    %v938 = vld [vmem:[%s934 + $0x18] sm:$0xff]
    %939 = vmatprep.subr.bf16.mxu0 %v653
    %940 = vmatpush1.bf16.msra.mxu0 %v652
    %941 = vmatprep.subr.bf16.mxu0 %v657
    %942 = vmatpush1.bf16.msra.mxu0 %v656
    %943 = vmatprep.subr.bf16.mxu0 %v661
    %944 = vmatpush1.bf16.msra.mxu0 %v660
    %945 = vmatprep.subr.bf16.mxu0 %v665
    %946 = vmatpush1.bf16.msra.mxu0 %v664
    %947 = vmatprep.subr.bf16.mxu0 %v669
    %948 = vmatpush1.bf16.msra.mxu0 %v668
    %949 = vmatprep.subr.bf16.mxu0 %v673
    %950 = vmatpush1.bf16.msra.mxu0 %v672
    %951 = vmatprep.subr.bf16.mxu0 %v677
    %952 = vmatpush1.bf16.msra.mxu0 %v676
    %953 = vmatprep.subr.bf16.mxu0 %v681
    %954 = vmatpush1.bf16.msra.mxu0 %v680
    %955 = vmatprep.subr.bf16.mxu0 0
    %956 = vmatpush1.bf16.msra.mxu0 0
    %957 = vmatprep.subr.bf16.mxu0 0
    %958 = vmatpush1.bf16.msra.mxu0 0
    %959 = vmatprep.subr.bf16.mxu0 0
    %960 = vmatpush1.bf16.msra.mxu0 0
    %961 = vmatprep.subr.bf16.mxu0 0
    %962 = vmatpush1.bf16.msra.mxu0 0
    %963 = vmatprep.subr.bf16.mxu0 0
    %964 = vmatpush1.bf16.msra.mxu0 0
    %965 = vmatprep.subr.bf16.mxu0 0
    %966 = vmatpush1.bf16.msra.mxu0 0
    %967 = vmatprep.subr.bf16.mxu0 0
    %968 = vmatpush1.bf16.msra.mxu0 0
    %969 = vmatprep.subr.bf16.mxu0 0
    %970 = vmatpush1.bf16.msra.mxu0 0
    %971 = vmatprep.mubr.bf16.mxu0 0
    %972 = vmatmul.mubr.bf16.gmra.mrb[0].mxu0 %v933
    %v973 = vpop.f32.mrb[0].mxu0
    %v974 = vadd.f32 0.0, %v973
    %v975 = vpop.f32.mrb[0].mxu0
    %v976 = vadd.f32 0.0, %v975
    %v977 = vpop.f32.mrb[0].mxu0
    %v978 = vpop.f32.mrb[0].mxu0
    %979 = vdwg.mxu0
    %980 = vmatprep.subr.bf16.mxu0 %v655
    %981 = vmatpush1.bf16.msra.mxu0 %v654
    %982 = vmatprep.subr.bf16.mxu0 %v659
    %983 = vmatpush1.bf16.msra.mxu0 %v658
    %984 = vmatprep.subr.bf16.mxu0 %v663
    %985 = vmatpush1.bf16.msra.mxu0 %v662
    %986 = vmatprep.subr.bf16.mxu0 %v667
    %987 = vmatpush1.bf16.msra.mxu0 %v666
    %988 = vmatprep.subr.bf16.mxu0 %v671
    %989 = vmatpush1.bf16.msra.mxu0 %v670
    %990 = vmatprep.subr.bf16.mxu0 %v675
    %991 = vmatpush1.bf16.msra.mxu0 %v674
    %992 = vmatprep.subr.bf16.mxu0 %v679
    %993 = vmatpush1.bf16.msra.mxu0 %v678
    %994 = vmatprep.subr.bf16.mxu0 %v683
    %995 = vmatpush1.bf16.msra.mxu0 %v682
    %996 = vmatprep.subr.bf16.mxu0 0
    %997 = vmatpush1.bf16.msra.mxu0 0
    %998 = vmatprep.subr.bf16.mxu0 0
    %999 = vmatpush1.bf16.msra.mxu0 0
    %1000 = vmatprep.subr.bf16.mxu0 0
    %1001 = vmatpush1.bf16.msra.mxu0 0
    %1002 = vmatprep.subr.bf16.mxu0 0
    %1003 = vmatpush1.bf16.msra.mxu0 0
    %1004 = vmatprep.subr.bf16.mxu0 0
    %1005 = vmatpush1.bf16.msra.mxu0 0
    %1006 = vmatprep.subr.bf16.mxu0 0
    %1007 = vmatpush1.bf16.msra.mxu0 0
    %1008 = vmatprep.subr.bf16.mxu0 0
    %1009 = vmatpush1.bf16.msra.mxu0 0
    %1010 = vmatprep.subr.bf16.mxu0 0
    %1011 = vmatpush1.bf16.msra.mxu0 0
    %1012 = vmatprep.mubr.bf16.mxu0 0
    %1013 = vmatmul.mubr.bf16.gmra.mrb[0].mxu0 %v933
    %v1014 = vpop.f32.mrb[0].mxu0
    %v1015 = vadd.f32 0.0, %v1014
    %v1016 = vpop.f32.mrb[0].mxu0
    %v1017 = vadd.f32 0.0, %v1016
    %v1018 = vpop.f32.mrb[0].mxu0
    %v1019 = vpop.f32.mrb[0].mxu0
    %1020 = vdwg.mxu0
    %v1021 = vadd.f32 %v935, %v974
    %v1022 = vadd.f32 %v936, %v976
    %v1023 = vadd.f32 %v937, %v1015
    %v1024 = vadd.f32 %v938, %v1017
    %v1025 = vmul.f32 %v1021, 0.5
    %v1026 = vtanh.pop %v1025
    %v1027 = vmul.f32 %v1026, 0.5
    %v1028 = vadd.f32 %v1027, 0.5
    %v1029 = vmul.f32 %v1022, 0.5
    %v1030 = vtanh.pop %v1029
    %v1031 = vmul.f32 %v1030, 0.5
    %v1032 = vadd.f32 %v1031, 0.5
    %v1033 = vtanh.pop %v1023
    %v1034 = vmul.f32 %v1024, 0.5
    %v1035 = vtanh.pop %v1034
    %v1036 = vmul.f32 %v1035, 0.5
    %v1037 = vadd.f32 %v1036, 0.5
    %v1038 = vmul.f32 %v1032, %v928
    %v1039 = vmul.f32 %v1028, %v1033
    %v1040 = vadd.f32 %v1038, %v1039
    %v1041 = vtanh.pop %v1040
    %v1042 = vmul.f32 %v1037, %v1041
    %s1043 = scalar_lea.vmem [#allocation3], 16
    %1044 = vst [vmem:[%s1043] sm:$0xff] %v1042
    %v1045 = vpack.c.bf16 %v1042, %v1042
    %s1046 = scalar_lea.vmem [#allocation2], 96
    %v1047 = vld [vmem:[%s1046] sm:$0xff]
    %v1048 = vld [vmem:[%s1046 + $0x8] sm:$0xff]
    %v1049 = vld [vmem:[%s1046 + $0x10] sm:$0xff]
    %v1050 = vld [vmem:[%s1046 + $0x18] sm:$0xff]
    %1051 = vmatprep.subr.bf16.mxu0 %v653
    %1052 = vmatpush1.bf16.msra.mxu0 %v652
    %1053 = vmatprep.subr.bf16.mxu0 %v657
    %1054 = vmatpush1.bf16.msra.mxu0 %v656
    %1055 = vmatprep.subr.bf16.mxu0 %v661
    %1056 = vmatpush1.bf16.msra.mxu0 %v660
    %1057 = vmatprep.subr.bf16.mxu0 %v665
    %1058 = vmatpush1.bf16.msra.mxu0 %v664
    %1059 = vmatprep.subr.bf16.mxu0 %v669
    %1060 = vmatpush1.bf16.msra.mxu0 %v668
    %1061 = vmatprep.subr.bf16.mxu0 %v673
    %1062 = vmatpush1.bf16.msra.mxu0 %v672
    %1063 = vmatprep.subr.bf16.mxu0 %v677
    %1064 = vmatpush1.bf16.msra.mxu0 %v676
    %1065 = vmatprep.subr.bf16.mxu0 %v681
    %1066 = vmatpush1.bf16.msra.mxu0 %v680
    %1067 = vmatprep.subr.bf16.mxu0 0
    %1068 = vmatpush1.bf16.msra.mxu0 0
    %1069 = vmatprep.subr.bf16.mxu0 0
    %1070 = vmatpush1.bf16.msra.mxu0 0
    %1071 = vmatprep.subr.bf16.mxu0 0
    %1072 = vmatpush1.bf16.msra.mxu0 0
    %1073 = vmatprep.subr.bf16.mxu0 0
    %1074 = vmatpush1.bf16.msra.mxu0 0
    %1075 = vmatprep.subr.bf16.mxu0 0
    %1076 = vmatpush1.bf16.msra.mxu0 0
    %1077 = vmatprep.subr.bf16.mxu0 0
    %1078 = vmatpush1.bf16.msra.mxu0 0
    %1079 = vmatprep.subr.bf16.mxu0 0
    %1080 = vmatpush1.bf16.msra.mxu0 0
    %1081 = vmatprep.subr.bf16.mxu0 0
    %1082 = vmatpush1.bf16.msra.mxu0 0
    %1083 = vmatprep.mubr.bf16.mxu0 0
    %1084 = vmatmul.mubr.bf16.gmra.mrb[0].mxu0 %v1045
    %v1085 = vpop.f32.mrb[0].mxu0
    %v1086 = vadd.f32 0.0, %v1085
    %v1087 = vpop.f32.mrb[0].mxu0
    %v1088 = vadd.f32 0.0, %v1087
    %v1089 = vpop.f32.mrb[0].mxu0
    %v1090 = vpop.f32.mrb[0].mxu0
    %1091 = vdwg.mxu0
    %1092 = vmatprep.subr.bf16.mxu0 %v655
    %1093 = vmatpush1.bf16.msra.mxu0 %v654
    %1094 = vmatprep.subr.bf16.mxu0 %v659
    %1095 = vmatpush1.bf16.msra.mxu0 %v658
    %1096 = vmatprep.subr.bf16.mxu0 %v663
    %1097 = vmatpush1.bf16.msra.mxu0 %v662
    %1098 = vmatprep.subr.bf16.mxu0 %v667
    %1099 = vmatpush1.bf16.msra.mxu0 %v666
    %1100 = vmatprep.subr.bf16.mxu0 %v671
    %1101 = vmatpush1.bf16.msra.mxu0 %v670
    %1102 = vmatprep.subr.bf16.mxu0 %v675
    %1103 = vmatpush1.bf16.msra.mxu0 %v674
    %1104 = vmatprep.subr.bf16.mxu0 %v679
    %1105 = vmatpush1.bf16.msra.mxu0 %v678
    %1106 = vmatprep.subr.bf16.mxu0 %v683
    %1107 = vmatpush1.bf16.msra.mxu0 %v682
    %1108 = vmatprep.subr.bf16.mxu0 0
    %1109 = vmatpush1.bf16.msra.mxu0 0
    %1110 = vmatprep.subr.bf16.mxu0 0
    %1111 = vmatpush1.bf16.msra.mxu0 0
    %1112 = vmatprep.subr.bf16.mxu0 0
    %1113 = vmatpush1.bf16.msra.mxu0 0
    %1114 = vmatprep.subr.bf16.mxu0 0
    %1115 = vmatpush1.bf16.msra.mxu0 0
    %1116 = vmatprep.subr.bf16.mxu0 0
    %1117 = vmatpush1.bf16.msra.mxu0 0
    %1118 = vmatprep.subr.bf16.mxu0 0
    %1119 = vmatpush1.bf16.msra.mxu0 0
    %1120 = vmatprep.subr.bf16.mxu0 0
    %1121 = vmatpush1.bf16.msra.mxu0 0
    %1122 = vmatprep.subr.bf16.mxu0 0
    %1123 = vmatpush1.bf16.msra.mxu0 0
    %1124 = vmatprep.mubr.bf16.mxu0 0
    %1125 = vmatmul.mubr.bf16.gmra.mrb[0].mxu0 %v1045
    %v1126 = vpop.f32.mrb[0].mxu0
    %v1127 = vadd.f32 0.0, %v1126
    %v1128 = vpop.f32.mrb[0].mxu0
    %v1129 = vadd.f32 0.0, %v1128
    %v1130 = vpop.f32.mrb[0].mxu0
    %v1131 = vpop.f32.mrb[0].mxu0
    %1132 = vdwg.mxu0
    %v1133 = vadd.f32 %v1047, %v1086
    %v1134 = vadd.f32 %v1048, %v1088
    %v1135 = vadd.f32 %v1049, %v1127
    %v1136 = vadd.f32 %v1050, %v1129
    %v1137 = vmul.f32 %v1133, 0.5
    %v1138 = vtanh.pop %v1137
    %v1139 = vmul.f32 %v1138, 0.5
    %v1140 = vadd.f32 %v1139, 0.5
    %v1141 = vmul.f32 %v1134, 0.5
    %v1142 = vtanh.pop %v1141
    %v1143 = vmul.f32 %v1142, 0.5
    %v1144 = vadd.f32 %v1143, 0.5
    %v1145 = vtanh.pop %v1135
    %v1146 = vmul.f32 %v1136, 0.5
    %v1147 = vtanh.pop %v1146
    %v1148 = vmul.f32 %v1147, 0.5
    %v1149 = vadd.f32 %v1148, 0.5
    %v1150 = vmul.f32 %v1144, %v1040
    %v1151 = vmul.f32 %v1140, %v1145
    %v1152 = vadd.f32 %v1150, %v1151
    %v1153 = vtanh.pop %v1152
    %v1154 = vmul.f32 %v1149, %v1153
    %s1155 = scalar_lea.vmem [#allocation3], 24
    %1156 = vst [vmem:[%s1155] sm:$0xff] %v1154
    %v1157 = vpack.c.bf16 %v1154, %v1154
    %s1158 = scalar_lea.vmem [#allocation2], 128
    %v1159 = vld [vmem:[%s1158] sm:$0xff]
    %v1160 = vld [vmem:[%s1158 + $0x8] sm:$0xff]
    %v1161 = vld [vmem:[%s1158 + $0x10] sm:$0xff]
    %v1162 = vld [vmem:[%s1158 + $0x18] sm:$0xff]
    %1163 = vmatprep.subr.bf16.mxu0 %v653
    %1164 = vmatpush1.bf16.msra.mxu0 %v652
    %1165 = vmatprep.subr.bf16.mxu0 %v657
    %1166 = vmatpush1.bf16.msra.mxu0 %v656
    %1167 = vmatprep.subr.bf16.mxu0 %v661
    %1168 = vmatpush1.bf16.msra.mxu0 %v660
    %1169 = vmatprep.subr.bf16.mxu0 %v665
    %1170 = vmatpush1.bf16.msra.mxu0 %v664
    %1171 = vmatprep.subr.bf16.mxu0 %v669
    %1172 = vmatpush1.bf16.msra.mxu0 %v668
    %1173 = vmatprep.subr.bf16.mxu0 %v673
    %1174 = vmatpush1.bf16.msra.mxu0 %v672
    %1175 = vmatprep.subr.bf16.mxu0 %v677
    %1176 = vmatpush1.bf16.msra.mxu0 %v676
    %1177 = vmatprep.subr.bf16.mxu0 %v681
    %1178 = vmatpush1.bf16.msra.mxu0 %v680
    %1179 = vmatprep.subr.bf16.mxu0 0
    %1180 = vmatpush1.bf16.msra.mxu0 0
    %1181 = vmatprep.subr.bf16.mxu0 0
    %1182 = vmatpush1.bf16.msra.mxu0 0
    %1183 = vmatprep.subr.bf16.mxu0 0
    %1184 = vmatpush1.bf16.msra.mxu0 0
    %1185 = vmatprep.subr.bf16.mxu0 0
    %1186 = vmatpush1.bf16.msra.mxu0 0
    %1187 = vmatprep.subr.bf16.mxu0 0
    %1188 = vmatpush1.bf16.msra.mxu0 0
    %1189 = vmatprep.subr.bf16.mxu0 0
    %1190 = vmatpush1.bf16.msra.mxu0 0
    %1191 = vmatprep.subr.bf16.mxu0 0
    %1192 = vmatpush1.bf16.msra.mxu0 0
    %1193 = vmatprep.subr.bf16.mxu0 0
    %1194 = vmatpush1.bf16.msra.mxu0 0
    %1195 = vmatprep.mubr.bf16.mxu0 0
    %1196 = vmatmul.mubr.bf16.gmra.mrb[0].mxu0 %v1157
    %v1197 = vpop.f32.mrb[0].mxu0
    %v1198 = vadd.f32 0.0, %v1197
    %v1199 = vpop.f32.mrb[0].mxu0
    %v1200 = vadd.f32 0.0, %v1199
    %v1201 = vpop.f32.mrb[0].mxu0
    %v1202 = vpop.f32.mrb[0].mxu0
    %1203 = vdwg.mxu0
    %1204 = vmatprep.subr.bf16.mxu0 %v655
    %1205 = vmatpush1.bf16.msra.mxu0 %v654
    %1206 = vmatprep.subr.bf16.mxu0 %v659
    %1207 = vmatpush1.bf16.msra.mxu0 %v658
    %1208 = vmatprep.subr.bf16.mxu0 %v663
    %1209 = vmatpush1.bf16.msra.mxu0 %v662
    %1210 = vmatprep.subr.bf16.mxu0 %v667
    %1211 = vmatpush1.bf16.msra.mxu0 %v666
    %1212 = vmatprep.subr.bf16.mxu0 %v671
    %1213 = vmatpush1.bf16.msra.mxu0 %v670
    %1214 = vmatprep.subr.bf16.mxu0 %v675
    %1215 = vmatpush1.bf16.msra.mxu0 %v674
    %1216 = vmatprep.subr.bf16.mxu0 %v679
    %1217 = vmatpush1.bf16.msra.mxu0 %v678
    %1218 = vmatprep.subr.bf16.mxu0 %v683
    %1219 = vmatpush1.bf16.msra.mxu0 %v682
    %1220 = vmatprep.subr.bf16.mxu0 0
    %1221 = vmatpush1.bf16.msra.mxu0 0
    %1222 = vmatprep.subr.bf16.mxu0 0
    %1223 = vmatpush1.bf16.msra.mxu0 0
    %1224 = vmatprep.subr.bf16.mxu0 0
    %1225 = vmatpush1.bf16.msra.mxu0 0
    %1226 = vmatprep.subr.bf16.mxu0 0
    %1227 = vmatpush1.bf16.msra.mxu0 0
    %1228 = vmatprep.subr.bf16.mxu0 0
    %1229 = vmatpush1.bf16.msra.mxu0 0
    %1230 = vmatprep.subr.bf16.mxu0 0
    %1231 = vmatpush1.bf16.msra.mxu0 0
    %1232 = vmatprep.subr.bf16.mxu0 0
    %1233 = vmatpush1.bf16.msra.mxu0 0
    %1234 = vmatprep.subr.bf16.mxu0 0
    %1235 = vmatpush1.bf16.msra.mxu0 0
    %1236 = vmatprep.mubr.bf16.mxu0 0
    %1237 = vmatmul.mubr.bf16.gmra.mrb[0].mxu0 %v1157
    %v1238 = vpop.f32.mrb[0].mxu0
    %v1239 = vadd.f32 0.0, %v1238
    %v1240 = vpop.f32.mrb[0].mxu0
    %v1241 = vadd.f32 0.0, %v1240
    %v1242 = vpop.f32.mrb[0].mxu0
    %v1243 = vpop.f32.mrb[0].mxu0
    %1244 = vdwg.mxu0
    %v1245 = vadd.f32 %v1159, %v1198
    %v1246 = vadd.f32 %v1160, %v1200
    %v1247 = vadd.f32 %v1161, %v1239
    %v1248 = vadd.f32 %v1162, %v1241
    %v1249 = vmul.f32 %v1245, 0.5
    %v1250 = vtanh.pop %v1249
    %v1251 = vmul.f32 %v1250, 0.5
    %v1252 = vadd.f32 %v1251, 0.5
    %v1253 = vmul.f32 %v1246, 0.5
    %v1254 = vtanh.pop %v1253
    %v1255 = vmul.f32 %v1254, 0.5
    %v1256 = vadd.f32 %v1255, 0.5
    %v1257 = vtanh.pop %v1247
    %v1258 = vmul.f32 %v1248, 0.5
    %v1259 = vtanh.pop %v1258
    %v1260 = vmul.f32 %v1259, 0.5
    %v1261 = vadd.f32 %v1260, 0.5
    %v1262 = vmul.f32 %v1256, %v1152
    %v1263 = vmul.f32 %v1252, %v1257
    %v1264 = vadd.f32 %v1262, %v1263
    %v1265 = vtanh.pop %v1264
    %v1266 = vmul.f32 %v1261, %v1265
    %s1267 = scalar_lea.vmem [#allocation3], 32
    %1268 = vst [vmem:[%s1267] sm:$0xff] %v1266
    %v1269 = vpack.c.bf16 %v1266, %v1266
    %s1270 = scalar_lea.vmem [#allocation2], 160
    %v1271 = vld [vmem:[%s1270] sm:$0xff]
    %v1272 = vld [vmem:[%s1270 + $0x8] sm:$0xff]
    %v1273 = vld [vmem:[%s1270 + $0x10] sm:$0xff]
    %v1274 = vld [vmem:[%s1270 + $0x18] sm:$0xff]
    %1275 = vmatprep.subr.bf16.mxu0 %v653
    %1276 = vmatpush1.bf16.msra.mxu0 %v652
    %1277 = vmatprep.subr.bf16.mxu0 %v657
    %1278 = vmatpush1.bf16.msra.mxu0 %v656
    %1279 = vmatprep.subr.bf16.mxu0 %v661
    %1280 = vmatpush1.bf16.msra.mxu0 %v660
    %1281 = vmatprep.subr.bf16.mxu0 %v665
    %1282 = vmatpush1.bf16.msra.mxu0 %v664
    %1283 = vmatprep.subr.bf16.mxu0 %v669
    %1284 = vmatpush1.bf16.msra.mxu0 %v668
    %1285 = vmatprep.subr.bf16.mxu0 %v673
    %1286 = vmatpush1.bf16.msra.mxu0 %v672
    %1287 = vmatprep.subr.bf16.mxu0 %v677
    %1288 = vmatpush1.bf16.msra.mxu0 %v676
    %1289 = vmatprep.subr.bf16.mxu0 %v681
    %1290 = vmatpush1.bf16.msra.mxu0 %v680
    %1291 = vmatprep.subr.bf16.mxu0 0
    %1292 = vmatpush1.bf16.msra.mxu0 0
    %1293 = vmatprep.subr.bf16.mxu0 0
    %1294 = vmatpush1.bf16.msra.mxu0 0
    %1295 = vmatprep.subr.bf16.mxu0 0
    %1296 = vmatpush1.bf16.msra.mxu0 0
    %1297 = vmatprep.subr.bf16.mxu0 0
    %1298 = vmatpush1.bf16.msra.mxu0 0
    %1299 = vmatprep.subr.bf16.mxu0 0
    %1300 = vmatpush1.bf16.msra.mxu0 0
    %1301 = vmatprep.subr.bf16.mxu0 0
    %1302 = vmatpush1.bf16.msra.mxu0 0
    %1303 = vmatprep.subr.bf16.mxu0 0
    %1304 = vmatpush1.bf16.msra.mxu0 0
    %1305 = vmatprep.subr.bf16.mxu0 0
    %1306 = vmatpush1.bf16.msra.mxu0 0
    %1307 = vmatprep.mubr.bf16.mxu0 0
    %1308 = vmatmul.mubr.bf16.gmra.mrb[0].mxu0 %v1269
    %v1309 = vpop.f32.mrb[0].mxu0
    %v1310 = vadd.f32 0.0, %v1309
    %v1311 = vpop.f32.mrb[0].mxu0
    %v1312 = vadd.f32 0.0, %v1311
    %v1313 = vpop.f32.mrb[0].mxu0
    %v1314 = vpop.f32.mrb[0].mxu0
    %1315 = vdwg.mxu0
    %1316 = vmatprep.subr.bf16.mxu0 %v655
    %1317 = vmatpush1.bf16.msra.mxu0 %v654
    %1318 = vmatprep.subr.bf16.mxu0 %v659
    %1319 = vmatpush1.bf16.msra.mxu0 %v658
    %1320 = vmatprep.subr.bf16.mxu0 %v663
    %1321 = vmatpush1.bf16.msra.mxu0 %v662
    %1322 = vmatprep.subr.bf16.mxu0 %v667
    %1323 = vmatpush1.bf16.msra.mxu0 %v666
    %1324 = vmatprep.subr.bf16.mxu0 %v671
    %1325 = vmatpush1.bf16.msra.mxu0 %v670
    %1326 = vmatprep.subr.bf16.mxu0 %v675
    %1327 = vmatpush1.bf16.msra.mxu0 %v674
    %1328 = vmatprep.subr.bf16.mxu0 %v679
    %1329 = vmatpush1.bf16.msra.mxu0 %v678
    %1330 = vmatprep.subr.bf16.mxu0 %v683
    %1331 = vmatpush1.bf16.msra.mxu0 %v682
    %1332 = vmatprep.subr.bf16.mxu0 0
    %1333 = vmatpush1.bf16.msra.mxu0 0
    %1334 = vmatprep.subr.bf16.mxu0 0
    %1335 = vmatpush1.bf16.msra.mxu0 0
    %1336 = vmatprep.subr.bf16.mxu0 0
    %1337 = vmatpush1.bf16.msra.mxu0 0
    %1338 = vmatprep.subr.bf16.mxu0 0
    %1339 = vmatpush1.bf16.msra.mxu0 0
    %1340 = vmatprep.subr.bf16.mxu0 0
    %1341 = vmatpush1.bf16.msra.mxu0 0
    %1342 = vmatprep.subr.bf16.mxu0 0
    %1343 = vmatpush1.bf16.msra.mxu0 0
    %1344 = vmatprep.subr.bf16.mxu0 0
    %1345 = vmatpush1.bf16.msra.mxu0 0
    %1346 = vmatprep.subr.bf16.mxu0 0
    %1347 = vmatpush1.bf16.msra.mxu0 0
    %1348 = vmatprep.mubr.bf16.mxu0 0
    %1349 = vmatmul.mubr.bf16.gmra.mrb[0].mxu0 %v1269
    %v1350 = vpop.f32.mrb[0].mxu0
    %v1351 = vadd.f32 0.0, %v1350
    %v1352 = vpop.f32.mrb[0].mxu0
    %v1353 = vadd.f32 0.0, %v1352
    %v1354 = vpop.f32.mrb[0].mxu0
    %v1355 = vpop.f32.mrb[0].mxu0
    %1356 = vdwg.mxu0
    %v1357 = vadd.f32 %v1271, %v1310
    %v1358 = vadd.f32 %v1272, %v1312
    %v1359 = vadd.f32 %v1273, %v1351
    %v1360 = vadd.f32 %v1274, %v1353
    %v1361 = vmul.f32 %v1357, 0.5
    %v1362 = vtanh.pop %v1361
    %v1363 = vmul.f32 %v1362, 0.5
    %v1364 = vadd.f32 %v1363, 0.5
    %v1365 = vmul.f32 %v1358, 0.5
    %v1366 = vtanh.pop %v1365
    %v1367 = vmul.f32 %v1366, 0.5
    %v1368 = vadd.f32 %v1367, 0.5
    %v1369 = vtanh.pop %v1359
    %v1370 = vmul.f32 %v1360, 0.5
    %v1371 = vtanh.pop %v1370
    %v1372 = vmul.f32 %v1371, 0.5
    %v1373 = vadd.f32 %v1372, 0.5
    %v1374 = vmul.f32 %v1368, %v1264
    %v1375 = vmul.f32 %v1364, %v1369
    %v1376 = vadd.f32 %v1374, %v1375
    %v1377 = vtanh.pop %v1376
    %v1378 = vmul.f32 %v1373, %v1377
    %s1379 = scalar_lea.vmem [#allocation3], 40
    %1380 = vst [vmem:[%s1379] sm:$0xff] %v1378
    %v1381 = vpack.c.bf16 %v1378, %v1378
    %s1382 = scalar_lea.vmem [#allocation2], 192
    %v1383 = vld [vmem:[%s1382] sm:$0xff]
    %v1384 = vld [vmem:[%s1382 + $0x8] sm:$0xff]
    %v1385 = vld [vmem:[%s1382 + $0x10] sm:$0xff]
    %v1386 = vld [vmem:[%s1382 + $0x18] sm:$0xff]
    %1387 = vmatprep.subr.bf16.mxu0 %v653
    %1388 = vmatpush1.bf16.msra.mxu0 %v652
    %1389 = vmatprep.subr.bf16.mxu0 %v657
    %1390 = vmatpush1.bf16.msra.mxu0 %v656
    %1391 = vmatprep.subr.bf16.mxu0 %v661
    %1392 = vmatpush1.bf16.msra.mxu0 %v660
    %1393 = vmatprep.subr.bf16.mxu0 %v665
    %1394 = vmatpush1.bf16.msra.mxu0 %v664
    %1395 = vmatprep.subr.bf16.mxu0 %v669
    %1396 = vmatpush1.bf16.msra.mxu0 %v668
    %1397 = vmatprep.subr.bf16.mxu0 %v673
    %1398 = vmatpush1.bf16.msra.mxu0 %v672
    %1399 = vmatprep.subr.bf16.mxu0 %v677
    %1400 = vmatpush1.bf16.msra.mxu0 %v676
    %1401 = vmatprep.subr.bf16.mxu0 %v681
    %1402 = vmatpush1.bf16.msra.mxu0 %v680
    %1403 = vmatprep.subr.bf16.mxu0 0
    %1404 = vmatpush1.bf16.msra.mxu0 0
    %1405 = vmatprep.subr.bf16.mxu0 0
    %1406 = vmatpush1.bf16.msra.mxu0 0
    %1407 = vmatprep.subr.bf16.mxu0 0
    %1408 = vmatpush1.bf16.msra.mxu0 0
    %1409 = vmatprep.subr.bf16.mxu0 0
    %1410 = vmatpush1.bf16.msra.mxu0 0
    %1411 = vmatprep.subr.bf16.mxu0 0
    %1412 = vmatpush1.bf16.msra.mxu0 0
    %1413 = vmatprep.subr.bf16.mxu0 0
    %1414 = vmatpush1.bf16.msra.mxu0 0
    %1415 = vmatprep.subr.bf16.mxu0 0
    %1416 = vmatpush1.bf16.msra.mxu0 0
    %1417 = vmatprep.subr.bf16.mxu0 0
    %1418 = vmatpush1.bf16.msra.mxu0 0
    %1419 = vmatprep.mubr.bf16.mxu0 0
    %1420 = vmatmul.mubr.bf16.gmra.mrb[0].mxu0 %v1381
    %v1421 = vpop.f32.mrb[0].mxu0
    %v1422 = vadd.f32 0.0, %v1421
    %v1423 = vpop.f32.mrb[0].mxu0
    %v1424 = vadd.f32 0.0, %v1423
    %v1425 = vpop.f32.mrb[0].mxu0
    %v1426 = vpop.f32.mrb[0].mxu0
    %1427 = vdwg.mxu0
    %1428 = vmatprep.subr.bf16.mxu0 %v655
    %1429 = vmatpush1.bf16.msra.mxu0 %v654
    %1430 = vmatprep.subr.bf16.mxu0 %v659
    %1431 = vmatpush1.bf16.msra.mxu0 %v658
    %1432 = vmatprep.subr.bf16.mxu0 %v663
    %1433 = vmatpush1.bf16.msra.mxu0 %v662
    %1434 = vmatprep.subr.bf16.mxu0 %v667
    %1435 = vmatpush1.bf16.msra.mxu0 %v666
    %1436 = vmatprep.subr.bf16.mxu0 %v671
    %1437 = vmatpush1.bf16.msra.mxu0 %v670
    %1438 = vmatprep.subr.bf16.mxu0 %v675
    %1439 = vmatpush1.bf16.msra.mxu0 %v674
    %1440 = vmatprep.subr.bf16.mxu0 %v679
    %1441 = vmatpush1.bf16.msra.mxu0 %v678
    %1442 = vmatprep.subr.bf16.mxu0 %v683
    %1443 = vmatpush1.bf16.msra.mxu0 %v682
    %1444 = vmatprep.subr.bf16.mxu0 0
    %1445 = vmatpush1.bf16.msra.mxu0 0
    %1446 = vmatprep.subr.bf16.mxu0 0
    %1447 = vmatpush1.bf16.msra.mxu0 0
    %1448 = vmatprep.subr.bf16.mxu0 0
    %1449 = vmatpush1.bf16.msra.mxu0 0
    %1450 = vmatprep.subr.bf16.mxu0 0
    %1451 = vmatpush1.bf16.msra.mxu0 0
    %1452 = vmatprep.subr.bf16.mxu0 0
    %1453 = vmatpush1.bf16.msra.mxu0 0
    %1454 = vmatprep.subr.bf16.mxu0 0
    %1455 = vmatpush1.bf16.msra.mxu0 0
    %1456 = vmatprep.subr.bf16.mxu0 0
    %1457 = vmatpush1.bf16.msra.mxu0 0
    %1458 = vmatprep.subr.bf16.mxu0 0
    %1459 = vmatpush1.bf16.msra.mxu0 0
    %1460 = vmatprep.mubr.bf16.mxu0 0
    %1461 = vmatmul.mubr.bf16.gmra.mrb[0].mxu0 %v1381
    %v1462 = vpop.f32.mrb[0].mxu0
    %v1463 = vadd.f32 0.0, %v1462
    %v1464 = vpop.f32.mrb[0].mxu0
    %v1465 = vadd.f32 0.0, %v1464
    %v1466 = vpop.f32.mrb[0].mxu0
    %v1467 = vpop.f32.mrb[0].mxu0
    %1468 = vdwg.mxu0
    %v1469 = vadd.f32 %v1383, %v1422
    %v1470 = vadd.f32 %v1384, %v1424
    %v1471 = vadd.f32 %v1385, %v1463
    %v1472 = vadd.f32 %v1386, %v1465
    %v1473 = vmul.f32 %v1469, 0.5
    %v1474 = vtanh.pop %v1473
    %v1475 = vmul.f32 %v1474, 0.5
    %v1476 = vadd.f32 %v1475, 0.5
    %v1477 = vmul.f32 %v1470, 0.5
    %v1478 = vtanh.pop %v1477
    %v1479 = vmul.f32 %v1478, 0.5
    %v1480 = vadd.f32 %v1479, 0.5
    %v1481 = vtanh.pop %v1471
    %v1482 = vmul.f32 %v1472, 0.5
    %v1483 = vtanh.pop %v1482
    %v1484 = vmul.f32 %v1483, 0.5
    %v1485 = vadd.f32 %v1484, 0.5
    %v1486 = vmul.f32 %v1480, %v1376
    %v1487 = vmul.f32 %v1476, %v1481
    %v1488 = vadd.f32 %v1486, %v1487
    %v1489 = vtanh.pop %v1488
    %v1490 = vmul.f32 %v1485, %v1489
    %s1491 = scalar_lea.vmem [#allocation3], 48
    %1492 = vst [vmem:[%s1491] sm:$0xff] %v1490
    %v1493 = vpack.c.bf16 %v1490, %v1490
    %s1494 = scalar_lea.vmem [#allocation2], 224
    %v1495 = vld [vmem:[%s1494] sm:$0xff]
    %v1496 = vld [vmem:[%s1494 + $0x8] sm:$0xff]
    %v1497 = vld [vmem:[%s1494 + $0x10] sm:$0xff]
    %v1498 = vld [vmem:[%s1494 + $0x18] sm:$0xff]
    %1499 = vmatprep.subr.bf16.mxu0 %v653
    %1500 = vmatpush1.bf16.msra.mxu0 %v652
    %1501 = vmatprep.subr.bf16.mxu0 %v657
    %1502 = vmatpush1.bf16.msra.mxu0 %v656
    %1503 = vmatprep.subr.bf16.mxu0 %v661
    %1504 = vmatpush1.bf16.msra.mxu0 %v660
    %1505 = vmatprep.subr.bf16.mxu0 %v665
    %1506 = vmatpush1.bf16.msra.mxu0 %v664
    %1507 = vmatprep.subr.bf16.mxu0 %v669
    %1508 = vmatpush1.bf16.msra.mxu0 %v668
    %1509 = vmatprep.subr.bf16.mxu0 %v673
    %1510 = vmatpush1.bf16.msra.mxu0 %v672
    %1511 = vmatprep.subr.bf16.mxu0 %v677
    %1512 = vmatpush1.bf16.msra.mxu0 %v676
    %1513 = vmatprep.subr.bf16.mxu0 %v681
    %1514 = vmatpush1.bf16.msra.mxu0 %v680
    %1515 = vmatprep.subr.bf16.mxu0 0
    %1516 = vmatpush1.bf16.msra.mxu0 0
    %1517 = vmatprep.subr.bf16.mxu0 0
    %1518 = vmatpush1.bf16.msra.mxu0 0
    %1519 = vmatprep.subr.bf16.mxu0 0
    %1520 = vmatpush1.bf16.msra.mxu0 0
    %1521 = vmatprep.subr.bf16.mxu0 0
    %1522 = vmatpush1.bf16.msra.mxu0 0
    %1523 = vmatprep.subr.bf16.mxu0 0
    %1524 = vmatpush1.bf16.msra.mxu0 0
    %1525 = vmatprep.subr.bf16.mxu0 0
    %1526 = vmatpush1.bf16.msra.mxu0 0
    %1527 = vmatprep.subr.bf16.mxu0 0
    %1528 = vmatpush1.bf16.msra.mxu0 0
    %1529 = vmatprep.subr.bf16.mxu0 0
    %1530 = vmatpush1.bf16.msra.mxu0 0
    %1531 = vmatprep.mubr.bf16.mxu0 0
    %1532 = vmatmul.mubr.bf16.gmra.mrb[0].mxu0 %v1493
    %v1533 = vpop.f32.mrb[0].mxu0
    %v1534 = vadd.f32 0.0, %v1533
    %v1535 = vpop.f32.mrb[0].mxu0
    %v1536 = vadd.f32 0.0, %v1535
    %v1537 = vpop.f32.mrb[0].mxu0
    %v1538 = vpop.f32.mrb[0].mxu0
    %1539 = vdwg.mxu0
    %1540 = vmatprep.subr.bf16.mxu0 %v655
    %1541 = vmatpush1.bf16.msra.mxu0 %v654
    %1542 = vmatprep.subr.bf16.mxu0 %v659
    %1543 = vmatpush1.bf16.msra.mxu0 %v658
    %1544 = vmatprep.subr.bf16.mxu0 %v663
    %1545 = vmatpush1.bf16.msra.mxu0 %v662
    %1546 = vmatprep.subr.bf16.mxu0 %v667
    %1547 = vmatpush1.bf16.msra.mxu0 %v666
    %1548 = vmatprep.subr.bf16.mxu0 %v671
    %1549 = vmatpush1.bf16.msra.mxu0 %v670
    %1550 = vmatprep.subr.bf16.mxu0 %v675
    %1551 = vmatpush1.bf16.msra.mxu0 %v674
    %1552 = vmatprep.subr.bf16.mxu0 %v679
    %1553 = vmatpush1.bf16.msra.mxu0 %v678
    %1554 = vmatprep.subr.bf16.mxu0 %v683
    %1555 = vmatpush1.bf16.msra.mxu0 %v682
    %1556 = vmatprep.subr.bf16.mxu0 0
    %1557 = vmatpush1.bf16.msra.mxu0 0
    %1558 = vmatprep.subr.bf16.mxu0 0
    %1559 = vmatpush1.bf16.msra.mxu0 0
    %1560 = vmatprep.subr.bf16.mxu0 0
    %1561 = vmatpush1.bf16.msra.mxu0 0
    %1562 = vmatprep.subr.bf16.mxu0 0
    %1563 = vmatpush1.bf16.msra.mxu0 0
    %1564 = vmatprep.subr.bf16.mxu0 0
    %1565 = vmatpush1.bf16.msra.mxu0 0
    %1566 = vmatprep.subr.bf16.mxu0 0
    %1567 = vmatpush1.bf16.msra.mxu0 0
    %1568 = vmatprep.subr.bf16.mxu0 0
    %1569 = vmatpush1.bf16.msra.mxu0 0
    %1570 = vmatprep.subr.bf16.mxu0 0
    %1571 = vmatpush1.bf16.msra.mxu0 0
    %1572 = vmatprep.mubr.bf16.mxu0 0
    %1573 = vmatmul.mubr.bf16.gmra.mrb[0].mxu0 %v1493
    %v1574 = vpop.f32.mrb[0].mxu0
    %v1575 = vadd.f32 0.0, %v1574
    %v1576 = vpop.f32.mrb[0].mxu0
    %v1577 = vadd.f32 0.0, %v1576
    %v1578 = vpop.f32.mrb[0].mxu0
    %v1579 = vpop.f32.mrb[0].mxu0
    %1580 = vdwg.mxu0
    %v1581 = vadd.f32 %v1495, %v1534
    %v1582 = vadd.f32 %v1496, %v1536
    %v1583 = vadd.f32 %v1497, %v1575
    %v1584 = vadd.f32 %v1498, %v1577
    %v1585 = vmul.f32 %v1581, 0.5
    %v1586 = vtanh.pop %v1585
    %v1587 = vmul.f32 %v1586, 0.5
    %v1588 = vadd.f32 %v1587, 0.5
    %v1589 = vmul.f32 %v1582, 0.5
    %v1590 = vtanh.pop %v1589
    %v1591 = vmul.f32 %v1590, 0.5
    %v1592 = vadd.f32 %v1591, 0.5
    %v1593 = vtanh.pop %v1583
    %v1594 = vmul.f32 %v1584, 0.5
    %v1595 = vtanh.pop %v1594
    %v1596 = vmul.f32 %v1595, 0.5
    %v1597 = vadd.f32 %v1596, 0.5
    %v1598 = vmul.f32 %v1592, %v1488
    %v1599 = vmul.f32 %v1588, %v1593
    %v1600 = vadd.f32 %v1598, %v1599
    %v1601 = vtanh.pop %v1600
    %v1602 = vmul.f32 %v1597, %v1601
    %s1603 = scalar_lea.vmem [#allocation3], 56
    %1604 = vst [vmem:[%s1603] sm:$0xff] %v1602
    %v1605 = vld [vmem:[#allocation3] sm:$0xff]
    %v1606 = vld [vmem:[#allocation3 + $0x8] sm:$0xff]
    %v1607 = vld [vmem:[#allocation3 + $0x10] sm:$0xff]
    %v1608 = vld [vmem:[#allocation3 + $0x18] sm:$0xff]
    %v1609 = vld [vmem:[#allocation3 + $0x20] sm:$0xff]
    %v1610 = vld [vmem:[#allocation3 + $0x28] sm:$0xff]
    %v1611 = vld [vmem:[#allocation3 + $0x30] sm:$0xff]
    %v1612 = vld [vmem:[#allocation3 + $0x38] sm:$0xff]
    %v1613 = vpack.c.bf16 %v1606, %v1605
    %v1614 = vpack.c.bf16 %v1608, %v1607
    %v1615 = vpack.c.bf16 %v1610, %v1609
    %v1616 = vpack.c.bf16 %v1612, %v1611
    %v1617 = vld [vmem:[#allocation10] sm:$0xff]
    %v1618 = vld [vmem:[#allocation10 + $0x8] sm:$0xff]
    %v1619 = vld [vmem:[#allocation10 + $0x10] sm:$0xff]
    %v1620 = vld [vmem:[#allocation10 + $0x18] sm:$0xff]
    %v1621 = vld [vmem:[#allocation10 + $0x20] sm:$0xff]
    %v1622 = vld [vmem:[#allocation10 + $0x28] sm:$0xff]
    %v1623 = vld [vmem:[#allocation10 + $0x30] sm:$0xff]
    %v1624 = vld [vmem:[#allocation10 + $0x38] sm:$0xff]
    %v1625 = vld [vmem:[#allocation10 + $0x40] sm:$0xff]
    %v1626 = vld [vmem:[#allocation10 + $0x48] sm:$0xff]
    %v1627 = vld [vmem:[#allocation10 + $0x50] sm:$0xff]
    %v1628 = vld [vmem:[#allocation10 + $0x58] sm:$0xff]
    %v1629 = vld [vmem:[#allocation10 + $0x60] sm:$0xff]
    %v1630 = vld [vmem:[#allocation10 + $0x68] sm:$0xff]
    %v1631 = vld [vmem:[#allocation10 + $0x70] sm:$0xff]
    %v1632 = vld [vmem:[#allocation10 + $0x78] sm:$0xff]
    %v1633 = vld [vmem:[#allocation10 + $0x80] sm:$0xff]
    %v1634 = vld [vmem:[#allocation10 + $0x88] sm:$0xff]
    %v1635 = vld [vmem:[#allocation10 + $0x90] sm:$0xff]
    %v1636 = vld [vmem:[#allocation10 + $0x98] sm:$0xff]
    %v1637 = vld [vmem:[#allocation10 + $0xa0] sm:$0xff]
    %v1638 = vld [vmem:[#allocation10 + $0xa8] sm:$0xff]
    %v1639 = vld [vmem:[#allocation10 + $0xb0] sm:$0xff]
    %v1640 = vld [vmem:[#allocation10 + $0xb8] sm:$0xff]
    %v1641 = vld [vmem:[#allocation10 + $0xc0] sm:$0xff]
    %v1642 = vld [vmem:[#allocation10 + $0xc8] sm:$0xff]
    %v1643 = vld [vmem:[#allocation10 + $0xd0] sm:$0xff]
    %v1644 = vld [vmem:[#allocation10 + $0xd8] sm:$0xff]
    %v1645 = vld [vmem:[#allocation10 + $0xe0] sm:$0xff]
    %v1646 = vld [vmem:[#allocation10 + $0xe8] sm:$0xff]
    %v1647 = vld [vmem:[#allocation10 + $0xf0] sm:$0xff]
    %v1648 = vld [vmem:[#allocation10 + $0xf8] sm:$0xff]
    %v1649 = vld [vmem:[%s6] sm:$0xf]
    %v1651 = vlaneseq
    %v1652 = vshrl.u32 %v1651, 7
    %v1653 = vsub.s32 0, %v1652
    %v1654 = vrot.slane %v1649, %v1653
    %v1655 = vlaneseq
    %v1656 = vshrl.u32 %v1655, 7
    %v1657 = vsub.s32 1, %v1656
    %v1658 = vrot.slane %v1649, %v1657
    %v1659 = vlaneseq
    %v1660 = vshrl.u32 %v1659, 7
    %v1661 = vsub.s32 2, %v1660
    %v1662 = vrot.slane %v1649, %v1661
    %v1663 = vlaneseq
    %v1664 = vshrl.u32 %v1663, 7
    %v1665 = vsub.s32 3, %v1664
    %v1666 = vrot.slane %v1649, %v1665
    %v1703 = vunpack.c.l.b16 %v1617
    %v1704 = vunpack.c.h.b16 %v1617
    %v1705 = vunpack.c.l.b16 %v1618
    %v1706 = vunpack.c.h.b16 %v1618
    %v1707 = vunpack.c.l.b16 %v1619
    %v1708 = vunpack.c.h.b16 %v1619
    %v1709 = vunpack.c.l.b16 %v1620
    %v1710 = vunpack.c.h.b16 %v1620
    %v1711 = vunpack.c.l.b16 %v1621
    %v1712 = vunpack.c.h.b16 %v1621
    %v1713 = vunpack.c.l.b16 %v1622
    %v1714 = vunpack.c.h.b16 %v1622
    %v1715 = vunpack.c.l.b16 %v1623
    %v1716 = vunpack.c.h.b16 %v1623
    %v1717 = vunpack.c.l.b16 %v1624
    %v1718 = vunpack.c.h.b16 %v1624
    %v1719 = vunpack.c.l.b16 %v1625
    %v1720 = vunpack.c.h.b16 %v1625
    %v1721 = vunpack.c.l.b16 %v1626
    %v1722 = vunpack.c.h.b16 %v1626
    %v1723 = vunpack.c.l.b16 %v1627
    %v1724 = vunpack.c.h.b16 %v1627
    %v1725 = vunpack.c.l.b16 %v1628
    %v1726 = vunpack.c.h.b16 %v1628
    %v1727 = vunpack.c.l.b16 %v1629
    %v1728 = vunpack.c.h.b16 %v1629
    %v1729 = vunpack.c.l.b16 %v1630
    %v1730 = vunpack.c.h.b16 %v1630
    %v1731 = vunpack.c.l.b16 %v1631
    %v1732 = vunpack.c.h.b16 %v1631
    %v1733 = vunpack.c.l.b16 %v1632
    %v1734 = vunpack.c.h.b16 %v1632
    %v1735 = vunpack.c.l.b16 %v1633
    %v1736 = vunpack.c.h.b16 %v1633
    %v1737 = vunpack.c.l.b16 %v1634
    %v1738 = vunpack.c.h.b16 %v1634
    %v1739 = vunpack.c.l.b16 %v1635
    %v1740 = vunpack.c.h.b16 %v1635
    %v1741 = vunpack.c.l.b16 %v1636
    %v1742 = vunpack.c.h.b16 %v1636
    %v1743 = vunpack.c.l.b16 %v1637
    %v1744 = vunpack.c.h.b16 %v1637
    %v1745 = vunpack.c.l.b16 %v1638
    %v1746 = vunpack.c.h.b16 %v1638
    %v1747 = vunpack.c.l.b16 %v1639
    %v1748 = vunpack.c.h.b16 %v1639
    %v1749 = vunpack.c.l.b16 %v1640
    %v1750 = vunpack.c.h.b16 %v1640
    %v1751 = vunpack.c.l.b16 %v1641
    %v1752 = vunpack.c.h.b16 %v1641
    %v1753 = vunpack.c.l.b16 %v1642
    %v1754 = vunpack.c.h.b16 %v1642
    %v1755 = vunpack.c.l.b16 %v1643
    %v1756 = vunpack.c.h.b16 %v1643
    %v1757 = vunpack.c.l.b16 %v1644
    %v1758 = vunpack.c.h.b16 %v1644
    %v1759 = vunpack.c.l.b16 %v1645
    %v1760 = vunpack.c.h.b16 %v1645
    %v1761 = vunpack.c.l.b16 %v1646
    %v1762 = vunpack.c.h.b16 %v1646
    %v1763 = vunpack.c.l.b16 %v1647
    %v1764 = vunpack.c.h.b16 %v1647
    %v1765 = vunpack.c.l.b16 %v1648
    %v1766 = vunpack.c.h.b16 %v1648
    %v1767 = vpack.c.b16 %v1707, %v1703
    %v1768 = vpack.c.b16 %v1708, %v1704
    %v1769 = vpack.c.b16 %v1709, %v1705
    %v1770 = vpack.c.b16 %v1710, %v1706
    %v1771 = vpack.c.b16 %v1715, %v1711
    %v1772 = vpack.c.b16 %v1716, %v1712
    %v1773 = vpack.c.b16 %v1717, %v1713
    %v1774 = vpack.c.b16 %v1718, %v1714
    %v1775 = vpack.c.b16 %v1723, %v1719
    %v1776 = vpack.c.b16 %v1724, %v1720
    %v1777 = vpack.c.b16 %v1725, %v1721
    %v1778 = vpack.c.b16 %v1726, %v1722
    %v1779 = vpack.c.b16 %v1731, %v1727
    %v1780 = vpack.c.b16 %v1732, %v1728
    %v1781 = vpack.c.b16 %v1733, %v1729
    %v1782 = vpack.c.b16 %v1734, %v1730
    %v1783 = vpack.c.b16 %v1739, %v1735
    %v1784 = vpack.c.b16 %v1740, %v1736
    %v1785 = vpack.c.b16 %v1741, %v1737
    %v1786 = vpack.c.b16 %v1742, %v1738
    %v1787 = vpack.c.b16 %v1747, %v1743
    %v1788 = vpack.c.b16 %v1748, %v1744
    %v1789 = vpack.c.b16 %v1749, %v1745
    %v1790 = vpack.c.b16 %v1750, %v1746
    %v1791 = vpack.c.b16 %v1755, %v1751
    %v1792 = vpack.c.b16 %v1756, %v1752
    %v1793 = vpack.c.b16 %v1757, %v1753
    %v1794 = vpack.c.b16 %v1758, %v1754
    %v1795 = vpack.c.b16 %v1763, %v1759
    %v1796 = vpack.c.b16 %v1764, %v1760
    %v1797 = vpack.c.b16 %v1765, %v1761
    %v1798 = vpack.c.b16 %v1766, %v1762
    %1831 = vmatprep.subr.bf16.mxu0 %v1768
    %1832 = vmatpush1.bf16.msra.mxu0 %v1767
    %1833 = vmatprep.subr.bf16.mxu0 %v1772
    %1834 = vmatpush1.bf16.msra.mxu0 %v1771
    %1835 = vmatprep.subr.bf16.mxu0 %v1776
    %1836 = vmatpush1.bf16.msra.mxu0 %v1775
    %1837 = vmatprep.subr.bf16.mxu0 %v1780
    %1838 = vmatpush1.bf16.msra.mxu0 %v1779
    %1839 = vmatprep.subr.bf16.mxu0 %v1784
    %1840 = vmatpush1.bf16.msra.mxu0 %v1783
    %1841 = vmatprep.subr.bf16.mxu0 %v1788
    %1842 = vmatpush1.bf16.msra.mxu0 %v1787
    %1843 = vmatprep.subr.bf16.mxu0 %v1792
    %1844 = vmatpush1.bf16.msra.mxu0 %v1791
    %1845 = vmatprep.subr.bf16.mxu0 %v1796
    %1846 = vmatpush1.bf16.msra.mxu0 %v1795
    %1847 = vmatprep.subr.bf16.mxu0 0
    %1848 = vmatpush1.bf16.msra.mxu0 0
    %1849 = vmatprep.subr.bf16.mxu0 0
    %1850 = vmatpush1.bf16.msra.mxu0 0
    %1851 = vmatprep.subr.bf16.mxu0 0
    %1852 = vmatpush1.bf16.msra.mxu0 0
    %1853 = vmatprep.subr.bf16.mxu0 0
    %1854 = vmatpush1.bf16.msra.mxu0 0
    %1855 = vmatprep.subr.bf16.mxu0 0
    %1856 = vmatpush1.bf16.msra.mxu0 0
    %1857 = vmatprep.subr.bf16.mxu0 0
    %1858 = vmatpush1.bf16.msra.mxu0 0
    %1859 = vmatprep.subr.bf16.mxu0 0
    %1860 = vmatpush1.bf16.msra.mxu0 0
    %1861 = vmatprep.subr.bf16.mxu0 0
    %1862 = vmatpush1.bf16.msra.mxu0 0
    %1863 = vmatprep.mubr.bf16.mxu0 0
    %1864 = vmatmul.mubr.bf16.gmra.mrb[0].mxu0 %v1613
    %v1865 = vpop.f32.mrb[0].mxu0
    %v1866 = vadd.f32 %v1654, %v1865
    %v1867 = vpop.f32.mrb[0].mxu0
    %v1868 = vadd.f32 %v1658, %v1867
    %v1869 = vpop.f32.mrb[0].mxu0
    %v1870 = vadd.f32 %v1654, %v1869
    %v1871 = vpop.f32.mrb[0].mxu0
    %v1872 = vadd.f32 %v1658, %v1871
    %1873 = vmatprep.mubr.bf16.mxu0 0
    %1874 = vmatmul.mubr.bf16.gmra.mrb[0].mxu0 %v1614
    %v1875 = vpop.f32.mrb[0].mxu0
    %v1876 = vadd.f32 %v1654, %v1875
    %v1877 = vpop.f32.mrb[0].mxu0
    %v1878 = vadd.f32 %v1658, %v1877
    %v1879 = vpop.f32.mrb[0].mxu0
    %v1880 = vadd.f32 %v1654, %v1879
    %v1881 = vpop.f32.mrb[0].mxu0
    %v1882 = vadd.f32 %v1658, %v1881
    %1883 = vmatprep.mubr.bf16.mxu0 0
    %1884 = vmatmul.mubr.bf16.gmra.mrb[0].mxu0 %v1615
    %v1885 = vpop.f32.mrb[0].mxu0
    %v1886 = vadd.f32 %v1654, %v1885
    %v1887 = vpop.f32.mrb[0].mxu0
    %v1888 = vadd.f32 %v1658, %v1887
    %v1889 = vpop.f32.mrb[0].mxu0
    %v1890 = vadd.f32 %v1654, %v1889
    %v1891 = vpop.f32.mrb[0].mxu0
    %v1892 = vadd.f32 %v1658, %v1891
    %1893 = vmatprep.mubr.bf16.mxu0 0
    %1894 = vmatmul.mubr.bf16.gmra.mrb[0].mxu0 %v1616
    %v1895 = vpop.f32.mrb[0].mxu0
    %v1896 = vadd.f32 %v1654, %v1895
    %v1897 = vpop.f32.mrb[0].mxu0
    %v1898 = vadd.f32 %v1658, %v1897
    %v1899 = vpop.f32.mrb[0].mxu0
    %v1900 = vadd.f32 %v1654, %v1899
    %v1901 = vpop.f32.mrb[0].mxu0
    %v1902 = vadd.f32 %v1658, %v1901
    %1903 = vdwg.mxu0
    %1904 = vmatprep.subr.bf16.mxu0 %v1770
    %1905 = vmatpush1.bf16.msra.mxu0 %v1769
    %1906 = vmatprep.subr.bf16.mxu0 %v1774
    %1907 = vmatpush1.bf16.msra.mxu0 %v1773
    %1908 = vmatprep.subr.bf16.mxu0 %v1778
    %1909 = vmatpush1.bf16.msra.mxu0 %v1777
    %1910 = vmatprep.subr.bf16.mxu0 %v1782
    %1911 = vmatpush1.bf16.msra.mxu0 %v1781
    %1912 = vmatprep.subr.bf16.mxu0 %v1786
    %1913 = vmatpush1.bf16.msra.mxu0 %v1785
    %1914 = vmatprep.subr.bf16.mxu0 %v1790
    %1915 = vmatpush1.bf16.msra.mxu0 %v1789
    %1916 = vmatprep.subr.bf16.mxu0 %v1794
    %1917 = vmatpush1.bf16.msra.mxu0 %v1793
    %1918 = vmatprep.subr.bf16.mxu0 %v1798
    %1919 = vmatpush1.bf16.msra.mxu0 %v1797
    %1920 = vmatprep.subr.bf16.mxu0 0
    %1921 = vmatpush1.bf16.msra.mxu0 0
    %1922 = vmatprep.subr.bf16.mxu0 0
    %1923 = vmatpush1.bf16.msra.mxu0 0
    %1924 = vmatprep.subr.bf16.mxu0 0
    %1925 = vmatpush1.bf16.msra.mxu0 0
    %1926 = vmatprep.subr.bf16.mxu0 0
    %1927 = vmatpush1.bf16.msra.mxu0 0
    %1928 = vmatprep.subr.bf16.mxu0 0
    %1929 = vmatpush1.bf16.msra.mxu0 0
    %1930 = vmatprep.subr.bf16.mxu0 0
    %1931 = vmatpush1.bf16.msra.mxu0 0
    %1932 = vmatprep.subr.bf16.mxu0 0
    %1933 = vmatpush1.bf16.msra.mxu0 0
    %1934 = vmatprep.subr.bf16.mxu0 0
    %1935 = vmatpush1.bf16.msra.mxu0 0
    %1936 = vmatprep.mubr.bf16.mxu0 0
    %1937 = vmatmul.mubr.bf16.gmra.mrb[0].mxu0 %v1613
    %v1938 = vpop.f32.mrb[0].mxu0
    %v1939 = vadd.f32 %v1662, %v1938
    %v1940 = vpop.f32.mrb[0].mxu0
    %v1941 = vadd.f32 %v1666, %v1940
    %v1942 = vpop.f32.mrb[0].mxu0
    %v1943 = vadd.f32 %v1662, %v1942
    %v1944 = vpop.f32.mrb[0].mxu0
    %v1945 = vadd.f32 %v1666, %v1944
    %1946 = vmatprep.mubr.bf16.mxu0 0
    %1947 = vmatmul.mubr.bf16.gmra.mrb[0].mxu0 %v1614
    %v1948 = vpop.f32.mrb[0].mxu0
    %v1949 = vadd.f32 %v1662, %v1948
    %v1950 = vpop.f32.mrb[0].mxu0
    %v1951 = vadd.f32 %v1666, %v1950
    %v1952 = vpop.f32.mrb[0].mxu0
    %v1953 = vadd.f32 %v1662, %v1952
    %v1954 = vpop.f32.mrb[0].mxu0
    %v1955 = vadd.f32 %v1666, %v1954
    %1956 = vmatprep.mubr.bf16.mxu0 0
    %1957 = vmatmul.mubr.bf16.gmra.mrb[0].mxu0 %v1615
    %v1958 = vpop.f32.mrb[0].mxu0
    %v1959 = vadd.f32 %v1662, %v1958
    %v1960 = vpop.f32.mrb[0].mxu0
    %v1961 = vadd.f32 %v1666, %v1960
    %v1962 = vpop.f32.mrb[0].mxu0
    %v1963 = vadd.f32 %v1662, %v1962
    %v1964 = vpop.f32.mrb[0].mxu0
    %v1965 = vadd.f32 %v1666, %v1964
    %1966 = vmatprep.mubr.bf16.mxu0 0
    %1967 = vmatmul.mubr.bf16.gmra.mrb[0].mxu0 %v1616
    %v1968 = vpop.f32.mrb[0].mxu0
    %v1969 = vadd.f32 %v1662, %v1968
    %v1970 = vpop.f32.mrb[0].mxu0
    %v1971 = vadd.f32 %v1666, %v1970
    %v1972 = vpop.f32.mrb[0].mxu0
    %v1973 = vadd.f32 %v1662, %v1972
    %v1974 = vpop.f32.mrb[0].mxu0
    %v1975 = vadd.f32 %v1666, %v1974
    %1976 = vdwg.mxu0
    %1977 = vst [vmem:[#allocation2] sm:$0xff] %v1866
    %1978 = vst [vmem:[#allocation2 + $0x8] sm:$0xff] %v1868
    %1979 = vst [vmem:[#allocation2 + $0x10] sm:$0xff] %v1939
    %1980 = vst [vmem:[#allocation2 + $0x18] sm:$0xff] %v1941
    %1981 = vst [vmem:[#allocation2 + $0x20] sm:$0xff] %v1870
    %1982 = vst [vmem:[#allocation2 + $0x28] sm:$0xff] %v1872
    %1983 = vst [vmem:[#allocation2 + $0x30] sm:$0xff] %v1943
    %1984 = vst [vmem:[#allocation2 + $0x38] sm:$0xff] %v1945
    %1985 = vst [vmem:[#allocation2 + $0x40] sm:$0xff] %v1876
    %1986 = vst [vmem:[#allocation2 + $0x48] sm:$0xff] %v1878
    %1987 = vst [vmem:[#allocation2 + $0x50] sm:$0xff] %v1949
    %1988 = vst [vmem:[#allocation2 + $0x58] sm:$0xff] %v1951
    %1989 = vst [vmem:[#allocation2 + $0x60] sm:$0xff] %v1880
    %1990 = vst [vmem:[#allocation2 + $0x68] sm:$0xff] %v1882
    %1991 = vst [vmem:[#allocation2 + $0x70] sm:$0xff] %v1953
    %1992 = vst [vmem:[#allocation2 + $0x78] sm:$0xff] %v1955
    %1993 = vst [vmem:[#allocation2 + $0x80] sm:$0xff] %v1886
    %1994 = vst [vmem:[#allocation2 + $0x88] sm:$0xff] %v1888
    %1995 = vst [vmem:[#allocation2 + $0x90] sm:$0xff] %v1959
    %1996 = vst [vmem:[#allocation2 + $0x98] sm:$0xff] %v1961
    %1997 = vst [vmem:[#allocation2 + $0xa0] sm:$0xff] %v1890
    %1998 = vst [vmem:[#allocation2 + $0xa8] sm:$0xff] %v1892
    %1999 = vst [vmem:[#allocation2 + $0xb0] sm:$0xff] %v1963
    %2000 = vst [vmem:[#allocation2 + $0xb8] sm:$0xff] %v1965
    %2001 = vst [vmem:[#allocation2 + $0xc0] sm:$0xff] %v1896
    %2002 = vst [vmem:[#allocation2 + $0xc8] sm:$0xff] %v1898
    %2003 = vst [vmem:[#allocation2 + $0xd0] sm:$0xff] %v1969
    %2004 = vst [vmem:[#allocation2 + $0xd8] sm:$0xff] %v1971
    %2005 = vst [vmem:[#allocation2 + $0xe0] sm:$0xff] %v1900
    %2006 = vst [vmem:[#allocation2 + $0xe8] sm:$0xff] %v1902
    %2007 = vst [vmem:[#allocation2 + $0xf0] sm:$0xff] %v1973
    %2008 = vst [vmem:[#allocation2 + $0xf8] sm:$0xff] %v1975
    %v2009 = vld [vmem:[#allocation12] sm:$0xff]
    %v2010 = vld [vmem:[#allocation12 + $0x8] sm:$0xff]
    %v2011 = vld [vmem:[#allocation12 + $0x10] sm:$0xff]
    %v2012 = vld [vmem:[#allocation12 + $0x18] sm:$0xff]
    %v2013 = vld [vmem:[#allocation12 + $0x20] sm:$0xff]
    %v2014 = vld [vmem:[#allocation12 + $0x28] sm:$0xff]
    %v2015 = vld [vmem:[#allocation12 + $0x30] sm:$0xff]
    %v2016 = vld [vmem:[#allocation12 + $0x38] sm:$0xff]
    %v2017 = vld [vmem:[#allocation12 + $0x40] sm:$0xff]
    %v2018 = vld [vmem:[#allocation12 + $0x48] sm:$0xff]
    %v2019 = vld [vmem:[#allocation12 + $0x50] sm:$0xff]
    %v2020 = vld [vmem:[#allocation12 + $0x58] sm:$0xff]
    %v2021 = vld [vmem:[#allocation12 + $0x60] sm:$0xff]
    %v2022 = vld [vmem:[#allocation12 + $0x68] sm:$0xff]
    %v2023 = vld [vmem:[#allocation12 + $0x70] sm:$0xff]
    %v2024 = vld [vmem:[#allocation12 + $0x78] sm:$0xff]
    %v2025 = vld [vmem:[#allocation12 + $0x80] sm:$0xff]
    %v2026 = vld [vmem:[#allocation12 + $0x88] sm:$0xff]
    %v2027 = vld [vmem:[#allocation12 + $0x90] sm:$0xff]
    %v2028 = vld [vmem:[#allocation12 + $0x98] sm:$0xff]
    %v2029 = vld [vmem:[#allocation12 + $0xa0] sm:$0xff]
    %v2030 = vld [vmem:[#allocation12 + $0xa8] sm:$0xff]
    %v2031 = vld [vmem:[#allocation12 + $0xb0] sm:$0xff]
    %v2032 = vld [vmem:[#allocation12 + $0xb8] sm:$0xff]
    %v2033 = vld [vmem:[#allocation12 + $0xc0] sm:$0xff]
    %v2034 = vld [vmem:[#allocation12 + $0xc8] sm:$0xff]
    %v2035 = vld [vmem:[#allocation12 + $0xd0] sm:$0xff]
    %v2036 = vld [vmem:[#allocation12 + $0xd8] sm:$0xff]
    %v2037 = vld [vmem:[#allocation12 + $0xe0] sm:$0xff]
    %v2038 = vld [vmem:[#allocation12 + $0xe8] sm:$0xff]
    %v2039 = vld [vmem:[#allocation12 + $0xf0] sm:$0xff]
    %v2040 = vld [vmem:[#allocation12 + $0xf8] sm:$0xff]
    %v2041 = vld [vmem:[#allocation2] sm:$0xff]
    %v2042 = vld [vmem:[#allocation2 + $0x8] sm:$0xff]
    %v2043 = vld [vmem:[#allocation2 + $0x10] sm:$0xff]
    %v2044 = vld [vmem:[#allocation2 + $0x18] sm:$0xff]
    %v2077 = vunpack.c.l.b16 %v2009
    %v2078 = vunpack.c.h.b16 %v2009
    %v2079 = vunpack.c.l.b16 %v2010
    %v2080 = vunpack.c.h.b16 %v2010
    %v2081 = vunpack.c.l.b16 %v2011
    %v2082 = vunpack.c.h.b16 %v2011
    %v2083 = vunpack.c.l.b16 %v2012
    %v2084 = vunpack.c.h.b16 %v2012
    %v2085 = vunpack.c.l.b16 %v2013
    %v2086 = vunpack.c.h.b16 %v2013
    %v2087 = vunpack.c.l.b16 %v2014
    %v2088 = vunpack.c.h.b16 %v2014
    %v2089 = vunpack.c.l.b16 %v2015
    %v2090 = vunpack.c.h.b16 %v2015
    %v2091 = vunpack.c.l.b16 %v2016
    %v2092 = vunpack.c.h.b16 %v2016
    %v2093 = vunpack.c.l.b16 %v2017
    %v2094 = vunpack.c.h.b16 %v2017
    %v2095 = vunpack.c.l.b16 %v2018
    %v2096 = vunpack.c.h.b16 %v2018
    %v2097 = vunpack.c.l.b16 %v2019
    %v2098 = vunpack.c.h.b16 %v2019
    %v2099 = vunpack.c.l.b16 %v2020
    %v2100 = vunpack.c.h.b16 %v2020
    %v2101 = vunpack.c.l.b16 %v2021
    %v2102 = vunpack.c.h.b16 %v2021
    %v2103 = vunpack.c.l.b16 %v2022
    %v2104 = vunpack.c.h.b16 %v2022
    %v2105 = vunpack.c.l.b16 %v2023
    %v2106 = vunpack.c.h.b16 %v2023
    %v2107 = vunpack.c.l.b16 %v2024
    %v2108 = vunpack.c.h.b16 %v2024
    %v2109 = vunpack.c.l.b16 %v2025
    %v2110 = vunpack.c.h.b16 %v2025
    %v2111 = vunpack.c.l.b16 %v2026
    %v2112 = vunpack.c.h.b16 %v2026
    %v2113 = vunpack.c.l.b16 %v2027
    %v2114 = vunpack.c.h.b16 %v2027
    %v2115 = vunpack.c.l.b16 %v2028
    %v2116 = vunpack.c.h.b16 %v2028
    %v2117 = vunpack.c.l.b16 %v2029
    %v2118 = vunpack.c.h.b16 %v2029
    %v2119 = vunpack.c.l.b16 %v2030
    %v2120 = vunpack.c.h.b16 %v2030
    %v2121 = vunpack.c.l.b16 %v2031
    %v2122 = vunpack.c.h.b16 %v2031
    %v2123 = vunpack.c.l.b16 %v2032
    %v2124 = vunpack.c.h.b16 %v2032
    %v2125 = vunpack.c.l.b16 %v2033
    %v2126 = vunpack.c.h.b16 %v2033
    %v2127 = vunpack.c.l.b16 %v2034
    %v2128 = vunpack.c.h.b16 %v2034
    %v2129 = vunpack.c.l.b16 %v2035
    %v2130 = vunpack.c.h.b16 %v2035
    %v2131 = vunpack.c.l.b16 %v2036
    %v2132 = vunpack.c.h.b16 %v2036
    %v2133 = vunpack.c.l.b16 %v2037
    %v2134 = vunpack.c.h.b16 %v2037
    %v2135 = vunpack.c.l.b16 %v2038
    %v2136 = vunpack.c.h.b16 %v2038
    %v2137 = vunpack.c.l.b16 %v2039
    %v2138 = vunpack.c.h.b16 %v2039
    %v2139 = vunpack.c.l.b16 %v2040
    %v2140 = vunpack.c.h.b16 %v2040
    %v2141 = vpack.c.b16 %v2081, %v2077
    %v2142 = vpack.c.b16 %v2082, %v2078
    %v2143 = vpack.c.b16 %v2083, %v2079
    %v2144 = vpack.c.b16 %v2084, %v2080
    %v2145 = vpack.c.b16 %v2089, %v2085
    %v2146 = vpack.c.b16 %v2090, %v2086
    %v2147 = vpack.c.b16 %v2091, %v2087
    %v2148 = vpack.c.b16 %v2092, %v2088
    %v2149 = vpack.c.b16 %v2097, %v2093
    %v2150 = vpack.c.b16 %v2098, %v2094
    %v2151 = vpack.c.b16 %v2099, %v2095
    %v2152 = vpack.c.b16 %v2100, %v2096
    %v2153 = vpack.c.b16 %v2105, %v2101
    %v2154 = vpack.c.b16 %v2106, %v2102
    %v2155 = vpack.c.b16 %v2107, %v2103
    %v2156 = vpack.c.b16 %v2108, %v2104
    %v2157 = vpack.c.b16 %v2113, %v2109
    %v2158 = vpack.c.b16 %v2114, %v2110
    %v2159 = vpack.c.b16 %v2115, %v2111
    %v2160 = vpack.c.b16 %v2116, %v2112
    %v2161 = vpack.c.b16 %v2121, %v2117
    %v2162 = vpack.c.b16 %v2122, %v2118
    %v2163 = vpack.c.b16 %v2123, %v2119
    %v2164 = vpack.c.b16 %v2124, %v2120
    %v2165 = vpack.c.b16 %v2129, %v2125
    %v2166 = vpack.c.b16 %v2130, %v2126
    %v2167 = vpack.c.b16 %v2131, %v2127
    %v2168 = vpack.c.b16 %v2132, %v2128
    %v2169 = vpack.c.b16 %v2137, %v2133
    %v2170 = vpack.c.b16 %v2138, %v2134
    %v2171 = vpack.c.b16 %v2139, %v2135
    %v2172 = vpack.c.b16 %v2140, %v2136
    %2205 = vmatprep.subr.bf16.mxu0 %v2142
    %2206 = vmatpush1.bf16.msra.mxu0 %v2141
    %2207 = vmatprep.subr.bf16.mxu0 %v2146
    %2208 = vmatpush1.bf16.msra.mxu0 %v2145
    %2209 = vmatprep.subr.bf16.mxu0 %v2150
    %2210 = vmatpush1.bf16.msra.mxu0 %v2149
    %2211 = vmatprep.subr.bf16.mxu0 %v2154
    %2212 = vmatpush1.bf16.msra.mxu0 %v2153
    %2213 = vmatprep.subr.bf16.mxu0 %v2158
    %2214 = vmatpush1.bf16.msra.mxu0 %v2157
    %2215 = vmatprep.subr.bf16.mxu0 %v2162
    %2216 = vmatpush1.bf16.msra.mxu0 %v2161
    %2217 = vmatprep.subr.bf16.mxu0 %v2166
    %2218 = vmatpush1.bf16.msra.mxu0 %v2165
    %2219 = vmatprep.subr.bf16.mxu0 %v2170
    %2220 = vmatpush1.bf16.msra.mxu0 %v2169
    %2221 = vmatprep.subr.bf16.mxu0 0
    %2222 = vmatpush1.bf16.msra.mxu0 0
    %2223 = vmatprep.subr.bf16.mxu0 0
    %2224 = vmatpush1.bf16.msra.mxu0 0
    %2225 = vmatprep.subr.bf16.mxu0 0
    %2226 = vmatpush1.bf16.msra.mxu0 0
    %2227 = vmatprep.subr.bf16.mxu0 0
    %2228 = vmatpush1.bf16.msra.mxu0 0
    %2229 = vmatprep.subr.bf16.mxu0 0
    %2230 = vmatpush1.bf16.msra.mxu0 0
    %2231 = vmatprep.subr.bf16.mxu0 0
    %2232 = vmatpush1.bf16.msra.mxu0 0
    %2233 = vmatprep.subr.bf16.mxu0 0
    %2234 = vmatpush1.bf16.msra.mxu0 0
    %2235 = vmatprep.subr.bf16.mxu0 0
    %2236 = vmatpush1.bf16.msra.mxu0 0
    %2237 = vmatprep.mubr.bf16.mxu0 0
    %2238 = vmatmul.mubr.bf16.gmra.mrb[0].mxu0 0
    %v2239 = vpop.f32.mrb[0].mxu0
    %v2240 = vadd.f32 0.0, %v2239
    %v2241 = vpop.f32.mrb[0].mxu0
    %v2242 = vadd.f32 0.0, %v2241
    %v2243 = vpop.f32.mrb[0].mxu0
    %v2244 = vpop.f32.mrb[0].mxu0
    %2245 = vdwg.mxu0
    %2246 = vmatprep.subr.bf16.mxu0 %v2144
    %2247 = vmatpush1.bf16.msra.mxu0 %v2143
    %2248 = vmatprep.subr.bf16.mxu0 %v2148
    %2249 = vmatpush1.bf16.msra.mxu0 %v2147
    %2250 = vmatprep.subr.bf16.mxu0 %v2152
    %2251 = vmatpush1.bf16.msra.mxu0 %v2151
    %2252 = vmatprep.subr.bf16.mxu0 %v2156
    %2253 = vmatpush1.bf16.msra.mxu0 %v2155
    %2254 = vmatprep.subr.bf16.mxu0 %v2160
    %2255 = vmatpush1.bf16.msra.mxu0 %v2159
    %2256 = vmatprep.subr.bf16.mxu0 %v2164
    %2257 = vmatpush1.bf16.msra.mxu0 %v2163
    %2258 = vmatprep.subr.bf16.mxu0 %v2168
    %2259 = vmatpush1.bf16.msra.mxu0 %v2167
    %2260 = vmatprep.subr.bf16.mxu0 %v2172
    %2261 = vmatpush1.bf16.msra.mxu0 %v2171
    %2262 = vmatprep.subr.bf16.mxu0 0
    %2263 = vmatpush1.bf16.msra.mxu0 0
    %2264 = vmatprep.subr.bf16.mxu0 0
    %2265 = vmatpush1.bf16.msra.mxu0 0
    %2266 = vmatprep.subr.bf16.mxu0 0
    %2267 = vmatpush1.bf16.msra.mxu0 0
    %2268 = vmatprep.subr.bf16.mxu0 0
    %2269 = vmatpush1.bf16.msra.mxu0 0
    %2270 = vmatprep.subr.bf16.mxu0 0
    %2271 = vmatpush1.bf16.msra.mxu0 0
    %2272 = vmatprep.subr.bf16.mxu0 0
    %2273 = vmatpush1.bf16.msra.mxu0 0
    %2274 = vmatprep.subr.bf16.mxu0 0
    %2275 = vmatpush1.bf16.msra.mxu0 0
    %2276 = vmatprep.subr.bf16.mxu0 0
    %2277 = vmatpush1.bf16.msra.mxu0 0
    %2278 = vmatprep.mubr.bf16.mxu0 0
    %2279 = vmatmul.mubr.bf16.gmra.mrb[0].mxu0 0
    %v2280 = vpop.f32.mrb[0].mxu0
    %v2281 = vadd.f32 0.0, %v2280
    %v2282 = vpop.f32.mrb[0].mxu0
    %v2283 = vadd.f32 0.0, %v2282
    %v2284 = vpop.f32.mrb[0].mxu0
    %v2285 = vpop.f32.mrb[0].mxu0
    %2286 = vdwg.mxu0
    %v2287 = vadd.f32 %v2041, %v2240
    %v2288 = vadd.f32 %v2042, %v2242
    %v2289 = vadd.f32 %v2043, %v2281
    %v2290 = vadd.f32 %v2044, %v2283
    %v2291 = vmul.f32 %v2287, 0.5
    %v2292 = vtanh.pop %v2291
    %v2293 = vmul.f32 %v2292, 0.5
    %v2294 = vadd.f32 %v2293, 0.5
    %v2295 = vmul.f32 %v2288, 0.5
    %v2296 = vtanh.pop %v2295
    %v2297 = vmul.f32 %v2296, 0.5
    %v2298 = vadd.f32 %v2297, 0.5
    %v2299 = vtanh.pop %v2289
    %v2300 = vmul.f32 %v2290, 0.5
    %v2301 = vtanh.pop %v2300
    %v2302 = vmul.f32 %v2301, 0.5
    %v2303 = vadd.f32 %v2302, 0.5
    %v2304 = vmul.f32 %v2298, 0.0
    %v2305 = vmul.f32 %v2294, %v2299
    %v2306 = vadd.f32 %v2304, %v2305
    %v2307 = vtanh.pop %v2306
    %v2308 = vmul.f32 %v2303, %v2307
    %v2309 = vpack.c.bf16 %v2308, %v2308
    %v2310 = vld [vmem:[%s822] sm:$0xff]
    %v2311 = vld [vmem:[%s822 + $0x8] sm:$0xff]
    %v2312 = vld [vmem:[%s822 + $0x10] sm:$0xff]
    %v2313 = vld [vmem:[%s822 + $0x18] sm:$0xff]
    %2314 = vmatprep.subr.bf16.mxu0 %v2142
    %2315 = vmatpush1.bf16.msra.mxu0 %v2141
    %2316 = vmatprep.subr.bf16.mxu0 %v2146
    %2317 = vmatpush1.bf16.msra.mxu0 %v2145
    %2318 = vmatprep.subr.bf16.mxu0 %v2150
    %2319 = vmatpush1.bf16.msra.mxu0 %v2149
    %2320 = vmatprep.subr.bf16.mxu0 %v2154
    %2321 = vmatpush1.bf16.msra.mxu0 %v2153
    %2322 = vmatprep.subr.bf16.mxu0 %v2158
    %2323 = vmatpush1.bf16.msra.mxu0 %v2157
    %2324 = vmatprep.subr.bf16.mxu0 %v2162
    %2325 = vmatpush1.bf16.msra.mxu0 %v2161
    %2326 = vmatprep.subr.bf16.mxu0 %v2166
    %2327 = vmatpush1.bf16.msra.mxu0 %v2165
    %2328 = vmatprep.subr.bf16.mxu0 %v2170
    %2329 = vmatpush1.bf16.msra.mxu0 %v2169
    %2330 = vmatprep.subr.bf16.mxu0 0
    %2331 = vmatpush1.bf16.msra.mxu0 0
    %2332 = vmatprep.subr.bf16.mxu0 0
    %2333 = vmatpush1.bf16.msra.mxu0 0
    %2334 = vmatprep.subr.bf16.mxu0 0
    %2335 = vmatpush1.bf16.msra.mxu0 0
    %2336 = vmatprep.subr.bf16.mxu0 0
    %2337 = vmatpush1.bf16.msra.mxu0 0
    %2338 = vmatprep.subr.bf16.mxu0 0
    %2339 = vmatpush1.bf16.msra.mxu0 0
    %2340 = vmatprep.subr.bf16.mxu0 0
    %2341 = vmatpush1.bf16.msra.mxu0 0
    %2342 = vmatprep.subr.bf16.mxu0 0
    %2343 = vmatpush1.bf16.msra.mxu0 0
    %2344 = vmatprep.subr.bf16.mxu0 0
    %2345 = vmatpush1.bf16.msra.mxu0 0
    %2346 = vmatprep.mubr.bf16.mxu0 0
    %2347 = vmatmul.mubr.bf16.gmra.mrb[0].mxu0 %v2309
    %v2348 = vpop.f32.mrb[0].mxu0
    %v2349 = vadd.f32 0.0, %v2348
    %v2350 = vpop.f32.mrb[0].mxu0
    %v2351 = vadd.f32 0.0, %v2350
    %v2352 = vpop.f32.mrb[0].mxu0
    %v2353 = vpop.f32.mrb[0].mxu0
    %2354 = vdwg.mxu0
    %2355 = vmatprep.subr.bf16.mxu0 %v2144
    %2356 = vmatpush1.bf16.msra.mxu0 %v2143
    %2357 = vmatprep.subr.bf16.mxu0 %v2148
    %2358 = vmatpush1.bf16.msra.mxu0 %v2147
    %2359 = vmatprep.subr.bf16.mxu0 %v2152
    %2360 = vmatpush1.bf16.msra.mxu0 %v2151
    %2361 = vmatprep.subr.bf16.mxu0 %v2156
    %2362 = vmatpush1.bf16.msra.mxu0 %v2155
    %2363 = vmatprep.subr.bf16.mxu0 %v2160
    %2364 = vmatpush1.bf16.msra.mxu0 %v2159
    %2365 = vmatprep.subr.bf16.mxu0 %v2164
    %2366 = vmatpush1.bf16.msra.mxu0 %v2163
    %2367 = vmatprep.subr.bf16.mxu0 %v2168
    %2368 = vmatpush1.bf16.msra.mxu0 %v2167
    %2369 = vmatprep.subr.bf16.mxu0 %v2172
    %2370 = vmatpush1.bf16.msra.mxu0 %v2171
    %2371 = vmatprep.subr.bf16.mxu0 0
    %2372 = vmatpush1.bf16.msra.mxu0 0
    %2373 = vmatprep.subr.bf16.mxu0 0
    %2374 = vmatpush1.bf16.msra.mxu0 0
    %2375 = vmatprep.subr.bf16.mxu0 0
    %2376 = vmatpush1.bf16.msra.mxu0 0
    %2377 = vmatprep.subr.bf16.mxu0 0
    %2378 = vmatpush1.bf16.msra.mxu0 0
    %2379 = vmatprep.subr.bf16.mxu0 0
    %2380 = vmatpush1.bf16.msra.mxu0 0
    %2381 = vmatprep.subr.bf16.mxu0 0
    %2382 = vmatpush1.bf16.msra.mxu0 0
    %2383 = vmatprep.subr.bf16.mxu0 0
    %2384 = vmatpush1.bf16.msra.mxu0 0
    %2385 = vmatprep.subr.bf16.mxu0 0
    %2386 = vmatpush1.bf16.msra.mxu0 0
    %2387 = vmatprep.mubr.bf16.mxu0 0
    %2388 = vmatmul.mubr.bf16.gmra.mrb[0].mxu0 %v2309
    %v2389 = vpop.f32.mrb[0].mxu0
    %v2390 = vadd.f32 0.0, %v2389
    %v2391 = vpop.f32.mrb[0].mxu0
    %v2392 = vadd.f32 0.0, %v2391
    %v2393 = vpop.f32.mrb[0].mxu0
    %v2394 = vpop.f32.mrb[0].mxu0
    %2395 = vdwg.mxu0
    %v2396 = vadd.f32 %v2310, %v2349
    %v2397 = vadd.f32 %v2311, %v2351
    %v2398 = vadd.f32 %v2312, %v2390
    %v2399 = vadd.f32 %v2313, %v2392
    %v2400 = vmul.f32 %v2396, 0.5
    %v2401 = vtanh.pop %v2400
    %v2402 = vmul.f32 %v2401, 0.5
    %v2403 = vadd.f32 %v2402, 0.5
    %v2404 = vmul.f32 %v2397, 0.5
    %v2405 = vtanh.pop %v2404
    %v2406 = vmul.f32 %v2405, 0.5
    %v2407 = vadd.f32 %v2406, 0.5
    %v2408 = vtanh.pop %v2398
    %v2409 = vmul.f32 %v2399, 0.5
    %v2410 = vtanh.pop %v2409
    %v2411 = vmul.f32 %v2410, 0.5
    %v2412 = vadd.f32 %v2411, 0.5
    %v2413 = vmul.f32 %v2407, %v2306
    %v2414 = vmul.f32 %v2403, %v2408
    %v2415 = vadd.f32 %v2413, %v2414
    %v2416 = vtanh.pop %v2415
    %v2417 = vmul.f32 %v2412, %v2416
    %v2418 = vpack.c.bf16 %v2417, %v2417
    %v2419 = vld [vmem:[%s934] sm:$0xff]
    %v2420 = vld [vmem:[%s934 + $0x8] sm:$0xff]
    %v2421 = vld [vmem:[%s934 + $0x10] sm:$0xff]
    %v2422 = vld [vmem:[%s934 + $0x18] sm:$0xff]
    %2423 = vmatprep.subr.bf16.mxu0 %v2142
    %2424 = vmatpush1.bf16.msra.mxu0 %v2141
    %2425 = vmatprep.subr.bf16.mxu0 %v2146
    %2426 = vmatpush1.bf16.msra.mxu0 %v2145
    %2427 = vmatprep.subr.bf16.mxu0 %v2150
    %2428 = vmatpush1.bf16.msra.mxu0 %v2149
    %2429 = vmatprep.subr.bf16.mxu0 %v2154
    %2430 = vmatpush1.bf16.msra.mxu0 %v2153
    %2431 = vmatprep.subr.bf16.mxu0 %v2158
    %2432 = vmatpush1.bf16.msra.mxu0 %v2157
    %2433 = vmatprep.subr.bf16.mxu0 %v2162
    %2434 = vmatpush1.bf16.msra.mxu0 %v2161
    %2435 = vmatprep.subr.bf16.mxu0 %v2166
    %2436 = vmatpush1.bf16.msra.mxu0 %v2165
    %2437 = vmatprep.subr.bf16.mxu0 %v2170
    %2438 = vmatpush1.bf16.msra.mxu0 %v2169
    %2439 = vmatprep.subr.bf16.mxu0 0
    %2440 = vmatpush1.bf16.msra.mxu0 0
    %2441 = vmatprep.subr.bf16.mxu0 0
    %2442 = vmatpush1.bf16.msra.mxu0 0
    %2443 = vmatprep.subr.bf16.mxu0 0
    %2444 = vmatpush1.bf16.msra.mxu0 0
    %2445 = vmatprep.subr.bf16.mxu0 0
    %2446 = vmatpush1.bf16.msra.mxu0 0
    %2447 = vmatprep.subr.bf16.mxu0 0
    %2448 = vmatpush1.bf16.msra.mxu0 0
    %2449 = vmatprep.subr.bf16.mxu0 0
    %2450 = vmatpush1.bf16.msra.mxu0 0
    %2451 = vmatprep.subr.bf16.mxu0 0
    %2452 = vmatpush1.bf16.msra.mxu0 0
    %2453 = vmatprep.subr.bf16.mxu0 0
    %2454 = vmatpush1.bf16.msra.mxu0 0
    %2455 = vmatprep.mubr.bf16.mxu0 0
    %2456 = vmatmul.mubr.bf16.gmra.mrb[0].mxu0 %v2418
    %v2457 = vpop.f32.mrb[0].mxu0
    %v2458 = vadd.f32 0.0, %v2457
    %v2459 = vpop.f32.mrb[0].mxu0
    %v2460 = vadd.f32 0.0, %v2459
    %v2461 = vpop.f32.mrb[0].mxu0
    %v2462 = vpop.f32.mrb[0].mxu0
    %2463 = vdwg.mxu0
    %2464 = vmatprep.subr.bf16.mxu0 %v2144
    %2465 = vmatpush1.bf16.msra.mxu0 %v2143
    %2466 = vmatprep.subr.bf16.mxu0 %v2148
    %2467 = vmatpush1.bf16.msra.mxu0 %v2147
    %2468 = vmatprep.subr.bf16.mxu0 %v2152
    %2469 = vmatpush1.bf16.msra.mxu0 %v2151
    %2470 = vmatprep.subr.bf16.mxu0 %v2156
    %2471 = vmatpush1.bf16.msra.mxu0 %v2155
    %2472 = vmatprep.subr.bf16.mxu0 %v2160
    %2473 = vmatpush1.bf16.msra.mxu0 %v2159
    %2474 = vmatprep.subr.bf16.mxu0 %v2164
    %2475 = vmatpush1.bf16.msra.mxu0 %v2163
    %2476 = vmatprep.subr.bf16.mxu0 %v2168
    %2477 = vmatpush1.bf16.msra.mxu0 %v2167
    %2478 = vmatprep.subr.bf16.mxu0 %v2172
    %2479 = vmatpush1.bf16.msra.mxu0 %v2171
    %2480 = vmatprep.subr.bf16.mxu0 0
    %2481 = vmatpush1.bf16.msra.mxu0 0
    %2482 = vmatprep.subr.bf16.mxu0 0
    %2483 = vmatpush1.bf16.msra.mxu0 0
    %2484 = vmatprep.subr.bf16.mxu0 0
    %2485 = vmatpush1.bf16.msra.mxu0 0
    %2486 = vmatprep.subr.bf16.mxu0 0
    %2487 = vmatpush1.bf16.msra.mxu0 0
    %2488 = vmatprep.subr.bf16.mxu0 0
    %2489 = vmatpush1.bf16.msra.mxu0 0
    %2490 = vmatprep.subr.bf16.mxu0 0
    %2491 = vmatpush1.bf16.msra.mxu0 0
    %2492 = vmatprep.subr.bf16.mxu0 0
    %2493 = vmatpush1.bf16.msra.mxu0 0
    %2494 = vmatprep.subr.bf16.mxu0 0
    %2495 = vmatpush1.bf16.msra.mxu0 0
    %2496 = vmatprep.mubr.bf16.mxu0 0
    %2497 = vmatmul.mubr.bf16.gmra.mrb[0].mxu0 %v2418
    %v2498 = vpop.f32.mrb[0].mxu0
    %v2499 = vadd.f32 0.0, %v2498
    %v2500 = vpop.f32.mrb[0].mxu0
    %v2501 = vadd.f32 0.0, %v2500
    %v2502 = vpop.f32.mrb[0].mxu0
    %v2503 = vpop.f32.mrb[0].mxu0
    %2504 = vdwg.mxu0
    %v2505 = vadd.f32 %v2419, %v2458
    %v2506 = vadd.f32 %v2420, %v2460
    %v2507 = vadd.f32 %v2421, %v2499
    %v2508 = vadd.f32 %v2422, %v2501
    %v2509 = vmul.f32 %v2505, 0.5
    %v2510 = vtanh.pop %v2509
    %v2511 = vmul.f32 %v2510, 0.5
    %v2512 = vadd.f32 %v2511, 0.5
    %v2513 = vmul.f32 %v2506, 0.5
    %v2514 = vtanh.pop %v2513
    %v2515 = vmul.f32 %v2514, 0.5
    %v2516 = vadd.f32 %v2515, 0.5
    %v2517 = vtanh.pop %v2507
    %v2518 = vmul.f32 %v2508, 0.5
    %v2519 = vtanh.pop %v2518
    %v2520 = vmul.f32 %v2519, 0.5
    %v2521 = vadd.f32 %v2520, 0.5
    %v2522 = vmul.f32 %v2516, %v2415
    %v2523 = vmul.f32 %v2512, %v2517
    %v2524 = vadd.f32 %v2522, %v2523
    %v2525 = vtanh.pop %v2524
    %v2526 = vmul.f32 %v2521, %v2525
    %v2527 = vpack.c.bf16 %v2526, %v2526
    %v2528 = vld [vmem:[%s1046] sm:$0xff]
    %v2529 = vld [vmem:[%s1046 + $0x8] sm:$0xff]
    %v2530 = vld [vmem:[%s1046 + $0x10] sm:$0xff]
    %v2531 = vld [vmem:[%s1046 + $0x18] sm:$0xff]
    %2532 = vmatprep.subr.bf16.mxu0 %v2142
    %2533 = vmatpush1.bf16.msra.mxu0 %v2141
    %2534 = vmatprep.subr.bf16.mxu0 %v2146
    %2535 = vmatpush1.bf16.msra.mxu0 %v2145
    %2536 = vmatprep.subr.bf16.mxu0 %v2150
    %2537 = vmatpush1.bf16.msra.mxu0 %v2149
    %2538 = vmatprep.subr.bf16.mxu0 %v2154
    %2539 = vmatpush1.bf16.msra.mxu0 %v2153
    %2540 = vmatprep.subr.bf16.mxu0 %v2158
    %2541 = vmatpush1.bf16.msra.mxu0 %v2157
    %2542 = vmatprep.subr.bf16.mxu0 %v2162
    %2543 = vmatpush1.bf16.msra.mxu0 %v2161
    %2544 = vmatprep.subr.bf16.mxu0 %v2166
    %2545 = vmatpush1.bf16.msra.mxu0 %v2165
    %2546 = vmatprep.subr.bf16.mxu0 %v2170
    %2547 = vmatpush1.bf16.msra.mxu0 %v2169
    %2548 = vmatprep.subr.bf16.mxu0 0
    %2549 = vmatpush1.bf16.msra.mxu0 0
    %2550 = vmatprep.subr.bf16.mxu0 0
    %2551 = vmatpush1.bf16.msra.mxu0 0
    %2552 = vmatprep.subr.bf16.mxu0 0
    %2553 = vmatpush1.bf16.msra.mxu0 0
    %2554 = vmatprep.subr.bf16.mxu0 0
    %2555 = vmatpush1.bf16.msra.mxu0 0
    %2556 = vmatprep.subr.bf16.mxu0 0
    %2557 = vmatpush1.bf16.msra.mxu0 0
    %2558 = vmatprep.subr.bf16.mxu0 0
    %2559 = vmatpush1.bf16.msra.mxu0 0
    %2560 = vmatprep.subr.bf16.mxu0 0
    %2561 = vmatpush1.bf16.msra.mxu0 0
    %2562 = vmatprep.subr.bf16.mxu0 0
    %2563 = vmatpush1.bf16.msra.mxu0 0
    %2564 = vmatprep.mubr.bf16.mxu0 0
    %2565 = vmatmul.mubr.bf16.gmra.mrb[0].mxu0 %v2527
    %v2566 = vpop.f32.mrb[0].mxu0
    %v2567 = vadd.f32 0.0, %v2566
    %v2568 = vpop.f32.mrb[0].mxu0
    %v2569 = vadd.f32 0.0, %v2568
    %v2570 = vpop.f32.mrb[0].mxu0
    %v2571 = vpop.f32.mrb[0].mxu0
    %2572 = vdwg.mxu0
    %2573 = vmatprep.subr.bf16.mxu0 %v2144
    %2574 = vmatpush1.bf16.msra.mxu0 %v2143
    %2575 = vmatprep.subr.bf16.mxu0 %v2148
    %2576 = vmatpush1.bf16.msra.mxu0 %v2147
    %2577 = vmatprep.subr.bf16.mxu0 %v2152
    %2578 = vmatpush1.bf16.msra.mxu0 %v2151
    %2579 = vmatprep.subr.bf16.mxu0 %v2156
    %2580 = vmatpush1.bf16.msra.mxu0 %v2155
    %2581 = vmatprep.subr.bf16.mxu0 %v2160
    %2582 = vmatpush1.bf16.msra.mxu0 %v2159
    %2583 = vmatprep.subr.bf16.mxu0 %v2164
    %2584 = vmatpush1.bf16.msra.mxu0 %v2163
    %2585 = vmatprep.subr.bf16.mxu0 %v2168
    %2586 = vmatpush1.bf16.msra.mxu0 %v2167
    %2587 = vmatprep.subr.bf16.mxu0 %v2172
    %2588 = vmatpush1.bf16.msra.mxu0 %v2171
    %2589 = vmatprep.subr.bf16.mxu0 0
    %2590 = vmatpush1.bf16.msra.mxu0 0
    %2591 = vmatprep.subr.bf16.mxu0 0
    %2592 = vmatpush1.bf16.msra.mxu0 0
    %2593 = vmatprep.subr.bf16.mxu0 0
    %2594 = vmatpush1.bf16.msra.mxu0 0
    %2595 = vmatprep.subr.bf16.mxu0 0
    %2596 = vmatpush1.bf16.msra.mxu0 0
    %2597 = vmatprep.subr.bf16.mxu0 0
    %2598 = vmatpush1.bf16.msra.mxu0 0
    %2599 = vmatprep.subr.bf16.mxu0 0
    %2600 = vmatpush1.bf16.msra.mxu0 0
    %2601 = vmatprep.subr.bf16.mxu0 0
    %2602 = vmatpush1.bf16.msra.mxu0 0
    %2603 = vmatprep.subr.bf16.mxu0 0
    %2604 = vmatpush1.bf16.msra.mxu0 0
    %2605 = vmatprep.mubr.bf16.mxu0 0
    %2606 = vmatmul.mubr.bf16.gmra.mrb[0].mxu0 %v2527
    %v2607 = vpop.f32.mrb[0].mxu0
    %v2608 = vadd.f32 0.0, %v2607
    %v2609 = vpop.f32.mrb[0].mxu0
    %v2610 = vadd.f32 0.0, %v2609
    %v2611 = vpop.f32.mrb[0].mxu0
    %v2612 = vpop.f32.mrb[0].mxu0
    %2613 = vdwg.mxu0
    %v2614 = vadd.f32 %v2528, %v2567
    %v2615 = vadd.f32 %v2529, %v2569
    %v2616 = vadd.f32 %v2530, %v2608
    %v2617 = vadd.f32 %v2531, %v2610
    %v2618 = vmul.f32 %v2614, 0.5
    %v2619 = vtanh.pop %v2618
    %v2620 = vmul.f32 %v2619, 0.5
    %v2621 = vadd.f32 %v2620, 0.5
    %v2622 = vmul.f32 %v2615, 0.5
    %v2623 = vtanh.pop %v2622
    %v2624 = vmul.f32 %v2623, 0.5
    %v2625 = vadd.f32 %v2624, 0.5
    %v2626 = vtanh.pop %v2616
    %v2627 = vmul.f32 %v2617, 0.5
    %v2628 = vtanh.pop %v2627
    %v2629 = vmul.f32 %v2628, 0.5
    %v2630 = vadd.f32 %v2629, 0.5
    %v2631 = vmul.f32 %v2625, %v2524
    %v2632 = vmul.f32 %v2621, %v2626
    %v2633 = vadd.f32 %v2631, %v2632
    %v2634 = vtanh.pop %v2633
    %v2635 = vmul.f32 %v2630, %v2634
    %v2636 = vpack.c.bf16 %v2635, %v2635
    %v2637 = vld [vmem:[%s1158] sm:$0xff]
    %v2638 = vld [vmem:[%s1158 + $0x8] sm:$0xff]
    %v2639 = vld [vmem:[%s1158 + $0x10] sm:$0xff]
    %v2640 = vld [vmem:[%s1158 + $0x18] sm:$0xff]
    %2641 = vmatprep.subr.bf16.mxu0 %v2142
    %2642 = vmatpush1.bf16.msra.mxu0 %v2141
    %2643 = vmatprep.subr.bf16.mxu0 %v2146
    %2644 = vmatpush1.bf16.msra.mxu0 %v2145
    %2645 = vmatprep.subr.bf16.mxu0 %v2150
    %2646 = vmatpush1.bf16.msra.mxu0 %v2149
    %2647 = vmatprep.subr.bf16.mxu0 %v2154
    %2648 = vmatpush1.bf16.msra.mxu0 %v2153
    %2649 = vmatprep.subr.bf16.mxu0 %v2158
    %2650 = vmatpush1.bf16.msra.mxu0 %v2157
    %2651 = vmatprep.subr.bf16.mxu0 %v2162
    %2652 = vmatpush1.bf16.msra.mxu0 %v2161
    %2653 = vmatprep.subr.bf16.mxu0 %v2166
    %2654 = vmatpush1.bf16.msra.mxu0 %v2165
    %2655 = vmatprep.subr.bf16.mxu0 %v2170
    %2656 = vmatpush1.bf16.msra.mxu0 %v2169
    %2657 = vmatprep.subr.bf16.mxu0 0
    %2658 = vmatpush1.bf16.msra.mxu0 0
    %2659 = vmatprep.subr.bf16.mxu0 0
    %2660 = vmatpush1.bf16.msra.mxu0 0
    %2661 = vmatprep.subr.bf16.mxu0 0
    %2662 = vmatpush1.bf16.msra.mxu0 0
    %2663 = vmatprep.subr.bf16.mxu0 0
    %2664 = vmatpush1.bf16.msra.mxu0 0
    %2665 = vmatprep.subr.bf16.mxu0 0
    %2666 = vmatpush1.bf16.msra.mxu0 0
    %2667 = vmatprep.subr.bf16.mxu0 0
    %2668 = vmatpush1.bf16.msra.mxu0 0
    %2669 = vmatprep.subr.bf16.mxu0 0
    %2670 = vmatpush1.bf16.msra.mxu0 0
    %2671 = vmatprep.subr.bf16.mxu0 0
    %2672 = vmatpush1.bf16.msra.mxu0 0
    %2673 = vmatprep.mubr.bf16.mxu0 0
    %2674 = vmatmul.mubr.bf16.gmra.mrb[0].mxu0 %v2636
    %v2675 = vpop.f32.mrb[0].mxu0
    %v2676 = vadd.f32 0.0, %v2675
    %v2677 = vpop.f32.mrb[0].mxu0
    %v2678 = vadd.f32 0.0, %v2677
    %v2679 = vpop.f32.mrb[0].mxu0
    %v2680 = vpop.f32.mrb[0].mxu0
    %2681 = vdwg.mxu0
    %2682 = vmatprep.subr.bf16.mxu0 %v2144
    %2683 = vmatpush1.bf16.msra.mxu0 %v2143
    %2684 = vmatprep.subr.bf16.mxu0 %v2148
    %2685 = vmatpush1.bf16.msra.mxu0 %v2147
    %2686 = vmatprep.subr.bf16.mxu0 %v2152
    %2687 = vmatpush1.bf16.msra.mxu0 %v2151
    %2688 = vmatprep.subr.bf16.mxu0 %v2156
    %2689 = vmatpush1.bf16.msra.mxu0 %v2155
    %2690 = vmatprep.subr.bf16.mxu0 %v2160
    %2691 = vmatpush1.bf16.msra.mxu0 %v2159
    %2692 = vmatprep.subr.bf16.mxu0 %v2164
    %2693 = vmatpush1.bf16.msra.mxu0 %v2163
    %2694 = vmatprep.subr.bf16.mxu0 %v2168
    %2695 = vmatpush1.bf16.msra.mxu0 %v2167
    %2696 = vmatprep.subr.bf16.mxu0 %v2172
    %2697 = vmatpush1.bf16.msra.mxu0 %v2171
    %2698 = vmatprep.subr.bf16.mxu0 0
    %2699 = vmatpush1.bf16.msra.mxu0 0
    %2700 = vmatprep.subr.bf16.mxu0 0
    %2701 = vmatpush1.bf16.msra.mxu0 0
    %2702 = vmatprep.subr.bf16.mxu0 0
    %2703 = vmatpush1.bf16.msra.mxu0 0
    %2704 = vmatprep.subr.bf16.mxu0 0
    %2705 = vmatpush1.bf16.msra.mxu0 0
    %2706 = vmatprep.subr.bf16.mxu0 0
    %2707 = vmatpush1.bf16.msra.mxu0 0
    %2708 = vmatprep.subr.bf16.mxu0 0
    %2709 = vmatpush1.bf16.msra.mxu0 0
    %2710 = vmatprep.subr.bf16.mxu0 0
    %2711 = vmatpush1.bf16.msra.mxu0 0
    %2712 = vmatprep.subr.bf16.mxu0 0
    %2713 = vmatpush1.bf16.msra.mxu0 0
    %2714 = vmatprep.mubr.bf16.mxu0 0
    %2715 = vmatmul.mubr.bf16.gmra.mrb[0].mxu0 %v2636
    %v2716 = vpop.f32.mrb[0].mxu0
    %v2717 = vadd.f32 0.0, %v2716
    %v2718 = vpop.f32.mrb[0].mxu0
    %v2719 = vadd.f32 0.0, %v2718
    %v2720 = vpop.f32.mrb[0].mxu0
    %v2721 = vpop.f32.mrb[0].mxu0
    %2722 = vdwg.mxu0
    %v2723 = vadd.f32 %v2637, %v2676
    %v2724 = vadd.f32 %v2638, %v2678
    %v2725 = vadd.f32 %v2639, %v2717
    %v2726 = vadd.f32 %v2640, %v2719
    %v2727 = vmul.f32 %v2723, 0.5
    %v2728 = vtanh.pop %v2727
    %v2729 = vmul.f32 %v2728, 0.5
    %v2730 = vadd.f32 %v2729, 0.5
    %v2731 = vmul.f32 %v2724, 0.5
    %v2732 = vtanh.pop %v2731
    %v2733 = vmul.f32 %v2732, 0.5
    %v2734 = vadd.f32 %v2733, 0.5
    %v2735 = vtanh.pop %v2725
    %v2736 = vmul.f32 %v2726, 0.5
    %v2737 = vtanh.pop %v2736
    %v2738 = vmul.f32 %v2737, 0.5
    %v2739 = vadd.f32 %v2738, 0.5
    %v2740 = vmul.f32 %v2734, %v2633
    %v2741 = vmul.f32 %v2730, %v2735
    %v2742 = vadd.f32 %v2740, %v2741
    %v2743 = vtanh.pop %v2742
    %v2744 = vmul.f32 %v2739, %v2743
    %v2745 = vpack.c.bf16 %v2744, %v2744
    %v2746 = vld [vmem:[%s1270] sm:$0xff]
    %v2747 = vld [vmem:[%s1270 + $0x8] sm:$0xff]
    %v2748 = vld [vmem:[%s1270 + $0x10] sm:$0xff]
    %v2749 = vld [vmem:[%s1270 + $0x18] sm:$0xff]
    %2750 = vmatprep.subr.bf16.mxu0 %v2142
    %2751 = vmatpush1.bf16.msra.mxu0 %v2141
    %2752 = vmatprep.subr.bf16.mxu0 %v2146
    %2753 = vmatpush1.bf16.msra.mxu0 %v2145
    %2754 = vmatprep.subr.bf16.mxu0 %v2150
    %2755 = vmatpush1.bf16.msra.mxu0 %v2149
    %2756 = vmatprep.subr.bf16.mxu0 %v2154
    %2757 = vmatpush1.bf16.msra.mxu0 %v2153
    %2758 = vmatprep.subr.bf16.mxu0 %v2158
    %2759 = vmatpush1.bf16.msra.mxu0 %v2157
    %2760 = vmatprep.subr.bf16.mxu0 %v2162
    %2761 = vmatpush1.bf16.msra.mxu0 %v2161
    %2762 = vmatprep.subr.bf16.mxu0 %v2166
    %2763 = vmatpush1.bf16.msra.mxu0 %v2165
    %2764 = vmatprep.subr.bf16.mxu0 %v2170
    %2765 = vmatpush1.bf16.msra.mxu0 %v2169
    %2766 = vmatprep.subr.bf16.mxu0 0
    %2767 = vmatpush1.bf16.msra.mxu0 0
    %2768 = vmatprep.subr.bf16.mxu0 0
    %2769 = vmatpush1.bf16.msra.mxu0 0
    %2770 = vmatprep.subr.bf16.mxu0 0
    %2771 = vmatpush1.bf16.msra.mxu0 0
    %2772 = vmatprep.subr.bf16.mxu0 0
    %2773 = vmatpush1.bf16.msra.mxu0 0
    %2774 = vmatprep.subr.bf16.mxu0 0
    %2775 = vmatpush1.bf16.msra.mxu0 0
    %2776 = vmatprep.subr.bf16.mxu0 0
    %2777 = vmatpush1.bf16.msra.mxu0 0
    %2778 = vmatprep.subr.bf16.mxu0 0
    %2779 = vmatpush1.bf16.msra.mxu0 0
    %2780 = vmatprep.subr.bf16.mxu0 0
    %2781 = vmatpush1.bf16.msra.mxu0 0
    %2782 = vmatprep.mubr.bf16.mxu0 0
    %2783 = vmatmul.mubr.bf16.gmra.mrb[0].mxu0 %v2745
    %v2784 = vpop.f32.mrb[0].mxu0
    %v2785 = vadd.f32 0.0, %v2784
    %v2786 = vpop.f32.mrb[0].mxu0
    %v2787 = vadd.f32 0.0, %v2786
    %v2788 = vpop.f32.mrb[0].mxu0
    %v2789 = vpop.f32.mrb[0].mxu0
    %2790 = vdwg.mxu0
    %2791 = vmatprep.subr.bf16.mxu0 %v2144
    %2792 = vmatpush1.bf16.msra.mxu0 %v2143
    %2793 = vmatprep.subr.bf16.mxu0 %v2148
    %2794 = vmatpush1.bf16.msra.mxu0 %v2147
    %2795 = vmatprep.subr.bf16.mxu0 %v2152
    %2796 = vmatpush1.bf16.msra.mxu0 %v2151
    %2797 = vmatprep.subr.bf16.mxu0 %v2156
    %2798 = vmatpush1.bf16.msra.mxu0 %v2155
    %2799 = vmatprep.subr.bf16.mxu0 %v2160
    %2800 = vmatpush1.bf16.msra.mxu0 %v2159
    %2801 = vmatprep.subr.bf16.mxu0 %v2164
    %2802 = vmatpush1.bf16.msra.mxu0 %v2163
    %2803 = vmatprep.subr.bf16.mxu0 %v2168
    %2804 = vmatpush1.bf16.msra.mxu0 %v2167
    %2805 = vmatprep.subr.bf16.mxu0 %v2172
    %2806 = vmatpush1.bf16.msra.mxu0 %v2171
    %2807 = vmatprep.subr.bf16.mxu0 0
    %2808 = vmatpush1.bf16.msra.mxu0 0
    %2809 = vmatprep.subr.bf16.mxu0 0
    %2810 = vmatpush1.bf16.msra.mxu0 0
    %2811 = vmatprep.subr.bf16.mxu0 0
    %2812 = vmatpush1.bf16.msra.mxu0 0
    %2813 = vmatprep.subr.bf16.mxu0 0
    %2814 = vmatpush1.bf16.msra.mxu0 0
    %2815 = vmatprep.subr.bf16.mxu0 0
    %2816 = vmatpush1.bf16.msra.mxu0 0
    %2817 = vmatprep.subr.bf16.mxu0 0
    %2818 = vmatpush1.bf16.msra.mxu0 0
    %2819 = vmatprep.subr.bf16.mxu0 0
    %2820 = vmatpush1.bf16.msra.mxu0 0
    %2821 = vmatprep.subr.bf16.mxu0 0
    %2822 = vmatpush1.bf16.msra.mxu0 0
    %2823 = vmatprep.mubr.bf16.mxu0 0
    %2824 = vmatmul.mubr.bf16.gmra.mrb[0].mxu0 %v2745
    %v2825 = vpop.f32.mrb[0].mxu0
    %v2826 = vadd.f32 0.0, %v2825
    %v2827 = vpop.f32.mrb[0].mxu0
    %v2828 = vadd.f32 0.0, %v2827
    %v2829 = vpop.f32.mrb[0].mxu0
    %v2830 = vpop.f32.mrb[0].mxu0
    %2831 = vdwg.mxu0
    %v2832 = vadd.f32 %v2746, %v2785
    %v2833 = vadd.f32 %v2747, %v2787
    %v2834 = vadd.f32 %v2748, %v2826
    %v2835 = vadd.f32 %v2749, %v2828
    %v2836 = vmul.f32 %v2832, 0.5
    %v2837 = vtanh.pop %v2836
    %v2838 = vmul.f32 %v2837, 0.5
    %v2839 = vadd.f32 %v2838, 0.5
    %v2840 = vmul.f32 %v2833, 0.5
    %v2841 = vtanh.pop %v2840
    %v2842 = vmul.f32 %v2841, 0.5
    %v2843 = vadd.f32 %v2842, 0.5
    %v2844 = vtanh.pop %v2834
    %v2845 = vmul.f32 %v2835, 0.5
    %v2846 = vtanh.pop %v2845
    %v2847 = vmul.f32 %v2846, 0.5
    %v2848 = vadd.f32 %v2847, 0.5
    %v2849 = vmul.f32 %v2843, %v2742
    %v2850 = vmul.f32 %v2839, %v2844
    %v2851 = vadd.f32 %v2849, %v2850
    %v2852 = vtanh.pop %v2851
    %v2853 = vmul.f32 %v2848, %v2852
    %v2854 = vpack.c.bf16 %v2853, %v2853
    %v2855 = vld [vmem:[%s1382] sm:$0xff]
    %v2856 = vld [vmem:[%s1382 + $0x8] sm:$0xff]
    %v2857 = vld [vmem:[%s1382 + $0x10] sm:$0xff]
    %v2858 = vld [vmem:[%s1382 + $0x18] sm:$0xff]
    %2859 = vmatprep.subr.bf16.mxu0 %v2142
    %2860 = vmatpush1.bf16.msra.mxu0 %v2141
    %2861 = vmatprep.subr.bf16.mxu0 %v2146
    %2862 = vmatpush1.bf16.msra.mxu0 %v2145
    %2863 = vmatprep.subr.bf16.mxu0 %v2150
    %2864 = vmatpush1.bf16.msra.mxu0 %v2149
    %2865 = vmatprep.subr.bf16.mxu0 %v2154
    %2866 = vmatpush1.bf16.msra.mxu0 %v2153
    %2867 = vmatprep.subr.bf16.mxu0 %v2158
    %2868 = vmatpush1.bf16.msra.mxu0 %v2157
    %2869 = vmatprep.subr.bf16.mxu0 %v2162
    %2870 = vmatpush1.bf16.msra.mxu0 %v2161
    %2871 = vmatprep.subr.bf16.mxu0 %v2166
    %2872 = vmatpush1.bf16.msra.mxu0 %v2165
    %2873 = vmatprep.subr.bf16.mxu0 %v2170
    %2874 = vmatpush1.bf16.msra.mxu0 %v2169
    %2875 = vmatprep.subr.bf16.mxu0 0
    %2876 = vmatpush1.bf16.msra.mxu0 0
    %2877 = vmatprep.subr.bf16.mxu0 0
    %2878 = vmatpush1.bf16.msra.mxu0 0
    %2879 = vmatprep.subr.bf16.mxu0 0
    %2880 = vmatpush1.bf16.msra.mxu0 0
    %2881 = vmatprep.subr.bf16.mxu0 0
    %2882 = vmatpush1.bf16.msra.mxu0 0
    %2883 = vmatprep.subr.bf16.mxu0 0
    %2884 = vmatpush1.bf16.msra.mxu0 0
    %2885 = vmatprep.subr.bf16.mxu0 0
    %2886 = vmatpush1.bf16.msra.mxu0 0
    %2887 = vmatprep.subr.bf16.mxu0 0
    %2888 = vmatpush1.bf16.msra.mxu0 0
    %2889 = vmatprep.subr.bf16.mxu0 0
    %2890 = vmatpush1.bf16.msra.mxu0 0
    %2891 = vmatprep.mubr.bf16.mxu0 0
    %2892 = vmatmul.mubr.bf16.gmra.mrb[0].mxu0 %v2854
    %v2893 = vpop.f32.mrb[0].mxu0
    %v2894 = vadd.f32 0.0, %v2893
    %v2895 = vpop.f32.mrb[0].mxu0
    %v2896 = vadd.f32 0.0, %v2895
    %v2897 = vpop.f32.mrb[0].mxu0
    %v2898 = vpop.f32.mrb[0].mxu0
    %2899 = vdwg.mxu0
    %2900 = vmatprep.subr.bf16.mxu0 %v2144
    %2901 = vmatpush1.bf16.msra.mxu0 %v2143
    %2902 = vmatprep.subr.bf16.mxu0 %v2148
    %2903 = vmatpush1.bf16.msra.mxu0 %v2147
    %2904 = vmatprep.subr.bf16.mxu0 %v2152
    %2905 = vmatpush1.bf16.msra.mxu0 %v2151
    %2906 = vmatprep.subr.bf16.mxu0 %v2156
    %2907 = vmatpush1.bf16.msra.mxu0 %v2155
    %2908 = vmatprep.subr.bf16.mxu0 %v2160
    %2909 = vmatpush1.bf16.msra.mxu0 %v2159
    %2910 = vmatprep.subr.bf16.mxu0 %v2164
    %2911 = vmatpush1.bf16.msra.mxu0 %v2163
    %2912 = vmatprep.subr.bf16.mxu0 %v2168
    %2913 = vmatpush1.bf16.msra.mxu0 %v2167
    %2914 = vmatprep.subr.bf16.mxu0 %v2172
    %2915 = vmatpush1.bf16.msra.mxu0 %v2171
    %2916 = vmatprep.subr.bf16.mxu0 0
    %2917 = vmatpush1.bf16.msra.mxu0 0
    %2918 = vmatprep.subr.bf16.mxu0 0
    %2919 = vmatpush1.bf16.msra.mxu0 0
    %2920 = vmatprep.subr.bf16.mxu0 0
    %2921 = vmatpush1.bf16.msra.mxu0 0
    %2922 = vmatprep.subr.bf16.mxu0 0
    %2923 = vmatpush1.bf16.msra.mxu0 0
    %2924 = vmatprep.subr.bf16.mxu0 0
    %2925 = vmatpush1.bf16.msra.mxu0 0
    %2926 = vmatprep.subr.bf16.mxu0 0
    %2927 = vmatpush1.bf16.msra.mxu0 0
    %2928 = vmatprep.subr.bf16.mxu0 0
    %2929 = vmatpush1.bf16.msra.mxu0 0
    %2930 = vmatprep.subr.bf16.mxu0 0
    %2931 = vmatpush1.bf16.msra.mxu0 0
    %2932 = vmatprep.mubr.bf16.mxu0 0
    %2933 = vmatmul.mubr.bf16.gmra.mrb[0].mxu0 %v2854
    %v2934 = vpop.f32.mrb[0].mxu0
    %v2935 = vadd.f32 0.0, %v2934
    %v2936 = vpop.f32.mrb[0].mxu0
    %v2937 = vadd.f32 0.0, %v2936
    %v2938 = vpop.f32.mrb[0].mxu0
    %v2939 = vpop.f32.mrb[0].mxu0
    %2940 = vdwg.mxu0
    %v2941 = vadd.f32 %v2855, %v2894
    %v2942 = vadd.f32 %v2856, %v2896
    %v2943 = vadd.f32 %v2857, %v2935
    %v2944 = vadd.f32 %v2858, %v2937
    %v2945 = vmul.f32 %v2941, 0.5
    %v2946 = vtanh.pop %v2945
    %v2947 = vmul.f32 %v2946, 0.5
    %v2948 = vadd.f32 %v2947, 0.5
    %v2949 = vmul.f32 %v2942, 0.5
    %v2950 = vtanh.pop %v2949
    %v2951 = vmul.f32 %v2950, 0.5
    %v2952 = vadd.f32 %v2951, 0.5
    %v2953 = vtanh.pop %v2943
    %v2954 = vmul.f32 %v2944, 0.5
    %v2955 = vtanh.pop %v2954
    %v2956 = vmul.f32 %v2955, 0.5
    %v2957 = vadd.f32 %v2956, 0.5
    %v2958 = vmul.f32 %v2952, %v2851
    %v2959 = vmul.f32 %v2948, %v2953
    %v2960 = vadd.f32 %v2958, %v2959
    %v2961 = vtanh.pop %v2960
    %v2962 = vmul.f32 %v2957, %v2961
    %v2963 = vpack.c.bf16 %v2962, %v2962
    %v2964 = vld [vmem:[%s1494] sm:$0xff]
    %v2965 = vld [vmem:[%s1494 + $0x8] sm:$0xff]
    %v2966 = vld [vmem:[%s1494 + $0x10] sm:$0xff]
    %v2967 = vld [vmem:[%s1494 + $0x18] sm:$0xff]
    %2968 = vmatprep.subr.bf16.mxu0 %v2142
    %2969 = vmatpush1.bf16.msra.mxu0 %v2141
    %2970 = vmatprep.subr.bf16.mxu0 %v2146
    %2971 = vmatpush1.bf16.msra.mxu0 %v2145
    %2972 = vmatprep.subr.bf16.mxu0 %v2150
    %2973 = vmatpush1.bf16.msra.mxu0 %v2149
    %2974 = vmatprep.subr.bf16.mxu0 %v2154
    %2975 = vmatpush1.bf16.msra.mxu0 %v2153
    %2976 = vmatprep.subr.bf16.mxu0 %v2158
    %2977 = vmatpush1.bf16.msra.mxu0 %v2157
    %2978 = vmatprep.subr.bf16.mxu0 %v2162
    %2979 = vmatpush1.bf16.msra.mxu0 %v2161
    %2980 = vmatprep.subr.bf16.mxu0 %v2166
    %2981 = vmatpush1.bf16.msra.mxu0 %v2165
    %2982 = vmatprep.subr.bf16.mxu0 %v2170
    %2983 = vmatpush1.bf16.msra.mxu0 %v2169
    %2984 = vmatprep.subr.bf16.mxu0 0
    %2985 = vmatpush1.bf16.msra.mxu0 0
    %2986 = vmatprep.subr.bf16.mxu0 0
    %2987 = vmatpush1.bf16.msra.mxu0 0
    %2988 = vmatprep.subr.bf16.mxu0 0
    %2989 = vmatpush1.bf16.msra.mxu0 0
    %2990 = vmatprep.subr.bf16.mxu0 0
    %2991 = vmatpush1.bf16.msra.mxu0 0
    %2992 = vmatprep.subr.bf16.mxu0 0
    %2993 = vmatpush1.bf16.msra.mxu0 0
    %2994 = vmatprep.subr.bf16.mxu0 0
    %2995 = vmatpush1.bf16.msra.mxu0 0
    %2996 = vmatprep.subr.bf16.mxu0 0
    %2997 = vmatpush1.bf16.msra.mxu0 0
    %2998 = vmatprep.subr.bf16.mxu0 0
    %2999 = vmatpush1.bf16.msra.mxu0 0
    %3000 = vmatprep.mubr.bf16.mxu0 0
    %3001 = vmatmul.mubr.bf16.gmra.mrb[0].mxu0 %v2963
    %v3002 = vpop.f32.mrb[0].mxu0
    %v3003 = vadd.f32 0.0, %v3002
    %v3004 = vpop.f32.mrb[0].mxu0
    %v3005 = vadd.f32 0.0, %v3004
    %v3006 = vpop.f32.mrb[0].mxu0
    %v3007 = vpop.f32.mrb[0].mxu0
    %3008 = vdwg.mxu0
    %3009 = vmatprep.subr.bf16.mxu0 %v2144
    %3010 = vmatpush1.bf16.msra.mxu0 %v2143
    %3011 = vmatprep.subr.bf16.mxu0 %v2148
    %3012 = vmatpush1.bf16.msra.mxu0 %v2147
    %3013 = vmatprep.subr.bf16.mxu0 %v2152
    %3014 = vmatpush1.bf16.msra.mxu0 %v2151
    %3015 = vmatprep.subr.bf16.mxu0 %v2156
    %3016 = vmatpush1.bf16.msra.mxu0 %v2155
    %3017 = vmatprep.subr.bf16.mxu0 %v2160
    %3018 = vmatpush1.bf16.msra.mxu0 %v2159
    %3019 = vmatprep.subr.bf16.mxu0 %v2164
    %3020 = vmatpush1.bf16.msra.mxu0 %v2163
    %3021 = vmatprep.subr.bf16.mxu0 %v2168
    %3022 = vmatpush1.bf16.msra.mxu0 %v2167
    %3023 = vmatprep.subr.bf16.mxu0 %v2172
    %3024 = vmatpush1.bf16.msra.mxu0 %v2171
    %3025 = vmatprep.subr.bf16.mxu0 0
    %3026 = vmatpush1.bf16.msra.mxu0 0
    %3027 = vmatprep.subr.bf16.mxu0 0
    %3028 = vmatpush1.bf16.msra.mxu0 0
    %3029 = vmatprep.subr.bf16.mxu0 0
    %3030 = vmatpush1.bf16.msra.mxu0 0
    %3031 = vmatprep.subr.bf16.mxu0 0
    %3032 = vmatpush1.bf16.msra.mxu0 0
    %3033 = vmatprep.subr.bf16.mxu0 0
    %3034 = vmatpush1.bf16.msra.mxu0 0
    %3035 = vmatprep.subr.bf16.mxu0 0
    %3036 = vmatpush1.bf16.msra.mxu0 0
    %3037 = vmatprep.subr.bf16.mxu0 0
    %3038 = vmatpush1.bf16.msra.mxu0 0
    %3039 = vmatprep.subr.bf16.mxu0 0
    %3040 = vmatpush1.bf16.msra.mxu0 0
    %3041 = vmatprep.mubr.bf16.mxu0 0
    %3042 = vmatmul.mubr.bf16.gmra.mrb[0].mxu0 %v2963
    %v3043 = vpop.f32.mrb[0].mxu0
    %v3044 = vadd.f32 0.0, %v3043
    %v3045 = vpop.f32.mrb[0].mxu0
    %v3046 = vadd.f32 0.0, %v3045
    %v3047 = vpop.f32.mrb[0].mxu0
    %v3048 = vpop.f32.mrb[0].mxu0
    %3049 = vdwg.mxu0
    %v3050 = vadd.f32 %v2964, %v3003
    %v3051 = vadd.f32 %v2965, %v3005
    %v3052 = vadd.f32 %v2966, %v3044
    %v3053 = vadd.f32 %v2967, %v3046
    %v3054 = vmul.f32 %v3050, 0.5
    %v3055 = vtanh.pop %v3054
    %v3056 = vmul.f32 %v3055, 0.5
    %v3057 = vadd.f32 %v3056, 0.5
    %v3058 = vmul.f32 %v3051, 0.5
    %v3059 = vtanh.pop %v3058
    %v3060 = vmul.f32 %v3059, 0.5
    %v3061 = vadd.f32 %v3060, 0.5
    %v3062 = vtanh.pop %v3052
    %v3063 = vmul.f32 %v3053, 0.5
    %v3064 = vtanh.pop %v3063
    %v3065 = vmul.f32 %v3064, 0.5
    %v3066 = vadd.f32 %v3065, 0.5
    %v3067 = vmul.f32 %v3061, %v2960
    %v3068 = vmul.f32 %v3057, %v3062
    %v3069 = vadd.f32 %v3067, %v3068
    %v3070 = vtanh.pop %v3069
    %v3071 = vmul.f32 %v3066, %v3070
    %v3072 = vpack.c.bf16 %v3071, %v3071
    %v3073 = vld [vmem:[#allocation13] sm:$0xf]
    %v3074 = vld [vmem:[#allocation13 + $0x4] sm:$0xf]
    %v3075 = vld [vmem:[#allocation13 + $0x8] sm:$0xf]
    %v3076 = vld [vmem:[#allocation13 + $0xc] sm:$0xf]
    %v3077 = vld [vmem:[#allocation13 + $0x10] sm:$0xf]
    %v3078 = vld [vmem:[#allocation13 + $0x14] sm:$0xf]
    %v3079 = vld [vmem:[#allocation13 + $0x18] sm:$0xf]
    %v3080 = vld [vmem:[#allocation13 + $0x1c] sm:$0xf]
    %v3081 = vld [vmem:[#allocation13 + $0x20] sm:$0xf]
    %v3082 = vld [vmem:[#allocation13 + $0x24] sm:$0xf]
    %v3083 = vld [vmem:[#allocation13 + $0x28] sm:$0xf]
    %v3084 = vld [vmem:[#allocation13 + $0x2c] sm:$0xf]
    %v3085 = vld [vmem:[#allocation13 + $0x30] sm:$0xf]
    %v3086 = vld [vmem:[#allocation13 + $0x34] sm:$0xf]
    %v3087 = vld [vmem:[#allocation13 + $0x38] sm:$0xf]
    %v3088 = vld [vmem:[#allocation13 + $0x3c] sm:$0xf]
    %v3089 = vld [vmem:[%s8] sm:$0x1]
    %v3091 = vlaneseq
    %v3092 = vshrl.u32 %v3091, 7
    %v3093 = vsub.s32 0, %v3092
    %v3094 = vrot.slane %v3089, %v3093
    %v3112 = vunpack.c.l.b16 %v3073
    %v3113 = vunpack.c.l.b16 %v3074
    %v3114 = vunpack.c.l.b16 %v3075
    %v3115 = vunpack.c.l.b16 %v3076
    %v3116 = vunpack.c.l.b16 %v3077
    %v3117 = vunpack.c.l.b16 %v3078
    %v3118 = vunpack.c.l.b16 %v3079
    %v3119 = vunpack.c.l.b16 %v3080
    %v3120 = vunpack.c.l.b16 %v3081
    %v3121 = vunpack.c.l.b16 %v3082
    %v3122 = vunpack.c.l.b16 %v3083
    %v3123 = vunpack.c.l.b16 %v3084
    %v3124 = vunpack.c.l.b16 %v3085
    %v3125 = vunpack.c.l.b16 %v3086
    %v3126 = vunpack.c.l.b16 %v3087
    %v3127 = vunpack.c.l.b16 %v3088
    %v3128 = vpack.c.b16 %v3113, %v3112
    %v3129 = vpack.c.b16 %v3115, %v3114
    %v3130 = vpack.c.b16 %v3117, %v3116
    %v3131 = vpack.c.b16 %v3119, %v3118
    %v3132 = vpack.c.b16 %v3121, %v3120
    %v3133 = vpack.c.b16 %v3123, %v3122
    %v3134 = vpack.c.b16 %v3125, %v3124
    %v3135 = vpack.c.b16 %v3127, %v3126
    %3144 = vmatprep.subr.bf16.mxu0 0
    %3145 = vmatpush1.bf16.msra.mxu0 %v3128
    %3146 = vmatprep.subr.bf16.mxu0 0
    %3147 = vmatpush1.bf16.msra.mxu0 %v3129
    %3148 = vmatprep.subr.bf16.mxu0 0
    %3149 = vmatpush1.bf16.msra.mxu0 %v3130
    %3150 = vmatprep.subr.bf16.mxu0 0
    %3151 = vmatpush1.bf16.msra.mxu0 %v3131
    %3152 = vmatprep.subr.bf16.mxu0 0
    %3153 = vmatpush1.bf16.msra.mxu0 %v3132
    %3154 = vmatprep.subr.bf16.mxu0 0
    %3155 = vmatpush1.bf16.msra.mxu0 %v3133
    %3156 = vmatprep.subr.bf16.mxu0 0
    %3157 = vmatpush1.bf16.msra.mxu0 %v3134
    %3158 = vmatprep.subr.bf16.mxu0 0
    %3159 = vmatpush1.bf16.msra.mxu0 %v3135
    %3160 = vmatprep.subr.bf16.mxu0 0
    %3161 = vmatpush1.bf16.msra.mxu0 0
    %3162 = vmatprep.subr.bf16.mxu0 0
    %3163 = vmatpush1.bf16.msra.mxu0 0
    %3164 = vmatprep.subr.bf16.mxu0 0
    %3165 = vmatpush1.bf16.msra.mxu0 0
    %3166 = vmatprep.subr.bf16.mxu0 0
    %3167 = vmatpush1.bf16.msra.mxu0 0
    %3168 = vmatprep.subr.bf16.mxu0 0
    %3169 = vmatpush1.bf16.msra.mxu0 0
    %3170 = vmatprep.subr.bf16.mxu0 0
    %3171 = vmatpush1.bf16.msra.mxu0 0
    %3172 = vmatprep.subr.bf16.mxu0 0
    %3173 = vmatpush1.bf16.msra.mxu0 0
    %3174 = vmatprep.subr.bf16.mxu0 0
    %3175 = vmatpush1.bf16.msra.mxu0 0
    %3176 = vmatprep.mubr.bf16.mxu0 0
    %3177 = vmatmul.mubr.bf16.gmra.mrb[0].mxu0 %v3072
    %v3178 = vpop.f32.mrb[0].mxu0
    %v3179 = vadd.f32 %v3094, %v3178
    %v3180 = vpop.f32.mrb[0].mxu0
    %v3181 = vpop.f32.mrb[0].mxu0
    %v3182 = vpop.f32.mrb[0].mxu0
    %3183 = vdwg.mxu0
    %3184 = vst [vmem:[#allocation15] sm:$0xff] %v3179
    // Predicated region
    $region62: #{tpu_custom_call.1} parent=1 // pred_check
      _
    $region63: #{tpu_custom_call.1} parent=1 // pred_check_branch
      %3186 = sbr.rel (0) target = $region65
    $region64: #{tpu_custom_call.1} parent=1 // pred_region
      %s3188 = ssub.s32 128, 128
      %3189 = vsyncadd [#allocation6], %s3188
      %s3191 = sshll.u32 [#allocation15], 4
      %s3192 = int_to_ptr.vmem [resolvable:$true] %s3191
      %3194 = dma.vmem_to_hbm [thread:$0]  %s3192, 128, %s9, [#allocation6]
    $region65: #{tpu_custom_call.1} parent=1 // pred_fallthru
      _
    // Predicated region
    $region66: #{tpu_custom_call.1} parent=1 // pred_check
      _
    $region67: #{tpu_custom_call.1} parent=1 // pred_check_branch
      %3196 = sbr.rel (0) target = $region69
    $region68: #{tpu_custom_call.1} parent=1 // pred_region
      %3197 = dma.done [#allocation6], 128
    $region69: #{tpu_custom_call.1} parent=1 // pred_fallthru
      _
    %3198 = vsyncpa [#allocation5], 1
    %3199 = vsyncpa [#allocation8], 1
    %3200 = vsyncpa [#allocation11], 1
    %3201 = vsyncpa [#allocation14], 1
    %3202 = vsyncpa [#allocation6], 1

</llo_original>
